<compile_context>
chip_gen: v7x
topology: tpu7x:2x2x1
jax: 0.10.0
libtpu: 0.0.40
codegen_flags: <defaults>
</compile_context>

<pallas_src>
import functools
import math

import jax
import jax.numpy as jnp
from jax import lax
from jax.experimental import pallas as pl
from jax.experimental.pallas import tpu as pltpu


def _cdiv(a, b):
    return -(-a // b)


def _round_up(a, b):
    return _cdiv(a, b) * b


# ---------------------------------------------------------------------------
# Pallas kernel: packed per-token MLP
#   x(R,Lin) @ W1(Lin,Lh) + b1 -> segment LayerNorm -> GELU -> @ W2(Lh,Lout)+b2
# Each kernel row holds several tokens; W1/W2 are block-structured so tokens
# never mix; LN is done per hid-sized lane segment via the averaging matrix A.
# ---------------------------------------------------------------------------
def _hire_mlp_kernel(x_ref, w1_ref, b1_ref, g_ref, beta_ref, a_ref, w2_ref,
                     b2_ref, o_ref):
    # Native-dtype operands straight to the MXU, f32 accumulation.
    x = x_ref[...]
    h = jnp.dot(x, w1_ref[...], preferred_element_type=jnp.float32)
    h = h + b1_ref[...]                                       # (bm, Lh) f32

    # Segment LayerNorm (eps=1e-5, biased variance, divisor = true hid):
    # mean and E[h^2] via one MXU matmul each (A holds 1/hid in hid x hid
    # diagonal blocks) -> no cross-lane XLU reductions, fully lane-parallel,
    # and the MXU slot is otherwise idle between the two big matmuls.
    mean = jnp.dot(h, a_ref[...], preferred_element_type=jnp.float32)
    msq = jnp.dot(h * h, a_ref[...], preferred_element_type=jnp.float32)
    var = jnp.maximum(msq - mean * mean, 0.0)
    hn = (h - mean) * lax.rsqrt(var + 1e-5)
    hn = hn * g_ref[...] + beta_ref[...]

    # Exact GELU (erf form) -- matches torch.nn.GELU() default.
    ge = 0.5 * hn * (1.0 + lax.erf(hn * 0.7071067811865476))

    out = jnp.dot(ge.astype(w2_ref.dtype), w2_ref[...],
                  preferred_element_type=jnp.float32)
    out = out + b2_ref[...]
    o_ref[...] = out.astype(o_ref.dtype)


def _choose_pack(lin0, lh0):
    """Tokens packed per kernel row so every lane dim is >= 128 (lane dense)."""
    lmin = min(lin0, lh0)
    if lmin >= 128:
        return 1
    k = _cdiv(128, lmin)
    k = min(k, max(1, 4096 // max(lin0, lh0)))   # keep packed blocks reasonable
    return max(1, k)


def _choose_bm(rows, lin, lh, lout, itemsize):
    """Block rows: as large as a conservative VMEM budget allows (v7x has only
    64 MiB), but keep >= 2 grid steps when there is enough work so both v7x
    TensorCores (and megacore on v5e/v6e) get a share."""
    rows8 = _round_up(max(rows, 1), 8)
    bm = min(512, rows8)
    weight_bytes = (lin * lh + lh * lh + lh * lout + 4 * lh + lout) * 4
    budget = max(40 * 1024 * 1024 - 2 * weight_bytes, 1 * 1024 * 1024)
    # Double-buffered input/output tiles plus the f32 intermediates the kernel
    # materializes in VMEM (h, mean, msq, hn/ge ~= 4 * lh f32 per row).
    per_row = 2 * (lin + lout) * itemsize + 4 * lh * 4
    bm_cap = max(8, (budget // per_row) // 8 * 8)
    bm = min(bm, bm_cap)
    if rows8 >= 16 and _cdiv(rows, bm) < 2:
        bm = max(8, _round_up(_cdiv(rows, 2), 8))
    return bm


def _hire_mlp_packed(xk, w1b, b1b, gb, bb, ab, w2b, b2b, *, bm):
    rows, lin = xk.shape
    lh = w1b.shape[1]
    lout = w2b.shape[1]
    grid = (rows // bm,)

    flops = 2 * rows * (lin * lh + 2 * lh * lh + lh * lout)
    bytes_accessed = (rows * (lin + lout) * xk.dtype.itemsize
                      + (lin * lh + lh * lh + lh * lout) * w1b.dtype.itemsize)
    cost = pl.CostEstimate(flops=int(flops), transcendentals=int(2 * rows * lh),
                           bytes_accessed=int(bytes_accessed))

    # TODO(synk): mark the constant-index weight specs with
    # pipeline_mode=pl.Buffered(1) (they never change block) once that option
    # is uniformly supported, to save their double-buffer VMEM on v7x.
    const = lambda i: (0, 0)
    return pl.pallas_call(
        _hire_mlp_kernel,
        out_shape=jax.ShapeDtypeStruct((rows, lout), xk.dtype),
        grid_spec=pltpu.PrefetchScalarGridSpec(
            num_scalar_prefetch=0,
            grid=grid,
            in_specs=[
                pl.BlockSpec((bm, lin), lambda i: (i, 0)),    # packed tokens
                pl.BlockSpec((lin, lh), const),               # W1 (block struct)
                pl.BlockSpec((1, lh), const),                 # b1
                pl.BlockSpec((1, lh), const),                 # LN gamma
                pl.BlockSpec((1, lh), const),                 # LN beta
                pl.BlockSpec((lh, lh), const),                # segment-mean mat
                pl.BlockSpec((lh, lout), const),              # W2 (block struct)
                pl.BlockSpec((1, lout), const),               # b2
            ],
            out_specs=pl.BlockSpec((bm, lout), lambda i: (i, 0)),
        ),
        compiler_params=pltpu.CompilerParams(
            dimension_semantics=("parallel",),
            vmem_limit_bytes=48 * 1024 * 1024),
        cost_estimate=cost,
    )(xk, w1b, b1b.reshape(1, -1), gb.reshape(1, -1), bb.reshape(1, -1),
      ab, w2b, b2b.reshape(1, -1))


def _build_super_weights(w1, b1, gamma, beta, w2, b2, *, C, r, M, hid, k,
                         dtype):
    """Fold the HireUnit region (un)grouping permutation into block-structured
    weights so the activation tensor never needs a transpose in HBM.

      input feature order / row layout : (token q, region offset j, mid m, c)
      hidden order                     : (token q, mid m, e)
    w1 rows / w2 cols use the PyTorch feature order c*r + j.
    """
    f32 = jnp.float32
    eye_m = jnp.eye(M, dtype=f32)
    w1_jce = jnp.transpose(w1.astype(f32).reshape(C, r, hid), (1, 0, 2))
    w1_sup = jnp.einsum("jce,mn->jmcne", w1_jce, eye_m).reshape(
        r * M * C, M * hid)
    w2_ecj = w2.astype(f32).reshape(hid, C, r)
    w2_sup = jnp.einsum("ecj,mn->mejnc", w2_ecj, eye_m).reshape(
        M * hid, r * M * C)
    b1_sup = jnp.tile(b1.astype(f32), M)
    g_sup = jnp.tile(gamma.astype(f32), M)
    be_sup = jnp.tile(beta.astype(f32), M)
    b2_jc = jnp.transpose(b2.astype(f32).reshape(C, r), (1, 0))
    b2_sup = jnp.broadcast_to(b2_jc[:, None, :], (r, M, C)).reshape(r * M * C)
    if k > 1:  # pack k tokens per kernel row: block-diagonal replicate
        eye_k = jnp.eye(k, dtype=f32)
        w1_sup = jnp.kron(eye_k, w1_sup)
        w2_sup = jnp.kron(eye_k, w2_sup)
        b1_sup = jnp.tile(b1_sup, k)
        g_sup = jnp.tile(g_sup, k)
        be_sup = jnp.tile(be_sup, k)
        b2_sup = jnp.tile(b2_sup, k)
    lh = k * M * hid
    # Segment averaging matrix: 1/hid inside each hid x hid diagonal block, so
    # LN statistics always divide by the true hid (no masked-lane pollution).
    a_seg = jnp.kron(jnp.eye(lh // hid, dtype=f32),
                     jnp.full((hid, hid), 1.0 / hid, f32))
    return (w1_sup.astype(dtype), b1_sup, g_sup, be_sup, a_seg,
            w2_sup.astype(dtype), b2_sup)


def hire_unit_forward(x, params, *, region_size, shift_step, dim):
    """HireUnit forward.  x: (B, H, W, D, C)."""
    w1, b1, gamma, beta, w2, b2 = params
    r = region_size
    shape = x.shape
    C = shape[-1]
    hid = w1.shape[1]
    assert w1.shape[0] == C * r and w2.shape == (hid, C * r)

    if shift_step > 0:
        x = jnp.roll(x, shift_step, axis=dim)

    # Pad the grouped axis to a multiple of region_size; the zero rows join the
    # last region exactly like the PyTorch module.
    L = shape[dim]
    pad = (-L) % r
    if pad:
        cfg = [(0, 0)] * x.ndim
        cfg[dim] = (0, pad)
        x = jnp.pad(x, cfg)
    Gr = L + pad
    G = Gr // r

    pre = math.prod(shape[:dim])              # dims before the grouped axis
    mid_shape = shape[dim + 1:-1]             # dims between grouped axis and C
    M = math.prod(mid_shape) if mid_shape else 1
    padded_shape = x.shape

    lin0 = r * M * C                          # features of one "super token"
    lh0 = M * hid
    k = _choose_pack(lin0, lh0)
    lin, lh = k * lin0, k * lh0

    # Tiny, one-time weight prep (folds grouping permutation + token packing).
    w1b, b1b, gb, bb, ab, w2b, b2b = _build_super_weights(
        w1, b1, gamma, beta, w2, b2, C=C, r=r, M=M, hid=hid, k=k,
        dtype=x.dtype)

    # Free reshape: memory order is already (pre..., G, (j, mid..., c)).
    rows0 = pre * G
    x2 = x.reshape(rows0, lin0)

    rows_packed = _cdiv(rows0, k)
    bm = _choose_bm(rows_packed, lin, lh, lin, x.dtype.itemsize)
    rows_packed_pad = _round_up(rows_packed, bm)
    rows0_pad = rows_packed_pad * k
    if rows0_pad != rows0:
        # Zero rows just flow through the MLP (LN is well defined thanks to
        # eps) and are sliced off below.
        x2 = jnp.pad(x2, ((0, rows0_pad - rows0), (0, 0)))
    xk = x2.reshape(rows_packed_pad, lin)

    yk = _hire_mlp_packed(xk, w1b, b1b, gb, bb, ab, w2b, b2b, bm=bm)

    # Kernel writes in the natural (j, mid..., c) layout, so the un-grouping is
    # again just free reshapes + one slice.
    y = yk.reshape(rows0_pad, lin0)[:rows0].reshape(padded_shape)
    if pad:
        y = lax.slice_in_dim(y, 0, L, axis=dim)
    if shift_step > 0:
        y = jnp.roll(y, -shift_step, axis=dim)
    # TODO(synk): the remaining roll/pad/slice XLA passes could also be folded
    # into manual-DMA (memory_space=pl.ANY) index maps; left in XLA for now.
    return y


hire_unit_forward_jit = functools.partial(
    jax.jit, static_argnames=("region_size", "shift_step", "dim"))(
        hire_unit_forward)


# ---------------------------------------------------------------------------
# Pure-JAX, PyTorch-faithful reference (explicit permutes) for validation.
# ---------------------------------------------------------------------------
def hire_unit_reference(x, params, *, region_size, shift_step, dim):
    w1, b1, gamma, beta, w2, b2 = params
    B, H, W, D, C = x.shape
    r = region_size
    if shift_step > 0:
        x = jnp.roll(x, shift_step, axis=dim)
    if dim == 1:
        pad = (r - H % r) % r
        xp = jnp.pad(x, ((0, 0), (0, pad), (0, 0), (0, 0), (0, 0)))
        G = (H + pad) // r
        t = (xp.reshape(B, G, r, W, D, C).transpose(0, 1, 3, 4, 5, 2)
               .reshape(B, G, W, D, r * C))
    elif dim == 2:
        pad = (r - W % r) % r
        xp = jnp.pad(x, ((0, 0), (0, 0), (0, pad), (0, 0), (0, 0)))
        G = (W + pad) // r
        t = (xp.reshape(B, H, G, r, D, C).transpose(0, 1, 2, 4, 5, 3)
               .reshape(B, H, G, D, r * C))
    else:
        pad = (r - D % r) % r
        xp = jnp.pad(x, ((0, 0), (0, 0), (0, 0), (0, pad), (0, 0)))
        G = (D + pad) // r
        t = (xp.reshape(B, H, W, G, r, C).transpose(0, 1, 2, 3, 5, 4)
               .reshape(B, H, W, G, r * C))
    h = t @ w1 + b1
    mean = jnp.mean(h, axis=-1, keepdims=True)
    var = jnp.mean((h - mean) ** 2, axis=-1, keepdims=True)
    hn = (h - mean) * lax.rsqrt(var + 1e-5) * gamma + beta
    ge = 0.5 * hn * (1.0 + lax.erf(hn * 0.7071067811865476))
    y = ge @ w2 + b2
    if dim == 1:
        y = (y.reshape(B, G, W, D, C, r).transpose(0, 1, 5, 2, 3, 4)
               .reshape(B, G * r, W, D, C))[:, :H]
    elif dim == 2:
        y = (y.reshape(B, H, G, D, C, r).transpose(0, 1, 2, 5, 3, 4)
               .reshape(B, H, G * r, D, C))[:, :, :W]
    else:
        y = (y.reshape(B, H, W, G, C, r).transpose(0, 1, 2, 3, 5, 4)
               .reshape(B, H, W, G * r, C))[:, :, :, :D]
    if shift_step > 0:
        y = jnp.roll(y, -shift_step, axis=dim)
    return y


if __name__ == "__main__":
    # Module hyper-params (num_channels == C of the input).
    num_channels = 8
    region_size = 2
    hid = num_channels // 2
    cin = num_channels * region_size

    # Deterministic synthetic parameters.
    key = jax.random.PRNGKey(0)
    k_x, k_w1, k_b1, k_w2, k_b2 = jax.random.split(key, 5)
    w1 = jax.random.normal(k_w1, (cin, hid), jnp.float32) * 0.1
    b1 = jax.random.normal(k_b1, (hid,), jnp.float32) * 0.1
    gamma = jnp.ones((hid,), jnp.float32)
    beta = jnp.zeros((hid,), jnp.float32)
    w2 = jax.random.normal(k_w2, (hid, cin), jnp.float32) * 0.1
    b2 = jax.random.normal(k_b2, (cin,), jnp.float32) * 0.1
    params = (w1, b1, gamma, beta, w2, b2)

    # Input (B, H, W, D, C); W=7 exercises the padding branch for dim=2.
    B, H, W, D, C = 2, 8, 7, 8, num_channels
    x = jax.random.normal(k_x, (B, H, W, D, C), jnp.float32)

    # f32 checks against the PyTorch-faithful reference for all 3 mixing dims.
    for dim, shift in ((2, 1), (1, 1), (3, 1)):
        y = jax.block_until_ready(hire_unit_forward_jit(
            x, params, region_size=region_size, shift_step=shift, dim=dim))
        assert y.shape == x.shape, (y.shape, x.shape)
        ref = hire_unit_reference(x, params, region_size=region_size,
                                  shift_step=shift, dim=dim)
        assert jnp.allclose(y, ref, atol=2e-4, rtol=2e-4), f"mismatch dim={dim}"

    # bf16 path: native-dtype MXU operands with f32 accumulation (loose check).
    xb = x.astype(jnp.bfloat16)
    yb = jax.block_until_ready(hire_unit_forward_jit(
        xb, params, region_size=region_size, shift_step=1, dim=2))
    assert yb.dtype == jnp.bfloat16 and yb.shape == x.shape
    ref = hire_unit_reference(x, params, region_size=region_size,
                              shift_step=1, dim=2)
    assert float(jnp.max(jnp.abs(yb.astype(jnp.float32) - ref))) < 0.2, \
        "bf16 mismatch"

    print("KERNEL_OK")
</pallas_src>

<mosaic_0001>
module attributes {stable_mosaic.version = 11 : i64} {
  func.func @_hire_mlp_kernel(%arg0: i32, %arg1: memref<8x512xf32, #tpu.memory_space<vmem>>, %arg2: memref<512x128xf32, #tpu.memory_space<vmem>>, %arg3: memref<1x128xf32, #tpu.memory_space<vmem>>, %arg4: memref<1x128xf32, #tpu.memory_space<vmem>>, %arg5: memref<1x128xf32, #tpu.memory_space<vmem>>, %arg6: memref<128x128xf32, #tpu.memory_space<vmem>>, %arg7: memref<128x512xf32, #tpu.memory_space<vmem>>, %arg8: memref<1x512xf32, #tpu.memory_space<vmem>>, %arg9: memref<8x512xf32, #tpu.memory_space<vmem>>) attributes {dimension_semantics = [#tpu.dimension_semantics<parallel>], iteration_bounds = array<i64: 2>, scalar_prefetch = 0 : i64, scratch_operands = 0 : i64, tpu.core_type = #tpu.core_type<tc>, window_params = [{transform_indices = @transform_0, window_bounds = array<i64: 8, 512>}, {pipeline_mode = #tpu.pipeline_mode<synchronous>, transform_indices = @transform_1, window_bounds = array<i64: 512, 128>}, {pipeline_mode = #tpu.pipeline_mode<synchronous>, transform_indices = @transform_2, window_bounds = array<i64: 1, 128>}, {pipeline_mode = #tpu.pipeline_mode<synchronous>, transform_indices = @transform_3, window_bounds = array<i64: 1, 128>}, {pipeline_mode = #tpu.pipeline_mode<synchronous>, transform_indices = @transform_4, window_bounds = array<i64: 1, 128>}, {pipeline_mode = #tpu.pipeline_mode<synchronous>, transform_indices = @transform_5, window_bounds = array<i64: 128, 128>}, {pipeline_mode = #tpu.pipeline_mode<synchronous>, transform_indices = @transform_6, window_bounds = array<i64: 128, 512>}, {pipeline_mode = #tpu.pipeline_mode<synchronous>, transform_indices = @transform_7, window_bounds = array<i64: 1, 512>}, {transform_indices = @transform_8, window_bounds = array<i64: 8, 512>}]} {
    %c0 = arith.constant 0 : index
    %c0_0 = arith.constant 0 : index
    %0 = vector.load %arg1[%c0, %c0_0] : memref<8x512xf32, #tpu.memory_space<vmem>>, vector<8x512xf32>
    %c0_1 = arith.constant 0 : index
    %c0_2 = arith.constant 0 : index
    %1 = vector.load %arg2[%c0_1, %c0_2] : memref<512x128xf32, #tpu.memory_space<vmem>>, vector<512x128xf32>
    %cst = arith.constant dense<0.000000e+00> : vector<8x128xf32>
    %2 = tpu.matmul %0, %1, %cst {dimension_numbers = #tpu.dot_dimension_numbers<[1], [0], [0], [1], [0, 0, 1, 1], [], []>} : vector<8x512xf32>, vector<512x128xf32>, vector<8x128xf32> -> vector<8x128xf32>
    %c0_3 = arith.constant 0 : index
    %c0_4 = arith.constant 0 : index
    %3 = vector.load %arg3[%c0_3, %c0_4] : memref<1x128xf32, #tpu.memory_space<vmem>>, vector<1x128xf32>
    %4 = vector.broadcast %3 : vector<1x128xf32> to vector<8x128xf32>
    %5 = arith.addf %2, %4 : vector<8x128xf32>
    %c0_5 = arith.constant 0 : index
    %c0_6 = arith.constant 0 : index
    %6 = vector.load %arg6[%c0_5, %c0_6] : memref<128x128xf32, #tpu.memory_space<vmem>>, vector<128x128xf32>
    %cst_7 = arith.constant dense<0.000000e+00> : vector<8x128xf32>
    %7 = tpu.matmul %5, %6, %cst_7 {dimension_numbers = #tpu.dot_dimension_numbers<[1], [0], [0], [1], [0, 0, 1, 1], [], []>} : vector<8x128xf32>, vector<128x128xf32>, vector<8x128xf32> -> vector<8x128xf32>
    %8 = arith.mulf %5, %5 : vector<8x128xf32>
    %c0_8 = arith.constant 0 : index
    %c0_9 = arith.constant 0 : index
    %9 = vector.load %arg6[%c0_8, %c0_9] : memref<128x128xf32, #tpu.memory_space<vmem>>, vector<128x128xf32>
    %cst_10 = arith.constant dense<0.000000e+00> : vector<8x128xf32>
    %10 = tpu.matmul %8, %9, %cst_10 {dimension_numbers = #tpu.dot_dimension_numbers<[1], [0], [0], [1], [0, 0, 1, 1], [], []>} : vector<8x128xf32>, vector<128x128xf32>, vector<8x128xf32> -> vector<8x128xf32>
    %11 = arith.mulf %7, %7 : vector<8x128xf32>
    %12 = arith.subf %10, %11 : vector<8x128xf32>
    %cst_11 = arith.constant 0.000000e+00 : f32
    %13 = vector.broadcast %cst_11 : f32 to vector<8x128xf32>
    %14 = arith.maximumf %12, %13 : vector<8x128xf32>
    %15 = arith.subf %5, %7 : vector<8x128xf32>
    %cst_12 = arith.constant 9.99999974E-6 : f32
    %16 = vector.broadcast %cst_12 : f32 to vector<8x128xf32>
    %17 = arith.addf %14, %16 : vector<8x128xf32>
    %18 = math.rsqrt %17 : vector<8x128xf32>
    %19 = arith.mulf %15, %18 : vector<8x128xf32>
    %c0_13 = arith.constant 0 : index
    %c0_14 = arith.constant 0 : index
    %20 = vector.load %arg4[%c0_13, %c0_14] : memref<1x128xf32, #tpu.memory_space<vmem>>, vector<1x128xf32>
    %21 = vector.broadcast %20 : vector<1x128xf32> to vector<8x128xf32>
    %22 = arith.mulf %19, %21 : vector<8x128xf32>
    %c0_15 = arith.constant 0 : index
    %c0_16 = arith.constant 0 : index
    %23 = vector.load %arg5[%c0_15, %c0_16] : memref<1x128xf32, #tpu.memory_space<vmem>>, vector<1x128xf32>
    %24 = vector.broadcast %23 : vector<1x128xf32> to vector<8x128xf32>
    %25 = arith.addf %22, %24 : vector<8x128xf32>
    %cst_17 = arith.constant 5.000000e-01 : f32
    %26 = vector.broadcast %cst_17 : f32 to vector<8x128xf32>
    %27 = arith.mulf %26, %25 : vector<8x128xf32>
    %cst_18 = arith.constant 0.707106769 : f32
    %28 = vector.broadcast %cst_18 : f32 to vector<8x128xf32>
    %29 = arith.mulf %25, %28 : vector<8x128xf32>
    %30 = math.erf %29 : vector<8x128xf32>
    %cst_19 = arith.constant 1.000000e+00 : f32
    %31 = vector.broadcast %cst_19 : f32 to vector<8x128xf32>
    %32 = arith.addf %31, %30 : vector<8x128xf32>
    %33 = arith.mulf %27, %32 : vector<8x128xf32>
    %c0_20 = arith.constant 0 : index
    %c0_21 = arith.constant 0 : index
    %34 = vector.load %arg7[%c0_20, %c0_21] : memref<128x512xf32, #tpu.memory_space<vmem>>, vector<128x512xf32>
    %cst_22 = arith.constant dense<0.000000e+00> : vector<8x512xf32>
    %35 = tpu.matmul %33, %34, %cst_22 {dimension_numbers = #tpu.dot_dimension_numbers<[1], [0], [0], [1], [0, 0, 1, 1], [], []>} : vector<8x128xf32>, vector<128x512xf32>, vector<8x512xf32> -> vector<8x512xf32>
    %c0_23 = arith.constant 0 : index
    %c0_24 = arith.constant 0 : index
    %36 = vector.load %arg8[%c0_23, %c0_24] : memref<1x512xf32, #tpu.memory_space<vmem>>, vector<1x512xf32>
    %37 = vector.broadcast %36 : vector<1x512xf32> to vector<8x512xf32>
    %38 = arith.addf %35, %37 : vector<8x512xf32>
    %c0_25 = arith.constant 0 : index
    %c0_26 = arith.constant 0 : index
    %39 = vector.load %arg9[%c0_25, %c0_26] : memref<8x512xf32, #tpu.memory_space<vmem>>, vector<8x512xf32>
    tpu.vector_store %arg9[%c0_25, %c0_26], %38 {strides = array<i32>} : memref<8x512xf32, #tpu.memory_space<vmem>>, vector<8x512xf32>,
    return
  }
  func.func @transform_0(%arg0: i32) -> (i32, i32) {
    %c0_i32 = arith.constant 0 : i32
    %c0_i32_0 = arith.constant 0 : i32
    return %arg0, %c0_i32 : i32, i32
  }
  func.func @transform_1(%arg0: i32) -> (i32, i32) {
    %c0_i32 = arith.constant 0 : i32
    %c0_i32_0 = arith.constant 0 : i32
    %c0_i32_1 = arith.constant 0 : i32
    return %c0_i32, %c0_i32_0 : i32, i32
  }
  func.func @transform_2(%arg0: i32) -> (i32, i32) {
    %c0_i32 = arith.constant 0 : i32
    %c0_i32_0 = arith.constant 0 : i32
    %c0_i32_1 = arith.constant 0 : i32
    return %c0_i32, %c0_i32_0 : i32, i32
  }
  func.func @transform_3(%arg0: i32) -> (i32, i32) {
    %c0_i32 = arith.constant 0 : i32
    %c0_i32_0 = arith.constant 0 : i32
    %c0_i32_1 = arith.constant 0 : i32
    return %c0_i32, %c0_i32_0 : i32, i32
  }
  func.func @transform_4(%arg0: i32) -> (i32, i32) {
    %c0_i32 = arith.constant 0 : i32
    %c0_i32_0 = arith.constant 0 : i32
    %c0_i32_1 = arith.constant 0 : i32
    return %c0_i32, %c0_i32_0 : i32, i32
  }
  func.func @transform_5(%arg0: i32) -> (i32, i32) {
    %c0_i32 = arith.constant 0 : i32
    %c0_i32_0 = arith.constant 0 : i32
    %c0_i32_1 = arith.constant 0 : i32
    return %c0_i32, %c0_i32_0 : i32, i32
  }
  func.func @transform_6(%arg0: i32) -> (i32, i32) {
    %c0_i32 = arith.constant 0 : i32
    %c0_i32_0 = arith.constant 0 : i32
    %c0_i32_1 = arith.constant 0 : i32
    return %c0_i32, %c0_i32_0 : i32, i32
  }
  func.func @transform_7(%arg0: i32) -> (i32, i32) {
    %c0_i32 = arith.constant 0 : i32
    %c0_i32_0 = arith.constant 0 : i32
    %c0_i32_1 = arith.constant 0 : i32
    return %c0_i32, %c0_i32_0 : i32, i32
  }
  func.func @transform_8(%arg0: i32) -> (i32, i32) {
    %c0_i32 = arith.constant 0 : i32
    %c0_i32_0 = arith.constant 0 : i32
    return %arg0, %c0_i32 : i32, i32
  }
}

</mosaic_0001>

<llo_original>
// kernel: tile.34
$region0: #{tile.34}
  #allocation0 [shape = 's32[1]{0}', space=sflag, size = 0x4, scoped, tag = 'scoped memory for tile.34']
  %s0 = inlined_call_operand.vmem [shape: f32[4], index: 0, kind: input, shape index: {}]
  %s1 = inlined_call_operand.vmem [shape: f32[8,4], index: 1, kind: output, shape index: {}]
  // Predicated region
  $region2: #{tile.34} parent=0 // pred_check
    _
  $region3: #{tile.34} parent=0 // pred_check_branch
    %3 = sbr.rel (0) target = $region5
  $region4: #{tile.34} parent=0 // pred_region
    _
  $region5: #{tile.34} parent=0 // pred_fallthru
    _
  %v4 = vld [vmem:[%s0] ss:$0 sm:$0xff]
  %5 = vst [vmem:[%s1] sm:$0xff] %v4

// kernel: tile.45
$region0: #{tile.45}
  %s0 = inlined_call_operand.vmem [shape: f32[8,4], index: 0, kind: input, shape index: {}]
  %s1 = inlined_call_operand.vmem [shape: f32[32], index: 1, kind: output, shape index: {}]
  $region1: #{tile.45} parent=0
    #allocation0 [shape = 'u8[4096]{0}', space=vmem, size = 0x1000, scoped, tag = 'scoped mem for output reshape']
    %v2 = vld [vmem:[%s0] sm:$0x1]
    %vm3 = vcmask 31744
    %4 = vst.msk [vmem:[#allocation0] sm:$0x1] %vm3, %v2
    %s5 = scalar_lea.vmem %s0, 7
    %v6 = vld [vmem:[%s5] sm:$0x1]
    %7 = vrot.lane.b32.xlu0 %v6, 28
    %v8 = vpop.permute.xlu0 %7
    %vm9 = vcmask 261344
    %10 = vst.msk [vmem:[#allocation0] sm:$0x1] %vm9, %v8
    %s11 = scalar_lea.vmem %s0, 6
    %v12 = vld [vmem:[%s11] sm:$0x1]
    %13 = vrot.lane.b32.xlu0 %v12, 24
    %v14 = vpop.permute.xlu0 %13
    %vm15 = vcmask 228544
    %16 = vst.msk [vmem:[#allocation0] sm:$0x1] %vm15, %v14
    %s17 = scalar_lea.vmem %s0, 5
    %v18 = vld [vmem:[%s17] sm:$0x1]
    %19 = vrot.lane.b32.xlu0 %v18, 20
    %v20 = vpop.permute.xlu0 %19
    %vm21 = vcmask 195744
    %22 = vst.msk [vmem:[#allocation0] sm:$0x1] %vm21, %v20
    %s23 = scalar_lea.vmem %s0, 4
    %v24 = vld [vmem:[%s23] sm:$0x1]
    %25 = vrot.lane.b32.xlu0 %v24, 16
    %v26 = vpop.permute.xlu0 %25
    %vm27 = vcmask 162944
    %28 = vst.msk [vmem:[#allocation0] sm:$0x1] %vm27, %v26
    %s29 = scalar_lea.vmem %s0, 3
    %v30 = vld [vmem:[%s29] sm:$0x1]
    %31 = vrot.lane.b32.xlu0 %v30, 12
    %v32 = vpop.permute.xlu0 %31
    %vm33 = vcmask 130144
    %34 = vst.msk [vmem:[#allocation0] sm:$0x1] %vm33, %v32
    %s35 = scalar_lea.vmem %s0, 2
    %v36 = vld [vmem:[%s35] sm:$0x1]
    %37 = vrot.lane.b32.xlu0 %v36, 8
    %v38 = vpop.permute.xlu0 %37
    %vm39 = vcmask 97344
    %40 = vst.msk [vmem:[#allocation0] sm:$0x1] %vm39, %v38
    %s41 = scalar_lea.vmem %s0, 1
    %v42 = vld [vmem:[%s41] sm:$0x1]
    %43 = vrot.lane.b32.xlu0 %v42, 4
    %v44 = vpop.permute.xlu0 %43
    %vm45 = vcmask 64544
    %46 = vst.msk [vmem:[#allocation0] sm:$0x1] %vm45, %v44
    %s48 = sshllo.u32 0, 1
    %v50 = vld [vmem:[#allocation0] sm:%s48]
    %s51 = sshllo.u32 0, 1
    %52 = vst [vmem:[%s1] sm:%s51] %v50

// kernel: tile.46
$region0: #{tile.46}
  #allocation0 [shape = 's32[1]{0}', space=sflag, size = 0x4, scoped, tag = 'scoped memory for tile.46']
  %s0 = inlined_call_operand.vmem [shape: f32[32], index: 0, kind: input, shape index: {}]
  %s1 = inlined_call_operand.vmem [shape: f32[4,32], index: 1, kind: output, shape index: {}]
  // Predicated region
  $region2: #{tile.46} parent=0 // pred_check
    _
  $region3: #{tile.46} parent=0 // pred_check_branch
    %3 = sbr.rel (0) target = $region5
  $region4: #{tile.46} parent=0 // pred_region
    _
  $region5: #{tile.46} parent=0 // pred_fallthru
    _
  %v4 = vld [vmem:[%s0] ss:$0 sm:$0xff]
  %5 = vst [vmem:[%s1] sm:$0xf] %v4

// kernel: mul.4
$region0: #{mul.4}
  %s0 = inlined_call_operand.vmem [shape: f32[2,8,8,8,4], index: 0, kind: input, shape index: {}]
  %s1 = inlined_call_operand.vmem [shape: f32[128,32], index: 1, kind: output, shape index: {}]
  %s2 = smov 3
  %v3 = vld [vmem:[%s0] ss:$16 sm:%s2]
  %s4 = smov 12
  %v5 = vld [vmem:[%s0] ss:$16 sm:%s4]
  %vm6 = vcmask 1043458
  %v7 = vsel %vm6, %v5, %v3
  %s8 = smov 48
  %v9 = vld [vmem:[%s0] ss:$16 sm:%s8]
  %vm10 = vcmask 1045508
  %v11 = vsel %vm10, %v9, %v7
  %s12 = smov 192
  %v13 = vld [vmem:[%s0] ss:$16 sm:%s12]
  %vm14 = vcmask 1047558
  %v15 = vsel %vm14, %v13, %v11
  %vm16 = vcmask 64512
  %17 = vst.msk [vmem:[%s1] sm:$0xff] %vm16, %v15
  %s18 = scalar_lea.vmem %s0, 128
  %s19 = smov 3
  %v20 = vld [vmem:[%s18] ss:$16 sm:%s19]
  %s21 = scalar_lea.vmem %s0, 128
  %s22 = smov 12
  %v23 = vld [vmem:[%s21] ss:$16 sm:%s22]
  %vm24 = vcmask 1043458
  %v25 = vsel %vm24, %v23, %v20
  %s26 = scalar_lea.vmem %s0, 128
  %s27 = smov 48
  %v28 = vld [vmem:[%s26] ss:$16 sm:%s27]
  %vm29 = vcmask 1045508
  %v30 = vsel %vm29, %v28, %v25
  %s31 = scalar_lea.vmem %s0, 128
  %s32 = smov 192
  %v33 = vld [vmem:[%s31] ss:$16 sm:%s32]
  %vm34 = vcmask 1047558
  %v35 = vsel %vm34, %v33, %v30
  %vm36 = vcmask 64512
  %s37 = scalar_lea.vmem %s1, 8
  %38 = vst.msk [vmem:[%s37] sm:$0xff] %vm36, %v35
  %s39 = scalar_lea.vmem %s0, 256
  %s40 = smov 3
  %v41 = vld [vmem:[%s39] ss:$16 sm:%s40]
  %s42 = scalar_lea.vmem %s0, 256
  %s43 = smov 12
  %v44 = vld [vmem:[%s42] ss:$16 sm:%s43]
  %vm45 = vcmask 1043458
  %v46 = vsel %vm45, %v44, %v41
  %s47 = scalar_lea.vmem %s0, 256
  %s48 = smov 48
  %v49 = vld [vmem:[%s47] ss:$16 sm:%s48]
  %vm50 = vcmask 1045508
  %v51 = vsel %vm50, %v49, %v46
  %s52 = scalar_lea.vmem %s0, 256
  %s53 = smov 192
  %v54 = vld [vmem:[%s52] ss:$16 sm:%s53]
  %vm55 = vcmask 1047558
  %v56 = vsel %vm55, %v54, %v51
  %vm57 = vcmask 64512
  %s58 = scalar_lea.vmem %s1, 16
  %59 = vst.msk [vmem:[%s58] sm:$0xff] %vm57, %v56
  %s60 = scalar_lea.vmem %s0, 384
  %s61 = smov 3
  %v62 = vld [vmem:[%s60] ss:$16 sm:%s61]
  %s63 = scalar_lea.vmem %s0, 384
  %s64 = smov 12
  %v65 = vld [vmem:[%s63] ss:$16 sm:%s64]
  %vm66 = vcmask 1043458
  %v67 = vsel %vm66, %v65, %v62
  %s68 = scalar_lea.vmem %s0, 384
  %s69 = smov 48
  %v70 = vld [vmem:[%s68] ss:$16 sm:%s69]
  %vm71 = vcmask 1045508
  %v72 = vsel %vm71, %v70, %v67
  %s73 = scalar_lea.vmem %s0, 384
  %s74 = smov 192
  %v75 = vld [vmem:[%s73] ss:$16 sm:%s74]
  %vm76 = vcmask 1047558
  %v77 = vsel %vm76, %v75, %v72
  %vm78 = vcmask 64512
  %s79 = scalar_lea.vmem %s1, 24
  %80 = vst.msk [vmem:[%s79] sm:$0xff] %vm78, %v77
  %s81 = scalar_lea.vmem %s0, 15
  %s82 = smov 3
  %v83 = vld [vmem:[%s81] ss:$16 sm:%s82]
  %s84 = scalar_lea.vmem %s0, 15
  %s85 = smov 12
  %v86 = vld [vmem:[%s84] ss:$16 sm:%s85]
  %vm87 = vcmask 1043458
  %v88 = vsel %vm87, %v86, %v83
  %s89 = scalar_lea.vmem %s0, 15
  %s90 = smov 48
  %v91 = vld [vmem:[%s89] ss:$16 sm:%s90]
  %vm92 = vcmask 1045508
  %v93 = vsel %vm92, %v91, %v88
  %s94 = scalar_lea.vmem %s0, 15
  %s95 = smov 192
  %v96 = vld [vmem:[%s94] ss:$16 sm:%s95]
  %vm97 = vcmask 1047558
  %v98 = vsel %vm97, %v96, %v93
  %99 = vrot.lane.b32.xlu0 %v98, 120
  %v100 = vpop.permute.xlu0 %99
  %vm101 = vcmask 1048512
  %102 = vst.msk [vmem:[%s1] sm:$0xff] %vm101, %v100
  %s103 = scalar_lea.vmem %s0, 143
  %s104 = smov 3
  %v105 = vld [vmem:[%s103] ss:$16 sm:%s104]
  %s106 = scalar_lea.vmem %s0, 143
  %s107 = smov 12
  %v108 = vld [vmem:[%s106] ss:$16 sm:%s107]
  %vm109 = vcmask 1043458
  %v110 = vsel %vm109, %v108, %v105
  %s111 = scalar_lea.vmem %s0, 143
  %s112 = smov 48
  %v113 = vld [vmem:[%s111] ss:$16 sm:%s112]
  %vm114 = vcmask 1045508
  %v115 = vsel %vm114, %v113, %v110
  %s116 = scalar_lea.vmem %s0, 143
  %s117 = smov 192
  %v118 = vld [vmem:[%s116] ss:$16 sm:%s117]
  %vm119 = vcmask 1047558
  %v120 = vsel %vm119, %v118, %v115
  %121 = vrot.lane.b32.xlu0 %v120, 120
  %v122 = vpop.permute.xlu0 %121
  %vm123 = vcmask 1048512
  %s124 = scalar_lea.vmem %s1, 8
  %125 = vst.msk [vmem:[%s124] sm:$0xff] %vm123, %v122
  %s126 = scalar_lea.vmem %s0, 271
  %s127 = smov 3
  %v128 = vld [vmem:[%s126] ss:$16 sm:%s127]
  %s129 = scalar_lea.vmem %s0, 271
  %s130 = smov 12
  %v131 = vld [vmem:[%s129] ss:$16 sm:%s130]
  %vm132 = vcmask 1043458
  %v133 = vsel %vm132, %v131, %v128
  %s134 = scalar_lea.vmem %s0, 271
  %s135 = smov 48
  %v136 = vld [vmem:[%s134] ss:$16 sm:%s135]
  %vm137 = vcmask 1045508
  %v138 = vsel %vm137, %v136, %v133
  %s139 = scalar_lea.vmem %s0, 271
  %s140 = smov 192
  %v141 = vld [vmem:[%s139] ss:$16 sm:%s140]
  %vm142 = vcmask 1047558
  %v143 = vsel %vm142, %v141, %v138
  %144 = vrot.lane.b32.xlu0 %v143, 120
  %v145 = vpop.permute.xlu0 %144
  %vm146 = vcmask 1048512
  %s147 = scalar_lea.vmem %s1, 16
  %148 = vst.msk [vmem:[%s147] sm:$0xff] %vm146, %v145
  %s149 = scalar_lea.vmem %s0, 399
  %s150 = smov 3
  %v151 = vld [vmem:[%s149] ss:$16 sm:%s150]
  %s152 = scalar_lea.vmem %s0, 399
  %s153 = smov 12
  %v154 = vld [vmem:[%s152] ss:$16 sm:%s153]
  %vm155 = vcmask 1043458
  %v156 = vsel %vm155, %v154, %v151
  %s157 = scalar_lea.vmem %s0, 399
  %s158 = smov 48
  %v159 = vld [vmem:[%s157] ss:$16 sm:%s158]
  %vm160 = vcmask 1045508
  %v161 = vsel %vm160, %v159, %v156
  %s162 = scalar_lea.vmem %s0, 399
  %s163 = smov 192
  %v164 = vld [vmem:[%s162] ss:$16 sm:%s163]
  %vm165 = vcmask 1047558
  %v166 = vsel %vm165, %v164, %v161
  %167 = vrot.lane.b32.xlu0 %v166, 120
  %v168 = vpop.permute.xlu0 %167
  %vm169 = vcmask 1048512
  %s170 = scalar_lea.vmem %s1, 24
  %171 = vst.msk [vmem:[%s170] sm:$0xff] %vm169, %v168
  %s172 = scalar_lea.vmem %s0, 14
  %s173 = smov 3
  %v174 = vld [vmem:[%s172] ss:$16 sm:%s173]
  %s175 = scalar_lea.vmem %s0, 14
  %s176 = smov 12
  %v177 = vld [vmem:[%s175] ss:$16 sm:%s176]
  %vm178 = vcmask 1043458
  %v179 = vsel %vm178, %v177, %v174
  %s180 = scalar_lea.vmem %s0, 14
  %s181 = smov 48
  %v182 = vld [vmem:[%s180] ss:$16 sm:%s181]
  %vm183 = vcmask 1045508
  %v184 = vsel %vm183, %v182, %v179
  %s185 = scalar_lea.vmem %s0, 14
  %s186 = smov 192
  %v187 = vld [vmem:[%s185] ss:$16 sm:%s186]
  %vm188 = vcmask 1047558
  %v189 = vsel %vm188, %v187, %v184
  %190 = vrot.lane.b32.xlu0 %v189, 112
  %v191 = vpop.permute.xlu0 %190
  %vm192 = vcmask 982912
  %193 = vst.msk [vmem:[%s1] sm:$0xff] %vm192, %v191
  %s194 = scalar_lea.vmem %s0, 142
  %s195 = smov 3
  %v196 = vld [vmem:[%s194] ss:$16 sm:%s195]
  %s197 = scalar_lea.vmem %s0, 142
  %s198 = smov 12
  %v199 = vld [vmem:[%s197] ss:$16 sm:%s198]
  %vm200 = vcmask 1043458
  %v201 = vsel %vm200, %v199, %v196
  %s202 = scalar_lea.vmem %s0, 142
  %s203 = smov 48
  %v204 = vld [vmem:[%s202] ss:$16 sm:%s203]
  %vm205 = vcmask 1045508
  %v206 = vsel %vm205, %v204, %v201
  %s207 = scalar_lea.vmem %s0, 142
  %s208 = smov 192
  %v209 = vld [vmem:[%s207] ss:$16 sm:%s208]
  %vm210 = vcmask 1047558
  %v211 = vsel %vm210, %v209, %v206
  %212 = vrot.lane.b32.xlu0 %v211, 112
  %v213 = vpop.permute.xlu0 %212
  %vm214 = vcmask 982912
  %s215 = scalar_lea.vmem %s1, 8
  %216 = vst.msk [vmem:[%s215] sm:$0xff] %vm214, %v213
  %s217 = scalar_lea.vmem %s0, 270
  %s218 = smov 3
  %v219 = vld [vmem:[%s217] ss:$16 sm:%s218]
  %s220 = scalar_lea.vmem %s0, 270
  %s221 = smov 12
  %v222 = vld [vmem:[%s220] ss:$16 sm:%s221]
  %vm223 = vcmask 1043458
  %v224 = vsel %vm223, %v222, %v219
  %s225 = scalar_lea.vmem %s0, 270
  %s226 = smov 48
  %v227 = vld [vmem:[%s225] ss:$16 sm:%s226]
  %vm228 = vcmask 1045508
  %v229 = vsel %vm228, %v227, %v224
  %s230 = scalar_lea.vmem %s0, 270
  %s231 = smov 192
  %v232 = vld [vmem:[%s230] ss:$16 sm:%s231]
  %vm233 = vcmask 1047558
  %v234 = vsel %vm233, %v232, %v229
  %235 = vrot.lane.b32.xlu0 %v234, 112
  %v236 = vpop.permute.xlu0 %235
  %vm237 = vcmask 982912
  %s238 = scalar_lea.vmem %s1, 16
  %239 = vst.msk [vmem:[%s238] sm:$0xff] %vm237, %v236
  %s240 = scalar_lea.vmem %s0, 398
  %s241 = smov 3
  %v242 = vld [vmem:[%s240] ss:$16 sm:%s241]
  %s243 = scalar_lea.vmem %s0, 398
  %s244 = smov 12
  %v245 = vld [vmem:[%s243] ss:$16 sm:%s244]
  %vm246 = vcmask 1043458
  %v247 = vsel %vm246, %v245, %v242
  %s248 = scalar_lea.vmem %s0, 398
  %s249 = smov 48
  %v250 = vld [vmem:[%s248] ss:$16 sm:%s249]
  %vm251 = vcmask 1045508
  %v252 = vsel %vm251, %v250, %v247
  %s253 = scalar_lea.vmem %s0, 398
  %s254 = smov 192
  %v255 = vld [vmem:[%s253] ss:$16 sm:%s254]
  %vm256 = vcmask 1047558
  %v257 = vsel %vm256, %v255, %v252
  %258 = vrot.lane.b32.xlu0 %v257, 112
  %v259 = vpop.permute.xlu0 %258
  %vm260 = vcmask 982912
  %s261 = scalar_lea.vmem %s1, 24
  %262 = vst.msk [vmem:[%s261] sm:$0xff] %vm260, %v259
  %s263 = scalar_lea.vmem %s0, 13
  %s264 = smov 3
  %v265 = vld [vmem:[%s263] ss:$16 sm:%s264]
  %s266 = scalar_lea.vmem %s0, 13
  %s267 = smov 12
  %v268 = vld [vmem:[%s266] ss:$16 sm:%s267]
  %vm269 = vcmask 1043458
  %v270 = vsel %vm269, %v268, %v265
  %s271 = scalar_lea.vmem %s0, 13
  %s272 = smov 48
  %v273 = vld [vmem:[%s271] ss:$16 sm:%s272]
  %vm274 = vcmask 1045508
  %v275 = vsel %vm274, %v273, %v270
  %s276 = scalar_lea.vmem %s0, 13
  %s277 = smov 192
  %v278 = vld [vmem:[%s276] ss:$16 sm:%s277]
  %vm279 = vcmask 1047558
  %v280 = vsel %vm279, %v278, %v275
  %281 = vrot.lane.b32.xlu0 %v280, 104
  %v282 = vpop.permute.xlu0 %281
  %vm283 = vcmask 917312
  %284 = vst.msk [vmem:[%s1] sm:$0xff] %vm283, %v282
  %s285 = scalar_lea.vmem %s0, 141
  %s286 = smov 3
  %v287 = vld [vmem:[%s285] ss:$16 sm:%s286]
  %s288 = scalar_lea.vmem %s0, 141
  %s289 = smov 12
  %v290 = vld [vmem:[%s288] ss:$16 sm:%s289]
  %vm291 = vcmask 1043458
  %v292 = vsel %vm291, %v290, %v287
  %s293 = scalar_lea.vmem %s0, 141
  %s294 = smov 48
  %v295 = vld [vmem:[%s293] ss:$16 sm:%s294]
  %vm296 = vcmask 1045508
  %v297 = vsel %vm296, %v295, %v292
  %s298 = scalar_lea.vmem %s0, 141
  %s299 = smov 192
  %v300 = vld [vmem:[%s298] ss:$16 sm:%s299]
  %vm301 = vcmask 1047558
  %v302 = vsel %vm301, %v300, %v297
  %303 = vrot.lane.b32.xlu0 %v302, 104
  %v304 = vpop.permute.xlu0 %303
  %vm305 = vcmask 917312
  %s306 = scalar_lea.vmem %s1, 8
  %307 = vst.msk [vmem:[%s306] sm:$0xff] %vm305, %v304
  %s308 = scalar_lea.vmem %s0, 269
  %s309 = smov 3
  %v310 = vld [vmem:[%s308] ss:$16 sm:%s309]
  %s311 = scalar_lea.vmem %s0, 269
  %s312 = smov 12
  %v313 = vld [vmem:[%s311] ss:$16 sm:%s312]
  %vm314 = vcmask 1043458
  %v315 = vsel %vm314, %v313, %v310
  %s316 = scalar_lea.vmem %s0, 269
  %s317 = smov 48
  %v318 = vld [vmem:[%s316] ss:$16 sm:%s317]
  %vm319 = vcmask 1045508
  %v320 = vsel %vm319, %v318, %v315
  %s321 = scalar_lea.vmem %s0, 269
  %s322 = smov 192
  %v323 = vld [vmem:[%s321] ss:$16 sm:%s322]
  %vm324 = vcmask 1047558
  %v325 = vsel %vm324, %v323, %v320
  %326 = vrot.lane.b32.xlu0 %v325, 104
  %v327 = vpop.permute.xlu0 %326
  %vm328 = vcmask 917312
  %s329 = scalar_lea.vmem %s1, 16
  %330 = vst.msk [vmem:[%s329] sm:$0xff] %vm328, %v327
  %s331 = scalar_lea.vmem %s0, 397
  %s332 = smov 3
  %v333 = vld [vmem:[%s331] ss:$16 sm:%s332]
  %s334 = scalar_lea.vmem %s0, 397
  %s335 = smov 12
  %v336 = vld [vmem:[%s334] ss:$16 sm:%s335]
  %vm337 = vcmask 1043458
  %v338 = vsel %vm337, %v336, %v333
  %s339 = scalar_lea.vmem %s0, 397
  %s340 = smov 48
  %v341 = vld [vmem:[%s339] ss:$16 sm:%s340]
  %vm342 = vcmask 1045508
  %v343 = vsel %vm342, %v341, %v338
  %s344 = scalar_lea.vmem %s0, 397
  %s345 = smov 192
  %v346 = vld [vmem:[%s344] ss:$16 sm:%s345]
  %vm347 = vcmask 1047558
  %v348 = vsel %vm347, %v346, %v343
  %349 = vrot.lane.b32.xlu0 %v348, 104
  %v350 = vpop.permute.xlu0 %349
  %vm351 = vcmask 917312
  %s352 = scalar_lea.vmem %s1, 24
  %353 = vst.msk [vmem:[%s352] sm:$0xff] %vm351, %v350
  %s354 = scalar_lea.vmem %s0, 12
  %s355 = smov 3
  %v356 = vld [vmem:[%s354] ss:$16 sm:%s355]
  %s357 = scalar_lea.vmem %s0, 12
  %s358 = smov 12
  %v359 = vld [vmem:[%s357] ss:$16 sm:%s358]
  %vm360 = vcmask 1043458
  %v361 = vsel %vm360, %v359, %v356
  %s362 = scalar_lea.vmem %s0, 12
  %s363 = smov 48
  %v364 = vld [vmem:[%s362] ss:$16 sm:%s363]
  %vm365 = vcmask 1045508
  %v366 = vsel %vm365, %v364, %v361
  %s367 = scalar_lea.vmem %s0, 12
  %s368 = smov 192
  %v369 = vld [vmem:[%s367] ss:$16 sm:%s368]
  %vm370 = vcmask 1047558
  %v371 = vsel %vm370, %v369, %v366
  %372 = vrot.lane.b32.xlu0 %v371, 96
  %v373 = vpop.permute.xlu0 %372
  %vm374 = vcmask 851712
  %375 = vst.msk [vmem:[%s1] sm:$0xff] %vm374, %v373
  %s376 = scalar_lea.vmem %s0, 140
  %s377 = smov 3
  %v378 = vld [vmem:[%s376] ss:$16 sm:%s377]
  %s379 = scalar_lea.vmem %s0, 140
  %s380 = smov 12
  %v381 = vld [vmem:[%s379] ss:$16 sm:%s380]
  %vm382 = vcmask 1043458
  %v383 = vsel %vm382, %v381, %v378
  %s384 = scalar_lea.vmem %s0, 140
  %s385 = smov 48
  %v386 = vld [vmem:[%s384] ss:$16 sm:%s385]
  %vm387 = vcmask 1045508
  %v388 = vsel %vm387, %v386, %v383
  %s389 = scalar_lea.vmem %s0, 140
  %s390 = smov 192
  %v391 = vld [vmem:[%s389] ss:$16 sm:%s390]
  %vm392 = vcmask 1047558
  %v393 = vsel %vm392, %v391, %v388
  %394 = vrot.lane.b32.xlu0 %v393, 96
  %v395 = vpop.permute.xlu0 %394
  %vm396 = vcmask 851712
  %s397 = scalar_lea.vmem %s1, 8
  %398 = vst.msk [vmem:[%s397] sm:$0xff] %vm396, %v395
  %s399 = scalar_lea.vmem %s0, 268
  %s400 = smov 3
  %v401 = vld [vmem:[%s399] ss:$16 sm:%s400]
  %s402 = scalar_lea.vmem %s0, 268
  %s403 = smov 12
  %v404 = vld [vmem:[%s402] ss:$16 sm:%s403]
  %vm405 = vcmask 1043458
  %v406 = vsel %vm405, %v404, %v401
  %s407 = scalar_lea.vmem %s0, 268
  %s408 = smov 48
  %v409 = vld [vmem:[%s407] ss:$16 sm:%s408]
  %vm410 = vcmask 1045508
  %v411 = vsel %vm410, %v409, %v406
  %s412 = scalar_lea.vmem %s0, 268
  %s413 = smov 192
  %v414 = vld [vmem:[%s412] ss:$16 sm:%s413]
  %vm415 = vcmask 1047558
  %v416 = vsel %vm415, %v414, %v411
  %417 = vrot.lane.b32.xlu0 %v416, 96
  %v418 = vpop.permute.xlu0 %417
  %vm419 = vcmask 851712
  %s420 = scalar_lea.vmem %s1, 16
  %421 = vst.msk [vmem:[%s420] sm:$0xff] %vm419, %v418
  %s422 = scalar_lea.vmem %s0, 396
  %s423 = smov 3
  %v424 = vld [vmem:[%s422] ss:$16 sm:%s423]
  %s425 = scalar_lea.vmem %s0, 396
  %s426 = smov 12
  %v427 = vld [vmem:[%s425] ss:$16 sm:%s426]
  %vm428 = vcmask 1043458
  %v429 = vsel %vm428, %v427, %v424
  %s430 = scalar_lea.vmem %s0, 396
  %s431 = smov 48
  %v432 = vld [vmem:[%s430] ss:$16 sm:%s431]
  %vm433 = vcmask 1045508
  %v434 = vsel %vm433, %v432, %v429
  %s435 = scalar_lea.vmem %s0, 396
  %s436 = smov 192
  %v437 = vld [vmem:[%s435] ss:$16 sm:%s436]
  %vm438 = vcmask 1047558
  %v439 = vsel %vm438, %v437, %v434
  %440 = vrot.lane.b32.xlu0 %v439, 96
  %v441 = vpop.permute.xlu0 %440
  %vm442 = vcmask 851712
  %s443 = scalar_lea.vmem %s1, 24
  %444 = vst.msk [vmem:[%s443] sm:$0xff] %vm442, %v441
  %s445 = scalar_lea.vmem %s0, 11
  %s446 = smov 3
  %v447 = vld [vmem:[%s445] ss:$16 sm:%s446]
  %s448 = scalar_lea.vmem %s0, 11
  %s449 = smov 12
  %v450 = vld [vmem:[%s448] ss:$16 sm:%s449]
  %vm451 = vcmask 1043458
  %v452 = vsel %vm451, %v450, %v447
  %s453 = scalar_lea.vmem %s0, 11
  %s454 = smov 48
  %v455 = vld [vmem:[%s453] ss:$16 sm:%s454]
  %vm456 = vcmask 1045508
  %v457 = vsel %vm456, %v455, %v452
  %s458 = scalar_lea.vmem %s0, 11
  %s459 = smov 192
  %v460 = vld [vmem:[%s458] ss:$16 sm:%s459]
  %vm461 = vcmask 1047558
  %v462 = vsel %vm461, %v460, %v457
  %463 = vrot.lane.b32.xlu0 %v462, 88
  %v464 = vpop.permute.xlu0 %463
  %vm465 = vcmask 786112
  %466 = vst.msk [vmem:[%s1] sm:$0xff] %vm465, %v464
  %s467 = scalar_lea.vmem %s0, 139
  %s468 = smov 3
  %v469 = vld [vmem:[%s467] ss:$16 sm:%s468]
  %s470 = scalar_lea.vmem %s0, 139
  %s471 = smov 12
  %v472 = vld [vmem:[%s470] ss:$16 sm:%s471]
  %vm473 = vcmask 1043458
  %v474 = vsel %vm473, %v472, %v469
  %s475 = scalar_lea.vmem %s0, 139
  %s476 = smov 48
  %v477 = vld [vmem:[%s475] ss:$16 sm:%s476]
  %vm478 = vcmask 1045508
  %v479 = vsel %vm478, %v477, %v474
  %s480 = scalar_lea.vmem %s0, 139
  %s481 = smov 192
  %v482 = vld [vmem:[%s480] ss:$16 sm:%s481]
  %vm483 = vcmask 1047558
  %v484 = vsel %vm483, %v482, %v479
  %485 = vrot.lane.b32.xlu0 %v484, 88
  %v486 = vpop.permute.xlu0 %485
  %vm487 = vcmask 786112
  %s488 = scalar_lea.vmem %s1, 8
  %489 = vst.msk [vmem:[%s488] sm:$0xff] %vm487, %v486
  %s490 = scalar_lea.vmem %s0, 267
  %s491 = smov 3
  %v492 = vld [vmem:[%s490] ss:$16 sm:%s491]
  %s493 = scalar_lea.vmem %s0, 267
  %s494 = smov 12
  %v495 = vld [vmem:[%s493] ss:$16 sm:%s494]
  %vm496 = vcmask 1043458
  %v497 = vsel %vm496, %v495, %v492
  %s498 = scalar_lea.vmem %s0, 267
  %s499 = smov 48
  %v500 = vld [vmem:[%s498] ss:$16 sm:%s499]
  %vm501 = vcmask 1045508
  %v502 = vsel %vm501, %v500, %v497
  %s503 = scalar_lea.vmem %s0, 267
  %s504 = smov 192
  %v505 = vld [vmem:[%s503] ss:$16 sm:%s504]
  %vm506 = vcmask 1047558
  %v507 = vsel %vm506, %v505, %v502
  %508 = vrot.lane.b32.xlu0 %v507, 88
  %v509 = vpop.permute.xlu0 %508
  %vm510 = vcmask 786112
  %s511 = scalar_lea.vmem %s1, 16
  %512 = vst.msk [vmem:[%s511] sm:$0xff] %vm510, %v509
  %s513 = scalar_lea.vmem %s0, 395
  %s514 = smov 3
  %v515 = vld [vmem:[%s513] ss:$16 sm:%s514]
  %s516 = scalar_lea.vmem %s0, 395
  %s517 = smov 12
  %v518 = vld [vmem:[%s516] ss:$16 sm:%s517]
  %vm519 = vcmask 1043458
  %v520 = vsel %vm519, %v518, %v515
  %s521 = scalar_lea.vmem %s0, 395
  %s522 = smov 48
  %v523 = vld [vmem:[%s521] ss:$16 sm:%s522]
  %vm524 = vcmask 1045508
  %v525 = vsel %vm524, %v523, %v520
  %s526 = scalar_lea.vmem %s0, 395
  %s527 = smov 192
  %v528 = vld [vmem:[%s526] ss:$16 sm:%s527]
  %vm529 = vcmask 1047558
  %v530 = vsel %vm529, %v528, %v525
  %531 = vrot.lane.b32.xlu0 %v530, 88
  %v532 = vpop.permute.xlu0 %531
  %vm533 = vcmask 786112
  %s534 = scalar_lea.vmem %s1, 24
  %535 = vst.msk [vmem:[%s534] sm:$0xff] %vm533, %v532
  %s536 = scalar_lea.vmem %s0, 10
  %s537 = smov 3
  %v538 = vld [vmem:[%s536] ss:$16 sm:%s537]
  %s539 = scalar_lea.vmem %s0, 10
  %s540 = smov 12
  %v541 = vld [vmem:[%s539] ss:$16 sm:%s540]
  %vm542 = vcmask 1043458
  %v543 = vsel %vm542, %v541, %v538
  %s544 = scalar_lea.vmem %s0, 10
  %s545 = smov 48
  %v546 = vld [vmem:[%s544] ss:$16 sm:%s545]
  %vm547 = vcmask 1045508
  %v548 = vsel %vm547, %v546, %v543
  %s549 = scalar_lea.vmem %s0, 10
  %s550 = smov 192
  %v551 = vld [vmem:[%s549] ss:$16 sm:%s550]
  %vm552 = vcmask 1047558
  %v553 = vsel %vm552, %v551, %v548
  %554 = vrot.lane.b32.xlu0 %v553, 80
  %v555 = vpop.permute.xlu0 %554
  %vm556 = vcmask 720512
  %557 = vst.msk [vmem:[%s1] sm:$0xff] %vm556, %v555
  %s558 = scalar_lea.vmem %s0, 138
  %s559 = smov 3
  %v560 = vld [vmem:[%s558] ss:$16 sm:%s559]
  %s561 = scalar_lea.vmem %s0, 138
  %s562 = smov 12
  %v563 = vld [vmem:[%s561] ss:$16 sm:%s562]
  %vm564 = vcmask 1043458
  %v565 = vsel %vm564, %v563, %v560
  %s566 = scalar_lea.vmem %s0, 138
  %s567 = smov 48
  %v568 = vld [vmem:[%s566] ss:$16 sm:%s567]
  %vm569 = vcmask 1045508
  %v570 = vsel %vm569, %v568, %v565
  %s571 = scalar_lea.vmem %s0, 138
  %s572 = smov 192
  %v573 = vld [vmem:[%s571] ss:$16 sm:%s572]
  %vm574 = vcmask 1047558
  %v575 = vsel %vm574, %v573, %v570
  %576 = vrot.lane.b32.xlu0 %v575, 80
  %v577 = vpop.permute.xlu0 %576
  %vm578 = vcmask 720512
  %s579 = scalar_lea.vmem %s1, 8
  %580 = vst.msk [vmem:[%s579] sm:$0xff] %vm578, %v577
  %s581 = scalar_lea.vmem %s0, 266
  %s582 = smov 3
  %v583 = vld [vmem:[%s581] ss:$16 sm:%s582]
  %s584 = scalar_lea.vmem %s0, 266
  %s585 = smov 12
  %v586 = vld [vmem:[%s584] ss:$16 sm:%s585]
  %vm587 = vcmask 1043458
  %v588 = vsel %vm587, %v586, %v583
  %s589 = scalar_lea.vmem %s0, 266
  %s590 = smov 48
  %v591 = vld [vmem:[%s589] ss:$16 sm:%s590]
  %vm592 = vcmask 1045508
  %v593 = vsel %vm592, %v591, %v588
  %s594 = scalar_lea.vmem %s0, 266
  %s595 = smov 192
  %v596 = vld [vmem:[%s594] ss:$16 sm:%s595]
  %vm597 = vcmask 1047558
  %v598 = vsel %vm597, %v596, %v593
  %599 = vrot.lane.b32.xlu0 %v598, 80
  %v600 = vpop.permute.xlu0 %599
  %vm601 = vcmask 720512
  %s602 = scalar_lea.vmem %s1, 16
  %603 = vst.msk [vmem:[%s602] sm:$0xff] %vm601, %v600
  %s604 = scalar_lea.vmem %s0, 394
  %s605 = smov 3
  %v606 = vld [vmem:[%s604] ss:$16 sm:%s605]
  %s607 = scalar_lea.vmem %s0, 394
  %s608 = smov 12
  %v609 = vld [vmem:[%s607] ss:$16 sm:%s608]
  %vm610 = vcmask 1043458
  %v611 = vsel %vm610, %v609, %v606
  %s612 = scalar_lea.vmem %s0, 394
  %s613 = smov 48
  %v614 = vld [vmem:[%s612] ss:$16 sm:%s613]
  %vm615 = vcmask 1045508
  %v616 = vsel %vm615, %v614, %v611
  %s617 = scalar_lea.vmem %s0, 394
  %s618 = smov 192
  %v619 = vld [vmem:[%s617] ss:$16 sm:%s618]
  %vm620 = vcmask 1047558
  %v621 = vsel %vm620, %v619, %v616
  %622 = vrot.lane.b32.xlu0 %v621, 80
  %v623 = vpop.permute.xlu0 %622
  %vm624 = vcmask 720512
  %s625 = scalar_lea.vmem %s1, 24
  %626 = vst.msk [vmem:[%s625] sm:$0xff] %vm624, %v623
  %s627 = scalar_lea.vmem %s0, 9
  %s628 = smov 3
  %v629 = vld [vmem:[%s627] ss:$16 sm:%s628]
  %s630 = scalar_lea.vmem %s0, 9
  %s631 = smov 12
  %v632 = vld [vmem:[%s630] ss:$16 sm:%s631]
  %vm633 = vcmask 1043458
  %v634 = vsel %vm633, %v632, %v629
  %s635 = scalar_lea.vmem %s0, 9
  %s636 = smov 48
  %v637 = vld [vmem:[%s635] ss:$16 sm:%s636]
  %vm638 = vcmask 1045508
  %v639 = vsel %vm638, %v637, %v634
  %s640 = scalar_lea.vmem %s0, 9
  %s641 = smov 192
  %v642 = vld [vmem:[%s640] ss:$16 sm:%s641]
  %vm643 = vcmask 1047558
  %v644 = vsel %vm643, %v642, %v639
  %645 = vrot.lane.b32.xlu0 %v644, 72
  %v646 = vpop.permute.xlu0 %645
  %vm647 = vcmask 654912
  %648 = vst.msk [vmem:[%s1] sm:$0xff] %vm647, %v646
  %s649 = scalar_lea.vmem %s0, 137
  %s650 = smov 3
  %v651 = vld [vmem:[%s649] ss:$16 sm:%s650]
  %s652 = scalar_lea.vmem %s0, 137
  %s653 = smov 12
  %v654 = vld [vmem:[%s652] ss:$16 sm:%s653]
  %vm655 = vcmask 1043458
  %v656 = vsel %vm655, %v654, %v651
  %s657 = scalar_lea.vmem %s0, 137
  %s658 = smov 48
  %v659 = vld [vmem:[%s657] ss:$16 sm:%s658]
  %vm660 = vcmask 1045508
  %v661 = vsel %vm660, %v659, %v656
  %s662 = scalar_lea.vmem %s0, 137
  %s663 = smov 192
  %v664 = vld [vmem:[%s662] ss:$16 sm:%s663]
  %vm665 = vcmask 1047558
  %v666 = vsel %vm665, %v664, %v661
  %667 = vrot.lane.b32.xlu0 %v666, 72
  %v668 = vpop.permute.xlu0 %667
  %vm669 = vcmask 654912
  %s670 = scalar_lea.vmem %s1, 8
  %671 = vst.msk [vmem:[%s670] sm:$0xff] %vm669, %v668
  %s672 = scalar_lea.vmem %s0, 265
  %s673 = smov 3
  %v674 = vld [vmem:[%s672] ss:$16 sm:%s673]
  %s675 = scalar_lea.vmem %s0, 265
  %s676 = smov 12
  %v677 = vld [vmem:[%s675] ss:$16 sm:%s676]
  %vm678 = vcmask 1043458
  %v679 = vsel %vm678, %v677, %v674
  %s680 = scalar_lea.vmem %s0, 265
  %s681 = smov 48
  %v682 = vld [vmem:[%s680] ss:$16 sm:%s681]
  %vm683 = vcmask 1045508
  %v684 = vsel %vm683, %v682, %v679
  %s685 = scalar_lea.vmem %s0, 265
  %s686 = smov 192
  %v687 = vld [vmem:[%s685] ss:$16 sm:%s686]
  %vm688 = vcmask 1047558
  %v689 = vsel %vm688, %v687, %v684
  %690 = vrot.lane.b32.xlu0 %v689, 72
  %v691 = vpop.permute.xlu0 %690
  %vm692 = vcmask 654912
  %s693 = scalar_lea.vmem %s1, 16
  %694 = vst.msk [vmem:[%s693] sm:$0xff] %vm692, %v691
  %s695 = scalar_lea.vmem %s0, 393
  %s696 = smov 3
  %v697 = vld [vmem:[%s695] ss:$16 sm:%s696]
  %s698 = scalar_lea.vmem %s0, 393
  %s699 = smov 12
  %v700 = vld [vmem:[%s698] ss:$16 sm:%s699]
  %vm701 = vcmask 1043458
  %v702 = vsel %vm701, %v700, %v697
  %s703 = scalar_lea.vmem %s0, 393
  %s704 = smov 48
  %v705 = vld [vmem:[%s703] ss:$16 sm:%s704]
  %vm706 = vcmask 1045508
  %v707 = vsel %vm706, %v705, %v702
  %s708 = scalar_lea.vmem %s0, 393
  %s709 = smov 192
  %v710 = vld [vmem:[%s708] ss:$16 sm:%s709]
  %vm711 = vcmask 1047558
  %v712 = vsel %vm711, %v710, %v707
  %713 = vrot.lane.b32.xlu0 %v712, 72
  %v714 = vpop.permute.xlu0 %713
  %vm715 = vcmask 654912
  %s716 = scalar_lea.vmem %s1, 24
  %717 = vst.msk [vmem:[%s716] sm:$0xff] %vm715, %v714
  %s718 = scalar_lea.vmem %s0, 8
  %s719 = smov 3
  %v720 = vld [vmem:[%s718] ss:$16 sm:%s719]
  %s721 = scalar_lea.vmem %s0, 8
  %s722 = smov 12
  %v723 = vld [vmem:[%s721] ss:$16 sm:%s722]
  %vm724 = vcmask 1043458
  %v725 = vsel %vm724, %v723, %v720
  %s726 = scalar_lea.vmem %s0, 8
  %s727 = smov 48
  %v728 = vld [vmem:[%s726] ss:$16 sm:%s727]
  %vm729 = vcmask 1045508
  %v730 = vsel %vm729, %v728, %v725
  %s731 = scalar_lea.vmem %s0, 8
  %s732 = smov 192
  %v733 = vld [vmem:[%s731] ss:$16 sm:%s732]
  %vm734 = vcmask 1047558
  %v735 = vsel %vm734, %v733, %v730
  %736 = vrot.lane.b32.xlu0 %v735, 64
  %v737 = vpop.permute.xlu0 %736
  %vm738 = vcmask 589312
  %739 = vst.msk [vmem:[%s1] sm:$0xff] %vm738, %v737
  %s740 = scalar_lea.vmem %s0, 136
  %s741 = smov 3
  %v742 = vld [vmem:[%s740] ss:$16 sm:%s741]
  %s743 = scalar_lea.vmem %s0, 136
  %s744 = smov 12
  %v745 = vld [vmem:[%s743] ss:$16 sm:%s744]
  %vm746 = vcmask 1043458
  %v747 = vsel %vm746, %v745, %v742
  %s748 = scalar_lea.vmem %s0, 136
  %s749 = smov 48
  %v750 = vld [vmem:[%s748] ss:$16 sm:%s749]
  %vm751 = vcmask 1045508
  %v752 = vsel %vm751, %v750, %v747
  %s753 = scalar_lea.vmem %s0, 136
  %s754 = smov 192
  %v755 = vld [vmem:[%s753] ss:$16 sm:%s754]
  %vm756 = vcmask 1047558
  %v757 = vsel %vm756, %v755, %v752
  %758 = vrot.lane.b32.xlu0 %v757, 64
  %v759 = vpop.permute.xlu0 %758
  %vm760 = vcmask 589312
  %s761 = scalar_lea.vmem %s1, 8
  %762 = vst.msk [vmem:[%s761] sm:$0xff] %vm760, %v759
  %s763 = scalar_lea.vmem %s0, 264
  %s764 = smov 3
  %v765 = vld [vmem:[%s763] ss:$16 sm:%s764]
  %s766 = scalar_lea.vmem %s0, 264
  %s767 = smov 12
  %v768 = vld [vmem:[%s766] ss:$16 sm:%s767]
  %vm769 = vcmask 1043458
  %v770 = vsel %vm769, %v768, %v765
  %s771 = scalar_lea.vmem %s0, 264
  %s772 = smov 48
  %v773 = vld [vmem:[%s771] ss:$16 sm:%s772]
  %vm774 = vcmask 1045508
  %v775 = vsel %vm774, %v773, %v770
  %s776 = scalar_lea.vmem %s0, 264
  %s777 = smov 192
  %v778 = vld [vmem:[%s776] ss:$16 sm:%s777]
  %vm779 = vcmask 1047558
  %v780 = vsel %vm779, %v778, %v775
  %781 = vrot.lane.b32.xlu0 %v780, 64
  %v782 = vpop.permute.xlu0 %781
  %vm783 = vcmask 589312
  %s784 = scalar_lea.vmem %s1, 16
  %785 = vst.msk [vmem:[%s784] sm:$0xff] %vm783, %v782
  %s786 = scalar_lea.vmem %s0, 392
  %s787 = smov 3
  %v788 = vld [vmem:[%s786] ss:$16 sm:%s787]
  %s789 = scalar_lea.vmem %s0, 392
  %s790 = smov 12
  %v791 = vld [vmem:[%s789] ss:$16 sm:%s790]
  %vm792 = vcmask 1043458
  %v793 = vsel %vm792, %v791, %v788
  %s794 = scalar_lea.vmem %s0, 392
  %s795 = smov 48
  %v796 = vld [vmem:[%s794] ss:$16 sm:%s795]
  %vm797 = vcmask 1045508
  %v798 = vsel %vm797, %v796, %v793
  %s799 = scalar_lea.vmem %s0, 392
  %s800 = smov 192
  %v801 = vld [vmem:[%s799] ss:$16 sm:%s800]
  %vm802 = vcmask 1047558
  %v803 = vsel %vm802, %v801, %v798
  %804 = vrot.lane.b32.xlu0 %v803, 64
  %v805 = vpop.permute.xlu0 %804
  %vm806 = vcmask 589312
  %s807 = scalar_lea.vmem %s1, 24
  %808 = vst.msk [vmem:[%s807] sm:$0xff] %vm806, %v805
  %s809 = scalar_lea.vmem %s0, 7
  %s810 = smov 3
  %v811 = vld [vmem:[%s809] ss:$16 sm:%s810]
  %s812 = scalar_lea.vmem %s0, 7
  %s813 = smov 12
  %v814 = vld [vmem:[%s812] ss:$16 sm:%s813]
  %vm815 = vcmask 1043458
  %v816 = vsel %vm815, %v814, %v811
  %s817 = scalar_lea.vmem %s0, 7
  %s818 = smov 48
  %v819 = vld [vmem:[%s817] ss:$16 sm:%s818]
  %vm820 = vcmask 1045508
  %v821 = vsel %vm820, %v819, %v816
  %s822 = scalar_lea.vmem %s0, 7
  %s823 = smov 192
  %v824 = vld [vmem:[%s822] ss:$16 sm:%s823]
  %vm825 = vcmask 1047558
  %v826 = vsel %vm825, %v824, %v821
  %827 = vrot.lane.b32.xlu0 %v826, 56
  %v828 = vpop.permute.xlu0 %827
  %vm829 = vcmask 523712
  %830 = vst.msk [vmem:[%s1] sm:$0xff] %vm829, %v828
  %s831 = scalar_lea.vmem %s0, 135
  %s832 = smov 3
  %v833 = vld [vmem:[%s831] ss:$16 sm:%s832]
  %s834 = scalar_lea.vmem %s0, 135
  %s835 = smov 12
  %v836 = vld [vmem:[%s834] ss:$16 sm:%s835]
  %vm837 = vcmask 1043458
  %v838 = vsel %vm837, %v836, %v833
  %s839 = scalar_lea.vmem %s0, 135
  %s840 = smov 48
  %v841 = vld [vmem:[%s839] ss:$16 sm:%s840]
  %vm842 = vcmask 1045508
  %v843 = vsel %vm842, %v841, %v838
  %s844 = scalar_lea.vmem %s0, 135
  %s845 = smov 192
  %v846 = vld [vmem:[%s844] ss:$16 sm:%s845]
  %vm847 = vcmask 1047558
  %v848 = vsel %vm847, %v846, %v843
  %849 = vrot.lane.b32.xlu0 %v848, 56
  %v850 = vpop.permute.xlu0 %849
  %vm851 = vcmask 523712
  %s852 = scalar_lea.vmem %s1, 8
  %853 = vst.msk [vmem:[%s852] sm:$0xff] %vm851, %v850
  %s854 = scalar_lea.vmem %s0, 263
  %s855 = smov 3
  %v856 = vld [vmem:[%s854] ss:$16 sm:%s855]
  %s857 = scalar_lea.vmem %s0, 263
  %s858 = smov 12
  %v859 = vld [vmem:[%s857] ss:$16 sm:%s858]
  %vm860 = vcmask 1043458
  %v861 = vsel %vm860, %v859, %v856
  %s862 = scalar_lea.vmem %s0, 263
  %s863 = smov 48
  %v864 = vld [vmem:[%s862] ss:$16 sm:%s863]
  %vm865 = vcmask 1045508
  %v866 = vsel %vm865, %v864, %v861
  %s867 = scalar_lea.vmem %s0, 263
  %s868 = smov 192
  %v869 = vld [vmem:[%s867] ss:$16 sm:%s868]
  %vm870 = vcmask 1047558
  %v871 = vsel %vm870, %v869, %v866
  %872 = vrot.lane.b32.xlu0 %v871, 56
  %v873 = vpop.permute.xlu0 %872
  %vm874 = vcmask 523712
  %s875 = scalar_lea.vmem %s1, 16
  %876 = vst.msk [vmem:[%s875] sm:$0xff] %vm874, %v873
  %s877 = scalar_lea.vmem %s0, 391
  %s878 = smov 3
  %v879 = vld [vmem:[%s877] ss:$16 sm:%s878]
  %s880 = scalar_lea.vmem %s0, 391
  %s881 = smov 12
  %v882 = vld [vmem:[%s880] ss:$16 sm:%s881]
  %vm883 = vcmask 1043458
  %v884 = vsel %vm883, %v882, %v879
  %s885 = scalar_lea.vmem %s0, 391
  %s886 = smov 48
  %v887 = vld [vmem:[%s885] ss:$16 sm:%s886]
  %vm888 = vcmask 1045508
  %v889 = vsel %vm888, %v887, %v884
  %s890 = scalar_lea.vmem %s0, 391
  %s891 = smov 192
  %v892 = vld [vmem:[%s890] ss:$16 sm:%s891]
  %vm893 = vcmask 1047558
  %v894 = vsel %vm893, %v892, %v889
  %895 = vrot.lane.b32.xlu0 %v894, 56
  %v896 = vpop.permute.xlu0 %895
  %vm897 = vcmask 523712
  %s898 = scalar_lea.vmem %s1, 24
  %899 = vst.msk [vmem:[%s898] sm:$0xff] %vm897, %v896
  %s900 = scalar_lea.vmem %s0, 6
  %s901 = smov 3
  %v902 = vld [vmem:[%s900] ss:$16 sm:%s901]
  %s903 = scalar_lea.vmem %s0, 6
  %s904 = smov 12
  %v905 = vld [vmem:[%s903] ss:$16 sm:%s904]
  %vm906 = vcmask 1043458
  %v907 = vsel %vm906, %v905, %v902
  %s908 = scalar_lea.vmem %s0, 6
  %s909 = smov 48
  %v910 = vld [vmem:[%s908] ss:$16 sm:%s909]
  %vm911 = vcmask 1045508
  %v912 = vsel %vm911, %v910, %v907
  %s913 = scalar_lea.vmem %s0, 6
  %s914 = smov 192
  %v915 = vld [vmem:[%s913] ss:$16 sm:%s914]
  %vm916 = vcmask 1047558
  %v917 = vsel %vm916, %v915, %v912
  %918 = vrot.lane.b32.xlu0 %v917, 48
  %v919 = vpop.permute.xlu0 %918
  %vm920 = vcmask 458112
  %921 = vst.msk [vmem:[%s1] sm:$0xff] %vm920, %v919
  %s922 = scalar_lea.vmem %s0, 134
  %s923 = smov 3
  %v924 = vld [vmem:[%s922] ss:$16 sm:%s923]
  %s925 = scalar_lea.vmem %s0, 134
  %s926 = smov 12
  %v927 = vld [vmem:[%s925] ss:$16 sm:%s926]
  %vm928 = vcmask 1043458
  %v929 = vsel %vm928, %v927, %v924
  %s930 = scalar_lea.vmem %s0, 134
  %s931 = smov 48
  %v932 = vld [vmem:[%s930] ss:$16 sm:%s931]
  %vm933 = vcmask 1045508
  %v934 = vsel %vm933, %v932, %v929
  %s935 = scalar_lea.vmem %s0, 134
  %s936 = smov 192
  %v937 = vld [vmem:[%s935] ss:$16 sm:%s936]
  %vm938 = vcmask 1047558
  %v939 = vsel %vm938, %v937, %v934
  %940 = vrot.lane.b32.xlu0 %v939, 48
  %v941 = vpop.permute.xlu0 %940
  %vm942 = vcmask 458112
  %s943 = scalar_lea.vmem %s1, 8
  %944 = vst.msk [vmem:[%s943] sm:$0xff] %vm942, %v941
  %s945 = scalar_lea.vmem %s0, 262
  %s946 = smov 3
  %v947 = vld [vmem:[%s945] ss:$16 sm:%s946]
  %s948 = scalar_lea.vmem %s0, 262
  %s949 = smov 12
  %v950 = vld [vmem:[%s948] ss:$16 sm:%s949]
  %vm951 = vcmask 1043458
  %v952 = vsel %vm951, %v950, %v947
  %s953 = scalar_lea.vmem %s0, 262
  %s954 = smov 48
  %v955 = vld [vmem:[%s953] ss:$16 sm:%s954]
  %vm956 = vcmask 1045508
  %v957 = vsel %vm956, %v955, %v952
  %s958 = scalar_lea.vmem %s0, 262
  %s959 = smov 192
  %v960 = vld [vmem:[%s958] ss:$16 sm:%s959]
  %vm961 = vcmask 1047558
  %v962 = vsel %vm961, %v960, %v957
  %963 = vrot.lane.b32.xlu0 %v962, 48
  %v964 = vpop.permute.xlu0 %963
  %vm965 = vcmask 458112
  %s966 = scalar_lea.vmem %s1, 16
  %967 = vst.msk [vmem:[%s966] sm:$0xff] %vm965, %v964
  %s968 = scalar_lea.vmem %s0, 390
  %s969 = smov 3
  %v970 = vld [vmem:[%s968] ss:$16 sm:%s969]
  %s971 = scalar_lea.vmem %s0, 390
  %s972 = smov 12
  %v973 = vld [vmem:[%s971] ss:$16 sm:%s972]
  %vm974 = vcmask 1043458
  %v975 = vsel %vm974, %v973, %v970
  %s976 = scalar_lea.vmem %s0, 390
  %s977 = smov 48
  %v978 = vld [vmem:[%s976] ss:$16 sm:%s977]
  %vm979 = vcmask 1045508
  %v980 = vsel %vm979, %v978, %v975
  %s981 = scalar_lea.vmem %s0, 390
  %s982 = smov 192
  %v983 = vld [vmem:[%s981] ss:$16 sm:%s982]
  %vm984 = vcmask 1047558
  %v985 = vsel %vm984, %v983, %v980
  %986 = vrot.lane.b32.xlu0 %v985, 48
  %v987 = vpop.permute.xlu0 %986
  %vm988 = vcmask 458112
  %s989 = scalar_lea.vmem %s1, 24
  %990 = vst.msk [vmem:[%s989] sm:$0xff] %vm988, %v987
  %s991 = scalar_lea.vmem %s0, 5
  %s992 = smov 3
  %v993 = vld [vmem:[%s991] ss:$16 sm:%s992]
  %s994 = scalar_lea.vmem %s0, 5
  %s995 = smov 12
  %v996 = vld [vmem:[%s994] ss:$16 sm:%s995]
  %vm997 = vcmask 1043458
  %v998 = vsel %vm997, %v996, %v993
  %s999 = scalar_lea.vmem %s0, 5
  %s1000 = smov 48
  %v1001 = vld [vmem:[%s999] ss:$16 sm:%s1000]
  %vm1002 = vcmask 1045508
  %v1003 = vsel %vm1002, %v1001, %v998
  %s1004 = scalar_lea.vmem %s0, 5
  %s1005 = smov 192
  %v1006 = vld [vmem:[%s1004] ss:$16 sm:%s1005]
  %vm1007 = vcmask 1047558
  %v1008 = vsel %vm1007, %v1006, %v1003
  %1009 = vrot.lane.b32.xlu0 %v1008, 40
  %v1010 = vpop.permute.xlu0 %1009
  %vm1011 = vcmask 392512
  %1012 = vst.msk [vmem:[%s1] sm:$0xff] %vm1011, %v1010
  %s1013 = scalar_lea.vmem %s0, 133
  %s1014 = smov 3
  %v1015 = vld [vmem:[%s1013] ss:$16 sm:%s1014]
  %s1016 = scalar_lea.vmem %s0, 133
  %s1017 = smov 12
  %v1018 = vld [vmem:[%s1016] ss:$16 sm:%s1017]
  %vm1019 = vcmask 1043458
  %v1020 = vsel %vm1019, %v1018, %v1015
  %s1021 = scalar_lea.vmem %s0, 133
  %s1022 = smov 48
  %v1023 = vld [vmem:[%s1021] ss:$16 sm:%s1022]
  %vm1024 = vcmask 1045508
  %v1025 = vsel %vm1024, %v1023, %v1020
  %s1026 = scalar_lea.vmem %s0, 133
  %s1027 = smov 192
  %v1028 = vld [vmem:[%s1026] ss:$16 sm:%s1027]
  %vm1029 = vcmask 1047558
  %v1030 = vsel %vm1029, %v1028, %v1025
  %1031 = vrot.lane.b32.xlu0 %v1030, 40
  %v1032 = vpop.permute.xlu0 %1031
  %vm1033 = vcmask 392512
  %s1034 = scalar_lea.vmem %s1, 8
  %1035 = vst.msk [vmem:[%s1034] sm:$0xff] %vm1033, %v1032
  %s1036 = scalar_lea.vmem %s0, 261
  %s1037 = smov 3
  %v1038 = vld [vmem:[%s1036] ss:$16 sm:%s1037]
  %s1039 = scalar_lea.vmem %s0, 261
  %s1040 = smov 12
  %v1041 = vld [vmem:[%s1039] ss:$16 sm:%s1040]
  %vm1042 = vcmask 1043458
  %v1043 = vsel %vm1042, %v1041, %v1038
  %s1044 = scalar_lea.vmem %s0, 261
  %s1045 = smov 48
  %v1046 = vld [vmem:[%s1044] ss:$16 sm:%s1045]
  %vm1047 = vcmask 1045508
  %v1048 = vsel %vm1047, %v1046, %v1043
  %s1049 = scalar_lea.vmem %s0, 261
  %s1050 = smov 192
  %v1051 = vld [vmem:[%s1049] ss:$16 sm:%s1050]
  %vm1052 = vcmask 1047558
  %v1053 = vsel %vm1052, %v1051, %v1048
  %1054 = vrot.lane.b32.xlu0 %v1053, 40
  %v1055 = vpop.permute.xlu0 %1054
  %vm1056 = vcmask 392512
  %s1057 = scalar_lea.vmem %s1, 16
  %1058 = vst.msk [vmem:[%s1057] sm:$0xff] %vm1056, %v1055
  %s1059 = scalar_lea.vmem %s0, 389
  %s1060 = smov 3
  %v1061 = vld [vmem:[%s1059] ss:$16 sm:%s1060]
  %s1062 = scalar_lea.vmem %s0, 389
  %s1063 = smov 12
  %v1064 = vld [vmem:[%s1062] ss:$16 sm:%s1063]
  %vm1065 = vcmask 1043458
  %v1066 = vsel %vm1065, %v1064, %v1061
  %s1067 = scalar_lea.vmem %s0, 389
  %s1068 = smov 48
  %v1069 = vld [vmem:[%s1067] ss:$16 sm:%s1068]
  %vm1070 = vcmask 1045508
  %v1071 = vsel %vm1070, %v1069, %v1066
  %s1072 = scalar_lea.vmem %s0, 389
  %s1073 = smov 192
  %v1074 = vld [vmem:[%s1072] ss:$16 sm:%s1073]
  %vm1075 = vcmask 1047558
  %v1076 = vsel %vm1075, %v1074, %v1071
  %1077 = vrot.lane.b32.xlu0 %v1076, 40
  %v1078 = vpop.permute.xlu0 %1077
  %vm1079 = vcmask 392512
  %s1080 = scalar_lea.vmem %s1, 24
  %1081 = vst.msk [vmem:[%s1080] sm:$0xff] %vm1079, %v1078
  %s1082 = scalar_lea.vmem %s0, 4
  %s1083 = smov 3
  %v1084 = vld [vmem:[%s1082] ss:$16 sm:%s1083]
  %s1085 = scalar_lea.vmem %s0, 4
  %s1086 = smov 12
  %v1087 = vld [vmem:[%s1085] ss:$16 sm:%s1086]
  %vm1088 = vcmask 1043458
  %v1089 = vsel %vm1088, %v1087, %v1084
  %s1090 = scalar_lea.vmem %s0, 4
  %s1091 = smov 48
  %v1092 = vld [vmem:[%s1090] ss:$16 sm:%s1091]
  %vm1093 = vcmask 1045508
  %v1094 = vsel %vm1093, %v1092, %v1089
  %s1095 = scalar_lea.vmem %s0, 4
  %s1096 = smov 192
  %v1097 = vld [vmem:[%s1095] ss:$16 sm:%s1096]
  %vm1098 = vcmask 1047558
  %v1099 = vsel %vm1098, %v1097, %v1094
  %1100 = vrot.lane.b32.xlu0 %v1099, 32
  %v1101 = vpop.permute.xlu0 %1100
  %vm1102 = vcmask 326912
  %1103 = vst.msk [vmem:[%s1] sm:$0xff] %vm1102, %v1101
  %s1104 = scalar_lea.vmem %s0, 132
  %s1105 = smov 3
  %v1106 = vld [vmem:[%s1104] ss:$16 sm:%s1105]
  %s1107 = scalar_lea.vmem %s0, 132
  %s1108 = smov 12
  %v1109 = vld [vmem:[%s1107] ss:$16 sm:%s1108]
  %vm1110 = vcmask 1043458
  %v1111 = vsel %vm1110, %v1109, %v1106
  %s1112 = scalar_lea.vmem %s0, 132
  %s1113 = smov 48
  %v1114 = vld [vmem:[%s1112] ss:$16 sm:%s1113]
  %vm1115 = vcmask 1045508
  %v1116 = vsel %vm1115, %v1114, %v1111
  %s1117 = scalar_lea.vmem %s0, 132
  %s1118 = smov 192
  %v1119 = vld [vmem:[%s1117] ss:$16 sm:%s1118]
  %vm1120 = vcmask 1047558
  %v1121 = vsel %vm1120, %v1119, %v1116
  %1122 = vrot.lane.b32.xlu0 %v1121, 32
  %v1123 = vpop.permute.xlu0 %1122
  %vm1124 = vcmask 326912
  %s1125 = scalar_lea.vmem %s1, 8
  %1126 = vst.msk [vmem:[%s1125] sm:$0xff] %vm1124, %v1123
  %s1127 = scalar_lea.vmem %s0, 260
  %s1128 = smov 3
  %v1129 = vld [vmem:[%s1127] ss:$16 sm:%s1128]
  %s1130 = scalar_lea.vmem %s0, 260
  %s1131 = smov 12
  %v1132 = vld [vmem:[%s1130] ss:$16 sm:%s1131]
  %vm1133 = vcmask 1043458
  %v1134 = vsel %vm1133, %v1132, %v1129
  %s1135 = scalar_lea.vmem %s0, 260
  %s1136 = smov 48
  %v1137 = vld [vmem:[%s1135] ss:$16 sm:%s1136]
  %vm1138 = vcmask 1045508
  %v1139 = vsel %vm1138, %v1137, %v1134
  %s1140 = scalar_lea.vmem %s0, 260
  %s1141 = smov 192
  %v1142 = vld [vmem:[%s1140] ss:$16 sm:%s1141]
  %vm1143 = vcmask 1047558
  %v1144 = vsel %vm1143, %v1142, %v1139
  %1145 = vrot.lane.b32.xlu0 %v1144, 32
  %v1146 = vpop.permute.xlu0 %1145
  %vm1147 = vcmask 326912
  %s1148 = scalar_lea.vmem %s1, 16
  %1149 = vst.msk [vmem:[%s1148] sm:$0xff] %vm1147, %v1146
  %s1150 = scalar_lea.vmem %s0, 388
  %s1151 = smov 3
  %v1152 = vld [vmem:[%s1150] ss:$16 sm:%s1151]
  %s1153 = scalar_lea.vmem %s0, 388
  %s1154 = smov 12
  %v1155 = vld [vmem:[%s1153] ss:$16 sm:%s1154]
  %vm1156 = vcmask 1043458
  %v1157 = vsel %vm1156, %v1155, %v1152
  %s1158 = scalar_lea.vmem %s0, 388
  %s1159 = smov 48
  %v1160 = vld [vmem:[%s1158] ss:$16 sm:%s1159]
  %vm1161 = vcmask 1045508
  %v1162 = vsel %vm1161, %v1160, %v1157
  %s1163 = scalar_lea.vmem %s0, 388
  %s1164 = smov 192
  %v1165 = vld [vmem:[%s1163] ss:$16 sm:%s1164]
  %vm1166 = vcmask 1047558
  %v1167 = vsel %vm1166, %v1165, %v1162
  %1168 = vrot.lane.b32.xlu0 %v1167, 32
  %v1169 = vpop.permute.xlu0 %1168
  %vm1170 = vcmask 326912
  %s1171 = scalar_lea.vmem %s1, 24
  %1172 = vst.msk [vmem:[%s1171] sm:$0xff] %vm1170, %v1169
  %s1173 = scalar_lea.vmem %s0, 3
  %s1174 = smov 3
  %v1175 = vld [vmem:[%s1173] ss:$16 sm:%s1174]
  %s1176 = scalar_lea.vmem %s0, 3
  %s1177 = smov 12
  %v1178 = vld [vmem:[%s1176] ss:$16 sm:%s1177]
  %vm1179 = vcmask 1043458
  %v1180 = vsel %vm1179, %v1178, %v1175
  %s1181 = scalar_lea.vmem %s0, 3
  %s1182 = smov 48
  %v1183 = vld [vmem:[%s1181] ss:$16 sm:%s1182]
  %vm1184 = vcmask 1045508
  %v1185 = vsel %vm1184, %v1183, %v1180
  %s1186 = scalar_lea.vmem %s0, 3
  %s1187 = smov 192
  %v1188 = vld [vmem:[%s1186] ss:$16 sm:%s1187]
  %vm1189 = vcmask 1047558
  %v1190 = vsel %vm1189, %v1188, %v1185
  %1191 = vrot.lane.b32.xlu0 %v1190, 24
  %v1192 = vpop.permute.xlu0 %1191
  %vm1193 = vcmask 261312
  %1194 = vst.msk [vmem:[%s1] sm:$0xff] %vm1193, %v1192
  %s1195 = scalar_lea.vmem %s0, 131
  %s1196 = smov 3
  %v1197 = vld [vmem:[%s1195] ss:$16 sm:%s1196]
  %s1198 = scalar_lea.vmem %s0, 131
  %s1199 = smov 12
  %v1200 = vld [vmem:[%s1198] ss:$16 sm:%s1199]
  %vm1201 = vcmask 1043458
  %v1202 = vsel %vm1201, %v1200, %v1197
  %s1203 = scalar_lea.vmem %s0, 131
  %s1204 = smov 48
  %v1205 = vld [vmem:[%s1203] ss:$16 sm:%s1204]
  %vm1206 = vcmask 1045508
  %v1207 = vsel %vm1206, %v1205, %v1202
  %s1208 = scalar_lea.vmem %s0, 131
  %s1209 = smov 192
  %v1210 = vld [vmem:[%s1208] ss:$16 sm:%s1209]
  %vm1211 = vcmask 1047558
  %v1212 = vsel %vm1211, %v1210, %v1207
  %1213 = vrot.lane.b32.xlu0 %v1212, 24
  %v1214 = vpop.permute.xlu0 %1213
  %vm1215 = vcmask 261312
  %s1216 = scalar_lea.vmem %s1, 8
  %1217 = vst.msk [vmem:[%s1216] sm:$0xff] %vm1215, %v1214
  %s1218 = scalar_lea.vmem %s0, 259
  %s1219 = smov 3
  %v1220 = vld [vmem:[%s1218] ss:$16 sm:%s1219]
  %s1221 = scalar_lea.vmem %s0, 259
  %s1222 = smov 12
  %v1223 = vld [vmem:[%s1221] ss:$16 sm:%s1222]
  %vm1224 = vcmask 1043458
  %v1225 = vsel %vm1224, %v1223, %v1220
  %s1226 = scalar_lea.vmem %s0, 259
  %s1227 = smov 48
  %v1228 = vld [vmem:[%s1226] ss:$16 sm:%s1227]
  %vm1229 = vcmask 1045508
  %v1230 = vsel %vm1229, %v1228, %v1225
  %s1231 = scalar_lea.vmem %s0, 259
  %s1232 = smov 192
  %v1233 = vld [vmem:[%s1231] ss:$16 sm:%s1232]
  %vm1234 = vcmask 1047558
  %v1235 = vsel %vm1234, %v1233, %v1230
  %1236 = vrot.lane.b32.xlu0 %v1235, 24
  %v1237 = vpop.permute.xlu0 %1236
  %vm1238 = vcmask 261312
  %s1239 = scalar_lea.vmem %s1, 16
  %1240 = vst.msk [vmem:[%s1239] sm:$0xff] %vm1238, %v1237
  %s1241 = scalar_lea.vmem %s0, 387
  %s1242 = smov 3
  %v1243 = vld [vmem:[%s1241] ss:$16 sm:%s1242]
  %s1244 = scalar_lea.vmem %s0, 387
  %s1245 = smov 12
  %v1246 = vld [vmem:[%s1244] ss:$16 sm:%s1245]
  %vm1247 = vcmask 1043458
  %v1248 = vsel %vm1247, %v1246, %v1243
  %s1249 = scalar_lea.vmem %s0, 387
  %s1250 = smov 48
  %v1251 = vld [vmem:[%s1249] ss:$16 sm:%s1250]
  %vm1252 = vcmask 1045508
  %v1253 = vsel %vm1252, %v1251, %v1248
  %s1254 = scalar_lea.vmem %s0, 387
  %s1255 = smov 192
  %v1256 = vld [vmem:[%s1254] ss:$16 sm:%s1255]
  %vm1257 = vcmask 1047558
  %v1258 = vsel %vm1257, %v1256, %v1253
  %1259 = vrot.lane.b32.xlu0 %v1258, 24
  %v1260 = vpop.permute.xlu0 %1259
  %vm1261 = vcmask 261312
  %s1262 = scalar_lea.vmem %s1, 24
  %1263 = vst.msk [vmem:[%s1262] sm:$0xff] %vm1261, %v1260
  %s1264 = scalar_lea.vmem %s0, 2
  %s1265 = smov 3
  %v1266 = vld [vmem:[%s1264] ss:$16 sm:%s1265]
  %s1267 = scalar_lea.vmem %s0, 2
  %s1268 = smov 12
  %v1269 = vld [vmem:[%s1267] ss:$16 sm:%s1268]
  %vm1270 = vcmask 1043458
  %v1271 = vsel %vm1270, %v1269, %v1266
  %s1272 = scalar_lea.vmem %s0, 2
  %s1273 = smov 48
  %v1274 = vld [vmem:[%s1272] ss:$16 sm:%s1273]
  %vm1275 = vcmask 1045508
  %v1276 = vsel %vm1275, %v1274, %v1271
  %s1277 = scalar_lea.vmem %s0, 2
  %s1278 = smov 192
  %v1279 = vld [vmem:[%s1277] ss:$16 sm:%s1278]
  %vm1280 = vcmask 1047558
  %v1281 = vsel %vm1280, %v1279, %v1276
  %1282 = vrot.lane.b32.xlu0 %v1281, 16
  %v1283 = vpop.permute.xlu0 %1282
  %vm1284 = vcmask 195712
  %1285 = vst.msk [vmem:[%s1] sm:$0xff] %vm1284, %v1283
  %s1286 = scalar_lea.vmem %s0, 130
  %s1287 = smov 3
  %v1288 = vld [vmem:[%s1286] ss:$16 sm:%s1287]
  %s1289 = scalar_lea.vmem %s0, 130
  %s1290 = smov 12
  %v1291 = vld [vmem:[%s1289] ss:$16 sm:%s1290]
  %vm1292 = vcmask 1043458
  %v1293 = vsel %vm1292, %v1291, %v1288
  %s1294 = scalar_lea.vmem %s0, 130
  %s1295 = smov 48
  %v1296 = vld [vmem:[%s1294] ss:$16 sm:%s1295]
  %vm1297 = vcmask 1045508
  %v1298 = vsel %vm1297, %v1296, %v1293
  %s1299 = scalar_lea.vmem %s0, 130
  %s1300 = smov 192
  %v1301 = vld [vmem:[%s1299] ss:$16 sm:%s1300]
  %vm1302 = vcmask 1047558
  %v1303 = vsel %vm1302, %v1301, %v1298
  %1304 = vrot.lane.b32.xlu0 %v1303, 16
  %v1305 = vpop.permute.xlu0 %1304
  %vm1306 = vcmask 195712
  %s1307 = scalar_lea.vmem %s1, 8
  %1308 = vst.msk [vmem:[%s1307] sm:$0xff] %vm1306, %v1305
  %s1309 = scalar_lea.vmem %s0, 258
  %s1310 = smov 3
  %v1311 = vld [vmem:[%s1309] ss:$16 sm:%s1310]
  %s1312 = scalar_lea.vmem %s0, 258
  %s1313 = smov 12
  %v1314 = vld [vmem:[%s1312] ss:$16 sm:%s1313]
  %vm1315 = vcmask 1043458
  %v1316 = vsel %vm1315, %v1314, %v1311
  %s1317 = scalar_lea.vmem %s0, 258
  %s1318 = smov 48
  %v1319 = vld [vmem:[%s1317] ss:$16 sm:%s1318]
  %vm1320 = vcmask 1045508
  %v1321 = vsel %vm1320, %v1319, %v1316
  %s1322 = scalar_lea.vmem %s0, 258
  %s1323 = smov 192
  %v1324 = vld [vmem:[%s1322] ss:$16 sm:%s1323]
  %vm1325 = vcmask 1047558
  %v1326 = vsel %vm1325, %v1324, %v1321
  %1327 = vrot.lane.b32.xlu0 %v1326, 16
  %v1328 = vpop.permute.xlu0 %1327
  %vm1329 = vcmask 195712
  %s1330 = scalar_lea.vmem %s1, 16
  %1331 = vst.msk [vmem:[%s1330] sm:$0xff] %vm1329, %v1328
  %s1332 = scalar_lea.vmem %s0, 386
  %s1333 = smov 3
  %v1334 = vld [vmem:[%s1332] ss:$16 sm:%s1333]
  %s1335 = scalar_lea.vmem %s0, 386
  %s1336 = smov 12
  %v1337 = vld [vmem:[%s1335] ss:$16 sm:%s1336]
  %vm1338 = vcmask 1043458
  %v1339 = vsel %vm1338, %v1337, %v1334
  %s1340 = scalar_lea.vmem %s0, 386
  %s1341 = smov 48
  %v1342 = vld [vmem:[%s1340] ss:$16 sm:%s1341]
  %vm1343 = vcmask 1045508
  %v1344 = vsel %vm1343, %v1342, %v1339
  %s1345 = scalar_lea.vmem %s0, 386
  %s1346 = smov 192
  %v1347 = vld [vmem:[%s1345] ss:$16 sm:%s1346]
  %vm1348 = vcmask 1047558
  %v1349 = vsel %vm1348, %v1347, %v1344
  %1350 = vrot.lane.b32.xlu0 %v1349, 16
  %v1351 = vpop.permute.xlu0 %1350
  %vm1352 = vcmask 195712
  %s1353 = scalar_lea.vmem %s1, 24
  %1354 = vst.msk [vmem:[%s1353] sm:$0xff] %vm1352, %v1351
  %s1355 = scalar_lea.vmem %s0, 1
  %s1356 = smov 3
  %v1357 = vld [vmem:[%s1355] ss:$16 sm:%s1356]
  %s1358 = scalar_lea.vmem %s0, 1
  %s1359 = smov 12
  %v1360 = vld [vmem:[%s1358] ss:$16 sm:%s1359]
  %vm1361 = vcmask 1043458
  %v1362 = vsel %vm1361, %v1360, %v1357
  %s1363 = scalar_lea.vmem %s0, 1
  %s1364 = smov 48
  %v1365 = vld [vmem:[%s1363] ss:$16 sm:%s1364]
  %vm1366 = vcmask 1045508
  %v1367 = vsel %vm1366, %v1365, %v1362
  %s1368 = scalar_lea.vmem %s0, 1
  %s1369 = smov 192
  %v1370 = vld [vmem:[%s1368] ss:$16 sm:%s1369]
  %vm1371 = vcmask 1047558
  %v1372 = vsel %vm1371, %v1370, %v1367
  %1373 = vrot.lane.b32.xlu0 %v1372, 8
  %v1374 = vpop.permute.xlu0 %1373
  %vm1375 = vcmask 130112
  %1376 = vst.msk [vmem:[%s1] sm:$0xff] %vm1375, %v1374
  %s1377 = scalar_lea.vmem %s0, 129
  %s1378 = smov 3
  %v1379 = vld [vmem:[%s1377] ss:$16 sm:%s1378]
  %s1380 = scalar_lea.vmem %s0, 129
  %s1381 = smov 12
  %v1382 = vld [vmem:[%s1380] ss:$16 sm:%s1381]
  %vm1383 = vcmask 1043458
  %v1384 = vsel %vm1383, %v1382, %v1379
  %s1385 = scalar_lea.vmem %s0, 129
  %s1386 = smov 48
  %v1387 = vld [vmem:[%s1385] ss:$16 sm:%s1386]
  %vm1388 = vcmask 1045508
  %v1389 = vsel %vm1388, %v1387, %v1384
  %s1390 = scalar_lea.vmem %s0, 129
  %s1391 = smov 192
  %v1392 = vld [vmem:[%s1390] ss:$16 sm:%s1391]
  %vm1393 = vcmask 1047558
  %v1394 = vsel %vm1393, %v1392, %v1389
  %1395 = vrot.lane.b32.xlu0 %v1394, 8
  %v1396 = vpop.permute.xlu0 %1395
  %vm1397 = vcmask 130112
  %s1398 = scalar_lea.vmem %s1, 8
  %1399 = vst.msk [vmem:[%s1398] sm:$0xff] %vm1397, %v1396
  %s1400 = scalar_lea.vmem %s0, 257
  %s1401 = smov 3
  %v1402 = vld [vmem:[%s1400] ss:$16 sm:%s1401]
  %s1403 = scalar_lea.vmem %s0, 257
  %s1404 = smov 12
  %v1405 = vld [vmem:[%s1403] ss:$16 sm:%s1404]
  %vm1406 = vcmask 1043458
  %v1407 = vsel %vm1406, %v1405, %v1402
  %s1408 = scalar_lea.vmem %s0, 257
  %s1409 = smov 48
  %v1410 = vld [vmem:[%s1408] ss:$16 sm:%s1409]
  %vm1411 = vcmask 1045508
  %v1412 = vsel %vm1411, %v1410, %v1407
  %s1413 = scalar_lea.vmem %s0, 257
  %s1414 = smov 192
  %v1415 = vld [vmem:[%s1413] ss:$16 sm:%s1414]
  %vm1416 = vcmask 1047558
  %v1417 = vsel %vm1416, %v1415, %v1412
  %1418 = vrot.lane.b32.xlu0 %v1417, 8
  %v1419 = vpop.permute.xlu0 %1418
  %vm1420 = vcmask 130112
  %s1421 = scalar_lea.vmem %s1, 16
  %1422 = vst.msk [vmem:[%s1421] sm:$0xff] %vm1420, %v1419
  %s1423 = scalar_lea.vmem %s0, 385
  %s1424 = smov 3
  %v1425 = vld [vmem:[%s1423] ss:$16 sm:%s1424]
  %s1426 = scalar_lea.vmem %s0, 385
  %s1427 = smov 12
  %v1428 = vld [vmem:[%s1426] ss:$16 sm:%s1427]
  %vm1429 = vcmask 1043458
  %v1430 = vsel %vm1429, %v1428, %v1425
  %s1431 = scalar_lea.vmem %s0, 385
  %s1432 = smov 48
  %v1433 = vld [vmem:[%s1431] ss:$16 sm:%s1432]
  %vm1434 = vcmask 1045508
  %v1435 = vsel %vm1434, %v1433, %v1430
  %s1436 = scalar_lea.vmem %s0, 385
  %s1437 = smov 192
  %v1438 = vld [vmem:[%s1436] ss:$16 sm:%s1437]
  %vm1439 = vcmask 1047558
  %v1440 = vsel %vm1439, %v1438, %v1435
  %1441 = vrot.lane.b32.xlu0 %v1440, 8
  %v1442 = vpop.permute.xlu0 %1441
  %vm1443 = vcmask 130112
  %s1444 = scalar_lea.vmem %s1, 24
  %1445 = vst.msk [vmem:[%s1444] sm:$0xff] %vm1443, %v1442

// kernel: tile.58
$region0: #{tile.58}
  %s0 = inlined_call_operand.vmem [shape: f32[4,32], index: 0, kind: input, shape index: {}]
  %s1 = inlined_call_operand.vmem [shape: f32[1,128], index: 1, kind: output, shape index: {}]
  $region1: #{tile.58} parent=0
    #allocation0 [shape = 'u8[4096]{0}', space=vmem, size = 0x1000, scoped, tag = 'scoped mem for output reshape']
    #allocation1 [shape = 'u8[4096]{0}', space=vmem, size = 0x1000, scoped, tag = 'scoped mem for input reshape']
    %s3 = sshllo.u32 0, 4
    %v4 = vld [vmem:[%s0] sm:%s3]
    %5 = vst [vmem:[#allocation1] sm:%s3] %v4
    %v6 = vld [vmem:[#allocation1] sm:$0x1]
    %vm7 = vcmask 261120
    %8 = vst.msk [vmem:[#allocation0] sm:$0x1] %vm7, %v6
    %s9 = scalar_lea.vmem [#allocation1], 3
    %v10 = vld [vmem:[%s9] sm:$0x1]
    %11 = vrot.lane.b32.xlu0 %v10, 96
    %v12 = vpop.permute.xlu0 %11
    %vm13 = vcmask 1048320
    %14 = vst.msk [vmem:[#allocation0] sm:$0x1] %vm13, %v12
    %s15 = scalar_lea.vmem [#allocation1], 2
    %v16 = vld [vmem:[%s15] sm:$0x1]
    %17 = vrot.lane.b32.xlu0 %v16, 64
    %v18 = vpop.permute.xlu0 %17
    %vm19 = vcmask 785920
    %20 = vst.msk [vmem:[#allocation0] sm:$0x1] %vm19, %v18
    %s21 = scalar_lea.vmem [#allocation1], 1
    %v22 = vld [vmem:[%s21] sm:$0x1]
    %23 = vrot.lane.b32.xlu0 %v22, 32
    %v24 = vpop.permute.xlu0 %23
    %vm25 = vcmask 523520
    %26 = vst.msk [vmem:[#allocation0] sm:$0x1] %vm25, %v24
    %s28 = sshllo.u32 0, 1
    %v30 = vld [vmem:[#allocation0] sm:%s28]
    %s31 = sshllo.u32 0, 1
    %32 = vst [vmem:[%s1] sm:%s31] %v30

// kernel: mul.32
$region0: #{mul.32}
  %s0 = inlined_call_operand.vmem [shape: f32[8,4,2,8,8], index: 0, kind: input, shape index: {}]
  %s1 = inlined_call_operand.vmem [shape: f32[32,128], index: 1, kind: output, shape index: {}]
  %s2 = smov 3
  %v3 = vld [vmem:[%s0] ss:$16 sm:%s2]
  %s4 = smov 12
  %v5 = vld [vmem:[%s0] ss:$16 sm:%s4]
  %vm6 = vcmask 1043458
  %v7 = vsel %vm6, %v5, %v3
  %s8 = smov 48
  %v9 = vld [vmem:[%s0] ss:$16 sm:%s8]
  %vm10 = vcmask 1045508
  %v11 = vsel %vm10, %v9, %v7
  %s12 = smov 192
  %v13 = vld [vmem:[%s0] ss:$16 sm:%s12]
  %vm14 = vcmask 1047558
  %v15 = vsel %vm14, %v13, %v11
  %vm16 = vcmask 64512
  %17 = vst.msk [vmem:[%s1] sm:$0xff] %vm16, %v15
  %s18 = scalar_lea.vmem %s0, 128
  %s19 = smov 3
  %v20 = vld [vmem:[%s18] ss:$16 sm:%s19]
  %s21 = scalar_lea.vmem %s0, 128
  %s22 = smov 12
  %v23 = vld [vmem:[%s21] ss:$16 sm:%s22]
  %vm24 = vcmask 1043458
  %v25 = vsel %vm24, %v23, %v20
  %s26 = scalar_lea.vmem %s0, 128
  %s27 = smov 48
  %v28 = vld [vmem:[%s26] ss:$16 sm:%s27]
  %vm29 = vcmask 1045508
  %v30 = vsel %vm29, %v28, %v25
  %s31 = scalar_lea.vmem %s0, 128
  %s32 = smov 192
  %v33 = vld [vmem:[%s31] ss:$16 sm:%s32]
  %vm34 = vcmask 1047558
  %v35 = vsel %vm34, %v33, %v30
  %vm36 = vcmask 64512
  %s37 = scalar_lea.vmem %s1, 8
  %38 = vst.msk [vmem:[%s37] sm:$0xff] %vm36, %v35
  %s39 = scalar_lea.vmem %s0, 256
  %s40 = smov 3
  %v41 = vld [vmem:[%s39] ss:$16 sm:%s40]
  %s42 = scalar_lea.vmem %s0, 256
  %s43 = smov 12
  %v44 = vld [vmem:[%s42] ss:$16 sm:%s43]
  %vm45 = vcmask 1043458
  %v46 = vsel %vm45, %v44, %v41
  %s47 = scalar_lea.vmem %s0, 256
  %s48 = smov 48
  %v49 = vld [vmem:[%s47] ss:$16 sm:%s48]
  %vm50 = vcmask 1045508
  %v51 = vsel %vm50, %v49, %v46
  %s52 = scalar_lea.vmem %s0, 256
  %s53 = smov 192
  %v54 = vld [vmem:[%s52] ss:$16 sm:%s53]
  %vm55 = vcmask 1047558
  %v56 = vsel %vm55, %v54, %v51
  %vm57 = vcmask 64512
  %s58 = scalar_lea.vmem %s1, 16
  %59 = vst.msk [vmem:[%s58] sm:$0xff] %vm57, %v56
  %s60 = scalar_lea.vmem %s0, 384
  %s61 = smov 3
  %v62 = vld [vmem:[%s60] ss:$16 sm:%s61]
  %s63 = scalar_lea.vmem %s0, 384
  %s64 = smov 12
  %v65 = vld [vmem:[%s63] ss:$16 sm:%s64]
  %vm66 = vcmask 1043458
  %v67 = vsel %vm66, %v65, %v62
  %s68 = scalar_lea.vmem %s0, 384
  %s69 = smov 48
  %v70 = vld [vmem:[%s68] ss:$16 sm:%s69]
  %vm71 = vcmask 1045508
  %v72 = vsel %vm71, %v70, %v67
  %s73 = scalar_lea.vmem %s0, 384
  %s74 = smov 192
  %v75 = vld [vmem:[%s73] ss:$16 sm:%s74]
  %vm76 = vcmask 1047558
  %v77 = vsel %vm76, %v75, %v72
  %vm78 = vcmask 64512
  %s79 = scalar_lea.vmem %s1, 24
  %80 = vst.msk [vmem:[%s79] sm:$0xff] %vm78, %v77
  %s81 = scalar_lea.vmem %s0, 15
  %s82 = smov 3
  %v83 = vld [vmem:[%s81] ss:$16 sm:%s82]
  %s84 = scalar_lea.vmem %s0, 15
  %s85 = smov 12
  %v86 = vld [vmem:[%s84] ss:$16 sm:%s85]
  %vm87 = vcmask 1043458
  %v88 = vsel %vm87, %v86, %v83
  %s89 = scalar_lea.vmem %s0, 15
  %s90 = smov 48
  %v91 = vld [vmem:[%s89] ss:$16 sm:%s90]
  %vm92 = vcmask 1045508
  %v93 = vsel %vm92, %v91, %v88
  %s94 = scalar_lea.vmem %s0, 15
  %s95 = smov 192
  %v96 = vld [vmem:[%s94] ss:$16 sm:%s95]
  %vm97 = vcmask 1047558
  %v98 = vsel %vm97, %v96, %v93
  %99 = vrot.lane.b32.xlu0 %v98, 120
  %v100 = vpop.permute.xlu0 %99
  %vm101 = vcmask 1048512
  %102 = vst.msk [vmem:[%s1] sm:$0xff] %vm101, %v100
  %s103 = scalar_lea.vmem %s0, 143
  %s104 = smov 3
  %v105 = vld [vmem:[%s103] ss:$16 sm:%s104]
  %s106 = scalar_lea.vmem %s0, 143
  %s107 = smov 12
  %v108 = vld [vmem:[%s106] ss:$16 sm:%s107]
  %vm109 = vcmask 1043458
  %v110 = vsel %vm109, %v108, %v105
  %s111 = scalar_lea.vmem %s0, 143
  %s112 = smov 48
  %v113 = vld [vmem:[%s111] ss:$16 sm:%s112]
  %vm114 = vcmask 1045508
  %v115 = vsel %vm114, %v113, %v110
  %s116 = scalar_lea.vmem %s0, 143
  %s117 = smov 192
  %v118 = vld [vmem:[%s116] ss:$16 sm:%s117]
  %vm119 = vcmask 1047558
  %v120 = vsel %vm119, %v118, %v115
  %121 = vrot.lane.b32.xlu0 %v120, 120
  %v122 = vpop.permute.xlu0 %121
  %vm123 = vcmask 1048512
  %s124 = scalar_lea.vmem %s1, 8
  %125 = vst.msk [vmem:[%s124] sm:$0xff] %vm123, %v122
  %s126 = scalar_lea.vmem %s0, 271
  %s127 = smov 3
  %v128 = vld [vmem:[%s126] ss:$16 sm:%s127]
  %s129 = scalar_lea.vmem %s0, 271
  %s130 = smov 12
  %v131 = vld [vmem:[%s129] ss:$16 sm:%s130]
  %vm132 = vcmask 1043458
  %v133 = vsel %vm132, %v131, %v128
  %s134 = scalar_lea.vmem %s0, 271
  %s135 = smov 48
  %v136 = vld [vmem:[%s134] ss:$16 sm:%s135]
  %vm137 = vcmask 1045508
  %v138 = vsel %vm137, %v136, %v133
  %s139 = scalar_lea.vmem %s0, 271
  %s140 = smov 192
  %v141 = vld [vmem:[%s139] ss:$16 sm:%s140]
  %vm142 = vcmask 1047558
  %v143 = vsel %vm142, %v141, %v138
  %144 = vrot.lane.b32.xlu0 %v143, 120
  %v145 = vpop.permute.xlu0 %144
  %vm146 = vcmask 1048512
  %s147 = scalar_lea.vmem %s1, 16
  %148 = vst.msk [vmem:[%s147] sm:$0xff] %vm146, %v145
  %s149 = scalar_lea.vmem %s0, 399
  %s150 = smov 3
  %v151 = vld [vmem:[%s149] ss:$16 sm:%s150]
  %s152 = scalar_lea.vmem %s0, 399
  %s153 = smov 12
  %v154 = vld [vmem:[%s152] ss:$16 sm:%s153]
  %vm155 = vcmask 1043458
  %v156 = vsel %vm155, %v154, %v151
  %s157 = scalar_lea.vmem %s0, 399
  %s158 = smov 48
  %v159 = vld [vmem:[%s157] ss:$16 sm:%s158]
  %vm160 = vcmask 1045508
  %v161 = vsel %vm160, %v159, %v156
  %s162 = scalar_lea.vmem %s0, 399
  %s163 = smov 192
  %v164 = vld [vmem:[%s162] ss:$16 sm:%s163]
  %vm165 = vcmask 1047558
  %v166 = vsel %vm165, %v164, %v161
  %167 = vrot.lane.b32.xlu0 %v166, 120
  %v168 = vpop.permute.xlu0 %167
  %vm169 = vcmask 1048512
  %s170 = scalar_lea.vmem %s1, 24
  %171 = vst.msk [vmem:[%s170] sm:$0xff] %vm169, %v168
  %s172 = scalar_lea.vmem %s0, 14
  %s173 = smov 3
  %v174 = vld [vmem:[%s172] ss:$16 sm:%s173]
  %s175 = scalar_lea.vmem %s0, 14
  %s176 = smov 12
  %v177 = vld [vmem:[%s175] ss:$16 sm:%s176]
  %vm178 = vcmask 1043458
  %v179 = vsel %vm178, %v177, %v174
  %s180 = scalar_lea.vmem %s0, 14
  %s181 = smov 48
  %v182 = vld [vmem:[%s180] ss:$16 sm:%s181]
  %vm183 = vcmask 1045508
  %v184 = vsel %vm183, %v182, %v179
  %s185 = scalar_lea.vmem %s0, 14
  %s186 = smov 192
  %v187 = vld [vmem:[%s185] ss:$16 sm:%s186]
  %vm188 = vcmask 1047558
  %v189 = vsel %vm188, %v187, %v184
  %190 = vrot.lane.b32.xlu0 %v189, 112
  %v191 = vpop.permute.xlu0 %190
  %vm192 = vcmask 982912
  %193 = vst.msk [vmem:[%s1] sm:$0xff] %vm192, %v191
  %s194 = scalar_lea.vmem %s0, 142
  %s195 = smov 3
  %v196 = vld [vmem:[%s194] ss:$16 sm:%s195]
  %s197 = scalar_lea.vmem %s0, 142
  %s198 = smov 12
  %v199 = vld [vmem:[%s197] ss:$16 sm:%s198]
  %vm200 = vcmask 1043458
  %v201 = vsel %vm200, %v199, %v196
  %s202 = scalar_lea.vmem %s0, 142
  %s203 = smov 48
  %v204 = vld [vmem:[%s202] ss:$16 sm:%s203]
  %vm205 = vcmask 1045508
  %v206 = vsel %vm205, %v204, %v201
  %s207 = scalar_lea.vmem %s0, 142
  %s208 = smov 192
  %v209 = vld [vmem:[%s207] ss:$16 sm:%s208]
  %vm210 = vcmask 1047558
  %v211 = vsel %vm210, %v209, %v206
  %212 = vrot.lane.b32.xlu0 %v211, 112
  %v213 = vpop.permute.xlu0 %212
  %vm214 = vcmask 982912
  %s215 = scalar_lea.vmem %s1, 8
  %216 = vst.msk [vmem:[%s215] sm:$0xff] %vm214, %v213
  %s217 = scalar_lea.vmem %s0, 270
  %s218 = smov 3
  %v219 = vld [vmem:[%s217] ss:$16 sm:%s218]
  %s220 = scalar_lea.vmem %s0, 270
  %s221 = smov 12
  %v222 = vld [vmem:[%s220] ss:$16 sm:%s221]
  %vm223 = vcmask 1043458
  %v224 = vsel %vm223, %v222, %v219
  %s225 = scalar_lea.vmem %s0, 270
  %s226 = smov 48
  %v227 = vld [vmem:[%s225] ss:$16 sm:%s226]
  %vm228 = vcmask 1045508
  %v229 = vsel %vm228, %v227, %v224
  %s230 = scalar_lea.vmem %s0, 270
  %s231 = smov 192
  %v232 = vld [vmem:[%s230] ss:$16 sm:%s231]
  %vm233 = vcmask 1047558
  %v234 = vsel %vm233, %v232, %v229
  %235 = vrot.lane.b32.xlu0 %v234, 112
  %v236 = vpop.permute.xlu0 %235
  %vm237 = vcmask 982912
  %s238 = scalar_lea.vmem %s1, 16
  %239 = vst.msk [vmem:[%s238] sm:$0xff] %vm237, %v236
  %s240 = scalar_lea.vmem %s0, 398
  %s241 = smov 3
  %v242 = vld [vmem:[%s240] ss:$16 sm:%s241]
  %s243 = scalar_lea.vmem %s0, 398
  %s244 = smov 12
  %v245 = vld [vmem:[%s243] ss:$16 sm:%s244]
  %vm246 = vcmask 1043458
  %v247 = vsel %vm246, %v245, %v242
  %s248 = scalar_lea.vmem %s0, 398
  %s249 = smov 48
  %v250 = vld [vmem:[%s248] ss:$16 sm:%s249]
  %vm251 = vcmask 1045508
  %v252 = vsel %vm251, %v250, %v247
  %s253 = scalar_lea.vmem %s0, 398
  %s254 = smov 192
  %v255 = vld [vmem:[%s253] ss:$16 sm:%s254]
  %vm256 = vcmask 1047558
  %v257 = vsel %vm256, %v255, %v252
  %258 = vrot.lane.b32.xlu0 %v257, 112
  %v259 = vpop.permute.xlu0 %258
  %vm260 = vcmask 982912
  %s261 = scalar_lea.vmem %s1, 24
  %262 = vst.msk [vmem:[%s261] sm:$0xff] %vm260, %v259
  %s263 = scalar_lea.vmem %s0, 13
  %s264 = smov 3
  %v265 = vld [vmem:[%s263] ss:$16 sm:%s264]
  %s266 = scalar_lea.vmem %s0, 13
  %s267 = smov 12
  %v268 = vld [vmem:[%s266] ss:$16 sm:%s267]
  %vm269 = vcmask 1043458
  %v270 = vsel %vm269, %v268, %v265
  %s271 = scalar_lea.vmem %s0, 13
  %s272 = smov 48
  %v273 = vld [vmem:[%s271] ss:$16 sm:%s272]
  %vm274 = vcmask 1045508
  %v275 = vsel %vm274, %v273, %v270
  %s276 = scalar_lea.vmem %s0, 13
  %s277 = smov 192
  %v278 = vld [vmem:[%s276] ss:$16 sm:%s277]
  %vm279 = vcmask 1047558
  %v280 = vsel %vm279, %v278, %v275
  %281 = vrot.lane.b32.xlu0 %v280, 104
  %v282 = vpop.permute.xlu0 %281
  %vm283 = vcmask 917312
  %284 = vst.msk [vmem:[%s1] sm:$0xff] %vm283, %v282
  %s285 = scalar_lea.vmem %s0, 141
  %s286 = smov 3
  %v287 = vld [vmem:[%s285] ss:$16 sm:%s286]
  %s288 = scalar_lea.vmem %s0, 141
  %s289 = smov 12
  %v290 = vld [vmem:[%s288] ss:$16 sm:%s289]
  %vm291 = vcmask 1043458
  %v292 = vsel %vm291, %v290, %v287
  %s293 = scalar_lea.vmem %s0, 141
  %s294 = smov 48
  %v295 = vld [vmem:[%s293] ss:$16 sm:%s294]
  %vm296 = vcmask 1045508
  %v297 = vsel %vm296, %v295, %v292
  %s298 = scalar_lea.vmem %s0, 141
  %s299 = smov 192
  %v300 = vld [vmem:[%s298] ss:$16 sm:%s299]
  %vm301 = vcmask 1047558
  %v302 = vsel %vm301, %v300, %v297
  %303 = vrot.lane.b32.xlu0 %v302, 104
  %v304 = vpop.permute.xlu0 %303
  %vm305 = vcmask 917312
  %s306 = scalar_lea.vmem %s1, 8
  %307 = vst.msk [vmem:[%s306] sm:$0xff] %vm305, %v304
  %s308 = scalar_lea.vmem %s0, 269
  %s309 = smov 3
  %v310 = vld [vmem:[%s308] ss:$16 sm:%s309]
  %s311 = scalar_lea.vmem %s0, 269
  %s312 = smov 12
  %v313 = vld [vmem:[%s311] ss:$16 sm:%s312]
  %vm314 = vcmask 1043458
  %v315 = vsel %vm314, %v313, %v310
  %s316 = scalar_lea.vmem %s0, 269
  %s317 = smov 48
  %v318 = vld [vmem:[%s316] ss:$16 sm:%s317]
  %vm319 = vcmask 1045508
  %v320 = vsel %vm319, %v318, %v315
  %s321 = scalar_lea.vmem %s0, 269
  %s322 = smov 192
  %v323 = vld [vmem:[%s321] ss:$16 sm:%s322]
  %vm324 = vcmask 1047558
  %v325 = vsel %vm324, %v323, %v320
  %326 = vrot.lane.b32.xlu0 %v325, 104
  %v327 = vpop.permute.xlu0 %326
  %vm328 = vcmask 917312
  %s329 = scalar_lea.vmem %s1, 16
  %330 = vst.msk [vmem:[%s329] sm:$0xff] %vm328, %v327
  %s331 = scalar_lea.vmem %s0, 397
  %s332 = smov 3
  %v333 = vld [vmem:[%s331] ss:$16 sm:%s332]
  %s334 = scalar_lea.vmem %s0, 397
  %s335 = smov 12
  %v336 = vld [vmem:[%s334] ss:$16 sm:%s335]
  %vm337 = vcmask 1043458
  %v338 = vsel %vm337, %v336, %v333
  %s339 = scalar_lea.vmem %s0, 397
  %s340 = smov 48
  %v341 = vld [vmem:[%s339] ss:$16 sm:%s340]
  %vm342 = vcmask 1045508
  %v343 = vsel %vm342, %v341, %v338
  %s344 = scalar_lea.vmem %s0, 397
  %s345 = smov 192
  %v346 = vld [vmem:[%s344] ss:$16 sm:%s345]
  %vm347 = vcmask 1047558
  %v348 = vsel %vm347, %v346, %v343
  %349 = vrot.lane.b32.xlu0 %v348, 104
  %v350 = vpop.permute.xlu0 %349
  %vm351 = vcmask 917312
  %s352 = scalar_lea.vmem %s1, 24
  %353 = vst.msk [vmem:[%s352] sm:$0xff] %vm351, %v350
  %s354 = scalar_lea.vmem %s0, 12
  %s355 = smov 3
  %v356 = vld [vmem:[%s354] ss:$16 sm:%s355]
  %s357 = scalar_lea.vmem %s0, 12
  %s358 = smov 12
  %v359 = vld [vmem:[%s357] ss:$16 sm:%s358]
  %vm360 = vcmask 1043458
  %v361 = vsel %vm360, %v359, %v356
  %s362 = scalar_lea.vmem %s0, 12
  %s363 = smov 48
  %v364 = vld [vmem:[%s362] ss:$16 sm:%s363]
  %vm365 = vcmask 1045508
  %v366 = vsel %vm365, %v364, %v361
  %s367 = scalar_lea.vmem %s0, 12
  %s368 = smov 192
  %v369 = vld [vmem:[%s367] ss:$16 sm:%s368]
  %vm370 = vcmask 1047558
  %v371 = vsel %vm370, %v369, %v366
  %372 = vrot.lane.b32.xlu0 %v371, 96
  %v373 = vpop.permute.xlu0 %372
  %vm374 = vcmask 851712
  %375 = vst.msk [vmem:[%s1] sm:$0xff] %vm374, %v373
  %s376 = scalar_lea.vmem %s0, 140
  %s377 = smov 3
  %v378 = vld [vmem:[%s376] ss:$16 sm:%s377]
  %s379 = scalar_lea.vmem %s0, 140
  %s380 = smov 12
  %v381 = vld [vmem:[%s379] ss:$16 sm:%s380]
  %vm382 = vcmask 1043458
  %v383 = vsel %vm382, %v381, %v378
  %s384 = scalar_lea.vmem %s0, 140
  %s385 = smov 48
  %v386 = vld [vmem:[%s384] ss:$16 sm:%s385]
  %vm387 = vcmask 1045508
  %v388 = vsel %vm387, %v386, %v383
  %s389 = scalar_lea.vmem %s0, 140
  %s390 = smov 192
  %v391 = vld [vmem:[%s389] ss:$16 sm:%s390]
  %vm392 = vcmask 1047558
  %v393 = vsel %vm392, %v391, %v388
  %394 = vrot.lane.b32.xlu0 %v393, 96
  %v395 = vpop.permute.xlu0 %394
  %vm396 = vcmask 851712
  %s397 = scalar_lea.vmem %s1, 8
  %398 = vst.msk [vmem:[%s397] sm:$0xff] %vm396, %v395
  %s399 = scalar_lea.vmem %s0, 268
  %s400 = smov 3
  %v401 = vld [vmem:[%s399] ss:$16 sm:%s400]
  %s402 = scalar_lea.vmem %s0, 268
  %s403 = smov 12
  %v404 = vld [vmem:[%s402] ss:$16 sm:%s403]
  %vm405 = vcmask 1043458
  %v406 = vsel %vm405, %v404, %v401
  %s407 = scalar_lea.vmem %s0, 268
  %s408 = smov 48
  %v409 = vld [vmem:[%s407] ss:$16 sm:%s408]
  %vm410 = vcmask 1045508
  %v411 = vsel %vm410, %v409, %v406
  %s412 = scalar_lea.vmem %s0, 268
  %s413 = smov 192
  %v414 = vld [vmem:[%s412] ss:$16 sm:%s413]
  %vm415 = vcmask 1047558
  %v416 = vsel %vm415, %v414, %v411
  %417 = vrot.lane.b32.xlu0 %v416, 96
  %v418 = vpop.permute.xlu0 %417
  %vm419 = vcmask 851712
  %s420 = scalar_lea.vmem %s1, 16
  %421 = vst.msk [vmem:[%s420] sm:$0xff] %vm419, %v418
  %s422 = scalar_lea.vmem %s0, 396
  %s423 = smov 3
  %v424 = vld [vmem:[%s422] ss:$16 sm:%s423]
  %s425 = scalar_lea.vmem %s0, 396
  %s426 = smov 12
  %v427 = vld [vmem:[%s425] ss:$16 sm:%s426]
  %vm428 = vcmask 1043458
  %v429 = vsel %vm428, %v427, %v424
  %s430 = scalar_lea.vmem %s0, 396
  %s431 = smov 48
  %v432 = vld [vmem:[%s430] ss:$16 sm:%s431]
  %vm433 = vcmask 1045508
  %v434 = vsel %vm433, %v432, %v429
  %s435 = scalar_lea.vmem %s0, 396
  %s436 = smov 192
  %v437 = vld [vmem:[%s435] ss:$16 sm:%s436]
  %vm438 = vcmask 1047558
  %v439 = vsel %vm438, %v437, %v434
  %440 = vrot.lane.b32.xlu0 %v439, 96
  %v441 = vpop.permute.xlu0 %440
  %vm442 = vcmask 851712
  %s443 = scalar_lea.vmem %s1, 24
  %444 = vst.msk [vmem:[%s443] sm:$0xff] %vm442, %v441
  %s445 = scalar_lea.vmem %s0, 11
  %s446 = smov 3
  %v447 = vld [vmem:[%s445] ss:$16 sm:%s446]
  %s448 = scalar_lea.vmem %s0, 11
  %s449 = smov 12
  %v450 = vld [vmem:[%s448] ss:$16 sm:%s449]
  %vm451 = vcmask 1043458
  %v452 = vsel %vm451, %v450, %v447
  %s453 = scalar_lea.vmem %s0, 11
  %s454 = smov 48
  %v455 = vld [vmem:[%s453] ss:$16 sm:%s454]
  %vm456 = vcmask 1045508
  %v457 = vsel %vm456, %v455, %v452
  %s458 = scalar_lea.vmem %s0, 11
  %s459 = smov 192
  %v460 = vld [vmem:[%s458] ss:$16 sm:%s459]
  %vm461 = vcmask 1047558
  %v462 = vsel %vm461, %v460, %v457
  %463 = vrot.lane.b32.xlu0 %v462, 88
  %v464 = vpop.permute.xlu0 %463
  %vm465 = vcmask 786112
  %466 = vst.msk [vmem:[%s1] sm:$0xff] %vm465, %v464
  %s467 = scalar_lea.vmem %s0, 139
  %s468 = smov 3
  %v469 = vld [vmem:[%s467] ss:$16 sm:%s468]
  %s470 = scalar_lea.vmem %s0, 139
  %s471 = smov 12
  %v472 = vld [vmem:[%s470] ss:$16 sm:%s471]
  %vm473 = vcmask 1043458
  %v474 = vsel %vm473, %v472, %v469
  %s475 = scalar_lea.vmem %s0, 139
  %s476 = smov 48
  %v477 = vld [vmem:[%s475] ss:$16 sm:%s476]
  %vm478 = vcmask 1045508
  %v479 = vsel %vm478, %v477, %v474
  %s480 = scalar_lea.vmem %s0, 139
  %s481 = smov 192
  %v482 = vld [vmem:[%s480] ss:$16 sm:%s481]
  %vm483 = vcmask 1047558
  %v484 = vsel %vm483, %v482, %v479
  %485 = vrot.lane.b32.xlu0 %v484, 88
  %v486 = vpop.permute.xlu0 %485
  %vm487 = vcmask 786112
  %s488 = scalar_lea.vmem %s1, 8
  %489 = vst.msk [vmem:[%s488] sm:$0xff] %vm487, %v486
  %s490 = scalar_lea.vmem %s0, 267
  %s491 = smov 3
  %v492 = vld [vmem:[%s490] ss:$16 sm:%s491]
  %s493 = scalar_lea.vmem %s0, 267
  %s494 = smov 12
  %v495 = vld [vmem:[%s493] ss:$16 sm:%s494]
  %vm496 = vcmask 1043458
  %v497 = vsel %vm496, %v495, %v492
  %s498 = scalar_lea.vmem %s0, 267
  %s499 = smov 48
  %v500 = vld [vmem:[%s498] ss:$16 sm:%s499]
  %vm501 = vcmask 1045508
  %v502 = vsel %vm501, %v500, %v497
  %s503 = scalar_lea.vmem %s0, 267
  %s504 = smov 192
  %v505 = vld [vmem:[%s503] ss:$16 sm:%s504]
  %vm506 = vcmask 1047558
  %v507 = vsel %vm506, %v505, %v502
  %508 = vrot.lane.b32.xlu0 %v507, 88
  %v509 = vpop.permute.xlu0 %508
  %vm510 = vcmask 786112
  %s511 = scalar_lea.vmem %s1, 16
  %512 = vst.msk [vmem:[%s511] sm:$0xff] %vm510, %v509
  %s513 = scalar_lea.vmem %s0, 395
  %s514 = smov 3
  %v515 = vld [vmem:[%s513] ss:$16 sm:%s514]
  %s516 = scalar_lea.vmem %s0, 395
  %s517 = smov 12
  %v518 = vld [vmem:[%s516] ss:$16 sm:%s517]
  %vm519 = vcmask 1043458
  %v520 = vsel %vm519, %v518, %v515
  %s521 = scalar_lea.vmem %s0, 395
  %s522 = smov 48
  %v523 = vld [vmem:[%s521] ss:$16 sm:%s522]
  %vm524 = vcmask 1045508
  %v525 = vsel %vm524, %v523, %v520
  %s526 = scalar_lea.vmem %s0, 395
  %s527 = smov 192
  %v528 = vld [vmem:[%s526] ss:$16 sm:%s527]
  %vm529 = vcmask 1047558
  %v530 = vsel %vm529, %v528, %v525
  %531 = vrot.lane.b32.xlu0 %v530, 88
  %v532 = vpop.permute.xlu0 %531
  %vm533 = vcmask 786112
  %s534 = scalar_lea.vmem %s1, 24
  %535 = vst.msk [vmem:[%s534] sm:$0xff] %vm533, %v532
  %s536 = scalar_lea.vmem %s0, 10
  %s537 = smov 3
  %v538 = vld [vmem:[%s536] ss:$16 sm:%s537]
  %s539 = scalar_lea.vmem %s0, 10
  %s540 = smov 12
  %v541 = vld [vmem:[%s539] ss:$16 sm:%s540]
  %vm542 = vcmask 1043458
  %v543 = vsel %vm542, %v541, %v538
  %s544 = scalar_lea.vmem %s0, 10
  %s545 = smov 48
  %v546 = vld [vmem:[%s544] ss:$16 sm:%s545]
  %vm547 = vcmask 1045508
  %v548 = vsel %vm547, %v546, %v543
  %s549 = scalar_lea.vmem %s0, 10
  %s550 = smov 192
  %v551 = vld [vmem:[%s549] ss:$16 sm:%s550]
  %vm552 = vcmask 1047558
  %v553 = vsel %vm552, %v551, %v548
  %554 = vrot.lane.b32.xlu0 %v553, 80
  %v555 = vpop.permute.xlu0 %554
  %vm556 = vcmask 720512
  %557 = vst.msk [vmem:[%s1] sm:$0xff] %vm556, %v555
  %s558 = scalar_lea.vmem %s0, 138
  %s559 = smov 3
  %v560 = vld [vmem:[%s558] ss:$16 sm:%s559]
  %s561 = scalar_lea.vmem %s0, 138
  %s562 = smov 12
  %v563 = vld [vmem:[%s561] ss:$16 sm:%s562]
  %vm564 = vcmask 1043458
  %v565 = vsel %vm564, %v563, %v560
  %s566 = scalar_lea.vmem %s0, 138
  %s567 = smov 48
  %v568 = vld [vmem:[%s566] ss:$16 sm:%s567]
  %vm569 = vcmask 1045508
  %v570 = vsel %vm569, %v568, %v565
  %s571 = scalar_lea.vmem %s0, 138
  %s572 = smov 192
  %v573 = vld [vmem:[%s571] ss:$16 sm:%s572]
  %vm574 = vcmask 1047558
  %v575 = vsel %vm574, %v573, %v570
  %576 = vrot.lane.b32.xlu0 %v575, 80
  %v577 = vpop.permute.xlu0 %576
  %vm578 = vcmask 720512
  %s579 = scalar_lea.vmem %s1, 8
  %580 = vst.msk [vmem:[%s579] sm:$0xff] %vm578, %v577
  %s581 = scalar_lea.vmem %s0, 266
  %s582 = smov 3
  %v583 = vld [vmem:[%s581] ss:$16 sm:%s582]
  %s584 = scalar_lea.vmem %s0, 266
  %s585 = smov 12
  %v586 = vld [vmem:[%s584] ss:$16 sm:%s585]
  %vm587 = vcmask 1043458
  %v588 = vsel %vm587, %v586, %v583
  %s589 = scalar_lea.vmem %s0, 266
  %s590 = smov 48
  %v591 = vld [vmem:[%s589] ss:$16 sm:%s590]
  %vm592 = vcmask 1045508
  %v593 = vsel %vm592, %v591, %v588
  %s594 = scalar_lea.vmem %s0, 266
  %s595 = smov 192
  %v596 = vld [vmem:[%s594] ss:$16 sm:%s595]
  %vm597 = vcmask 1047558
  %v598 = vsel %vm597, %v596, %v593
  %599 = vrot.lane.b32.xlu0 %v598, 80
  %v600 = vpop.permute.xlu0 %599
  %vm601 = vcmask 720512
  %s602 = scalar_lea.vmem %s1, 16
  %603 = vst.msk [vmem:[%s602] sm:$0xff] %vm601, %v600
  %s604 = scalar_lea.vmem %s0, 394
  %s605 = smov 3
  %v606 = vld [vmem:[%s604] ss:$16 sm:%s605]
  %s607 = scalar_lea.vmem %s0, 394
  %s608 = smov 12
  %v609 = vld [vmem:[%s607] ss:$16 sm:%s608]
  %vm610 = vcmask 1043458
  %v611 = vsel %vm610, %v609, %v606
  %s612 = scalar_lea.vmem %s0, 394
  %s613 = smov 48
  %v614 = vld [vmem:[%s612] ss:$16 sm:%s613]
  %vm615 = vcmask 1045508
  %v616 = vsel %vm615, %v614, %v611
  %s617 = scalar_lea.vmem %s0, 394
  %s618 = smov 192
  %v619 = vld [vmem:[%s617] ss:$16 sm:%s618]
  %vm620 = vcmask 1047558
  %v621 = vsel %vm620, %v619, %v616
  %622 = vrot.lane.b32.xlu0 %v621, 80
  %v623 = vpop.permute.xlu0 %622
  %vm624 = vcmask 720512
  %s625 = scalar_lea.vmem %s1, 24
  %626 = vst.msk [vmem:[%s625] sm:$0xff] %vm624, %v623
  %s627 = scalar_lea.vmem %s0, 9
  %s628 = smov 3
  %v629 = vld [vmem:[%s627] ss:$16 sm:%s628]
  %s630 = scalar_lea.vmem %s0, 9
  %s631 = smov 12
  %v632 = vld [vmem:[%s630] ss:$16 sm:%s631]
  %vm633 = vcmask 1043458
  %v634 = vsel %vm633, %v632, %v629
  %s635 = scalar_lea.vmem %s0, 9
  %s636 = smov 48
  %v637 = vld [vmem:[%s635] ss:$16 sm:%s636]
  %vm638 = vcmask 1045508
  %v639 = vsel %vm638, %v637, %v634
  %s640 = scalar_lea.vmem %s0, 9
  %s641 = smov 192
  %v642 = vld [vmem:[%s640] ss:$16 sm:%s641]
  %vm643 = vcmask 1047558
  %v644 = vsel %vm643, %v642, %v639
  %645 = vrot.lane.b32.xlu0 %v644, 72
  %v646 = vpop.permute.xlu0 %645
  %vm647 = vcmask 654912
  %648 = vst.msk [vmem:[%s1] sm:$0xff] %vm647, %v646
  %s649 = scalar_lea.vmem %s0, 137
  %s650 = smov 3
  %v651 = vld [vmem:[%s649] ss:$16 sm:%s650]
  %s652 = scalar_lea.vmem %s0, 137
  %s653 = smov 12
  %v654 = vld [vmem:[%s652] ss:$16 sm:%s653]
  %vm655 = vcmask 1043458
  %v656 = vsel %vm655, %v654, %v651
  %s657 = scalar_lea.vmem %s0, 137
  %s658 = smov 48
  %v659 = vld [vmem:[%s657] ss:$16 sm:%s658]
  %vm660 = vcmask 1045508
  %v661 = vsel %vm660, %v659, %v656
  %s662 = scalar_lea.vmem %s0, 137
  %s663 = smov 192
  %v664 = vld [vmem:[%s662] ss:$16 sm:%s663]
  %vm665 = vcmask 1047558
  %v666 = vsel %vm665, %v664, %v661
  %667 = vrot.lane.b32.xlu0 %v666, 72
  %v668 = vpop.permute.xlu0 %667
  %vm669 = vcmask 654912
  %s670 = scalar_lea.vmem %s1, 8
  %671 = vst.msk [vmem:[%s670] sm:$0xff] %vm669, %v668
  %s672 = scalar_lea.vmem %s0, 265
  %s673 = smov 3
  %v674 = vld [vmem:[%s672] ss:$16 sm:%s673]
  %s675 = scalar_lea.vmem %s0, 265
  %s676 = smov 12
  %v677 = vld [vmem:[%s675] ss:$16 sm:%s676]
  %vm678 = vcmask 1043458
  %v679 = vsel %vm678, %v677, %v674
  %s680 = scalar_lea.vmem %s0, 265
  %s681 = smov 48
  %v682 = vld [vmem:[%s680] ss:$16 sm:%s681]
  %vm683 = vcmask 1045508
  %v684 = vsel %vm683, %v682, %v679
  %s685 = scalar_lea.vmem %s0, 265
  %s686 = smov 192
  %v687 = vld [vmem:[%s685] ss:$16 sm:%s686]
  %vm688 = vcmask 1047558
  %v689 = vsel %vm688, %v687, %v684
  %690 = vrot.lane.b32.xlu0 %v689, 72
  %v691 = vpop.permute.xlu0 %690
  %vm692 = vcmask 654912
  %s693 = scalar_lea.vmem %s1, 16
  %694 = vst.msk [vmem:[%s693] sm:$0xff] %vm692, %v691
  %s695 = scalar_lea.vmem %s0, 393
  %s696 = smov 3
  %v697 = vld [vmem:[%s695] ss:$16 sm:%s696]
  %s698 = scalar_lea.vmem %s0, 393
  %s699 = smov 12
  %v700 = vld [vmem:[%s698] ss:$16 sm:%s699]
  %vm701 = vcmask 1043458
  %v702 = vsel %vm701, %v700, %v697
  %s703 = scalar_lea.vmem %s0, 393
  %s704 = smov 48
  %v705 = vld [vmem:[%s703] ss:$16 sm:%s704]
  %vm706 = vcmask 1045508
  %v707 = vsel %vm706, %v705, %v702
  %s708 = scalar_lea.vmem %s0, 393
  %s709 = smov 192
  %v710 = vld [vmem:[%s708] ss:$16 sm:%s709]
  %vm711 = vcmask 1047558
  %v712 = vsel %vm711, %v710, %v707
  %713 = vrot.lane.b32.xlu0 %v712, 72
  %v714 = vpop.permute.xlu0 %713
  %vm715 = vcmask 654912
  %s716 = scalar_lea.vmem %s1, 24
  %717 = vst.msk [vmem:[%s716] sm:$0xff] %vm715, %v714
  %s718 = scalar_lea.vmem %s0, 8
  %s719 = smov 3
  %v720 = vld [vmem:[%s718] ss:$16 sm:%s719]
  %s721 = scalar_lea.vmem %s0, 8
  %s722 = smov 12
  %v723 = vld [vmem:[%s721] ss:$16 sm:%s722]
  %vm724 = vcmask 1043458
  %v725 = vsel %vm724, %v723, %v720
  %s726 = scalar_lea.vmem %s0, 8
  %s727 = smov 48
  %v728 = vld [vmem:[%s726] ss:$16 sm:%s727]
  %vm729 = vcmask 1045508
  %v730 = vsel %vm729, %v728, %v725
  %s731 = scalar_lea.vmem %s0, 8
  %s732 = smov 192
  %v733 = vld [vmem:[%s731] ss:$16 sm:%s732]
  %vm734 = vcmask 1047558
  %v735 = vsel %vm734, %v733, %v730
  %736 = vrot.lane.b32.xlu0 %v735, 64
  %v737 = vpop.permute.xlu0 %736
  %vm738 = vcmask 589312
  %739 = vst.msk [vmem:[%s1] sm:$0xff] %vm738, %v737
  %s740 = scalar_lea.vmem %s0, 136
  %s741 = smov 3
  %v742 = vld [vmem:[%s740] ss:$16 sm:%s741]
  %s743 = scalar_lea.vmem %s0, 136
  %s744 = smov 12
  %v745 = vld [vmem:[%s743] ss:$16 sm:%s744]
  %vm746 = vcmask 1043458
  %v747 = vsel %vm746, %v745, %v742
  %s748 = scalar_lea.vmem %s0, 136
  %s749 = smov 48
  %v750 = vld [vmem:[%s748] ss:$16 sm:%s749]
  %vm751 = vcmask 1045508
  %v752 = vsel %vm751, %v750, %v747
  %s753 = scalar_lea.vmem %s0, 136
  %s754 = smov 192
  %v755 = vld [vmem:[%s753] ss:$16 sm:%s754]
  %vm756 = vcmask 1047558
  %v757 = vsel %vm756, %v755, %v752
  %758 = vrot.lane.b32.xlu0 %v757, 64
  %v759 = vpop.permute.xlu0 %758
  %vm760 = vcmask 589312
  %s761 = scalar_lea.vmem %s1, 8
  %762 = vst.msk [vmem:[%s761] sm:$0xff] %vm760, %v759
  %s763 = scalar_lea.vmem %s0, 264
  %s764 = smov 3
  %v765 = vld [vmem:[%s763] ss:$16 sm:%s764]
  %s766 = scalar_lea.vmem %s0, 264
  %s767 = smov 12
  %v768 = vld [vmem:[%s766] ss:$16 sm:%s767]
  %vm769 = vcmask 1043458
  %v770 = vsel %vm769, %v768, %v765
  %s771 = scalar_lea.vmem %s0, 264
  %s772 = smov 48
  %v773 = vld [vmem:[%s771] ss:$16 sm:%s772]
  %vm774 = vcmask 1045508
  %v775 = vsel %vm774, %v773, %v770
  %s776 = scalar_lea.vmem %s0, 264
  %s777 = smov 192
  %v778 = vld [vmem:[%s776] ss:$16 sm:%s777]
  %vm779 = vcmask 1047558
  %v780 = vsel %vm779, %v778, %v775
  %781 = vrot.lane.b32.xlu0 %v780, 64
  %v782 = vpop.permute.xlu0 %781
  %vm783 = vcmask 589312
  %s784 = scalar_lea.vmem %s1, 16
  %785 = vst.msk [vmem:[%s784] sm:$0xff] %vm783, %v782
  %s786 = scalar_lea.vmem %s0, 392
  %s787 = smov 3
  %v788 = vld [vmem:[%s786] ss:$16 sm:%s787]
  %s789 = scalar_lea.vmem %s0, 392
  %s790 = smov 12
  %v791 = vld [vmem:[%s789] ss:$16 sm:%s790]
  %vm792 = vcmask 1043458
  %v793 = vsel %vm792, %v791, %v788
  %s794 = scalar_lea.vmem %s0, 392
  %s795 = smov 48
  %v796 = vld [vmem:[%s794] ss:$16 sm:%s795]
  %vm797 = vcmask 1045508
  %v798 = vsel %vm797, %v796, %v793
  %s799 = scalar_lea.vmem %s0, 392
  %s800 = smov 192
  %v801 = vld [vmem:[%s799] ss:$16 sm:%s800]
  %vm802 = vcmask 1047558
  %v803 = vsel %vm802, %v801, %v798
  %804 = vrot.lane.b32.xlu0 %v803, 64
  %v805 = vpop.permute.xlu0 %804
  %vm806 = vcmask 589312
  %s807 = scalar_lea.vmem %s1, 24
  %808 = vst.msk [vmem:[%s807] sm:$0xff] %vm806, %v805
  %s809 = scalar_lea.vmem %s0, 7
  %s810 = smov 3
  %v811 = vld [vmem:[%s809] ss:$16 sm:%s810]
  %s812 = scalar_lea.vmem %s0, 7
  %s813 = smov 12
  %v814 = vld [vmem:[%s812] ss:$16 sm:%s813]
  %vm815 = vcmask 1043458
  %v816 = vsel %vm815, %v814, %v811
  %s817 = scalar_lea.vmem %s0, 7
  %s818 = smov 48
  %v819 = vld [vmem:[%s817] ss:$16 sm:%s818]
  %vm820 = vcmask 1045508
  %v821 = vsel %vm820, %v819, %v816
  %s822 = scalar_lea.vmem %s0, 7
  %s823 = smov 192
  %v824 = vld [vmem:[%s822] ss:$16 sm:%s823]
  %vm825 = vcmask 1047558
  %v826 = vsel %vm825, %v824, %v821
  %827 = vrot.lane.b32.xlu0 %v826, 56
  %v828 = vpop.permute.xlu0 %827
  %vm829 = vcmask 523712
  %830 = vst.msk [vmem:[%s1] sm:$0xff] %vm829, %v828
  %s831 = scalar_lea.vmem %s0, 135
  %s832 = smov 3
  %v833 = vld [vmem:[%s831] ss:$16 sm:%s832]
  %s834 = scalar_lea.vmem %s0, 135
  %s835 = smov 12
  %v836 = vld [vmem:[%s834] ss:$16 sm:%s835]
  %vm837 = vcmask 1043458
  %v838 = vsel %vm837, %v836, %v833
  %s839 = scalar_lea.vmem %s0, 135
  %s840 = smov 48
  %v841 = vld [vmem:[%s839] ss:$16 sm:%s840]
  %vm842 = vcmask 1045508
  %v843 = vsel %vm842, %v841, %v838
  %s844 = scalar_lea.vmem %s0, 135
  %s845 = smov 192
  %v846 = vld [vmem:[%s844] ss:$16 sm:%s845]
  %vm847 = vcmask 1047558
  %v848 = vsel %vm847, %v846, %v843
  %849 = vrot.lane.b32.xlu0 %v848, 56
  %v850 = vpop.permute.xlu0 %849
  %vm851 = vcmask 523712
  %s852 = scalar_lea.vmem %s1, 8
  %853 = vst.msk [vmem:[%s852] sm:$0xff] %vm851, %v850
  %s854 = scalar_lea.vmem %s0, 263
  %s855 = smov 3
  %v856 = vld [vmem:[%s854] ss:$16 sm:%s855]
  %s857 = scalar_lea.vmem %s0, 263
  %s858 = smov 12
  %v859 = vld [vmem:[%s857] ss:$16 sm:%s858]
  %vm860 = vcmask 1043458
  %v861 = vsel %vm860, %v859, %v856
  %s862 = scalar_lea.vmem %s0, 263
  %s863 = smov 48
  %v864 = vld [vmem:[%s862] ss:$16 sm:%s863]
  %vm865 = vcmask 1045508
  %v866 = vsel %vm865, %v864, %v861
  %s867 = scalar_lea.vmem %s0, 263
  %s868 = smov 192
  %v869 = vld [vmem:[%s867] ss:$16 sm:%s868]
  %vm870 = vcmask 1047558
  %v871 = vsel %vm870, %v869, %v866
  %872 = vrot.lane.b32.xlu0 %v871, 56
  %v873 = vpop.permute.xlu0 %872
  %vm874 = vcmask 523712
  %s875 = scalar_lea.vmem %s1, 16
  %876 = vst.msk [vmem:[%s875] sm:$0xff] %vm874, %v873
  %s877 = scalar_lea.vmem %s0, 391
  %s878 = smov 3
  %v879 = vld [vmem:[%s877] ss:$16 sm:%s878]
  %s880 = scalar_lea.vmem %s0, 391
  %s881 = smov 12
  %v882 = vld [vmem:[%s880] ss:$16 sm:%s881]
  %vm883 = vcmask 1043458
  %v884 = vsel %vm883, %v882, %v879
  %s885 = scalar_lea.vmem %s0, 391
  %s886 = smov 48
  %v887 = vld [vmem:[%s885] ss:$16 sm:%s886]
  %vm888 = vcmask 1045508
  %v889 = vsel %vm888, %v887, %v884
  %s890 = scalar_lea.vmem %s0, 391
  %s891 = smov 192
  %v892 = vld [vmem:[%s890] ss:$16 sm:%s891]
  %vm893 = vcmask 1047558
  %v894 = vsel %vm893, %v892, %v889
  %895 = vrot.lane.b32.xlu0 %v894, 56
  %v896 = vpop.permute.xlu0 %895
  %vm897 = vcmask 523712
  %s898 = scalar_lea.vmem %s1, 24
  %899 = vst.msk [vmem:[%s898] sm:$0xff] %vm897, %v896
  %s900 = scalar_lea.vmem %s0, 6
  %s901 = smov 3
  %v902 = vld [vmem:[%s900] ss:$16 sm:%s901]
  %s903 = scalar_lea.vmem %s0, 6
  %s904 = smov 12
  %v905 = vld [vmem:[%s903] ss:$16 sm:%s904]
  %vm906 = vcmask 1043458
  %v907 = vsel %vm906, %v905, %v902
  %s908 = scalar_lea.vmem %s0, 6
  %s909 = smov 48
  %v910 = vld [vmem:[%s908] ss:$16 sm:%s909]
  %vm911 = vcmask 1045508
  %v912 = vsel %vm911, %v910, %v907
  %s913 = scalar_lea.vmem %s0, 6
  %s914 = smov 192
  %v915 = vld [vmem:[%s913] ss:$16 sm:%s914]
  %vm916 = vcmask 1047558
  %v917 = vsel %vm916, %v915, %v912
  %918 = vrot.lane.b32.xlu0 %v917, 48
  %v919 = vpop.permute.xlu0 %918
  %vm920 = vcmask 458112
  %921 = vst.msk [vmem:[%s1] sm:$0xff] %vm920, %v919
  %s922 = scalar_lea.vmem %s0, 134
  %s923 = smov 3
  %v924 = vld [vmem:[%s922] ss:$16 sm:%s923]
  %s925 = scalar_lea.vmem %s0, 134
  %s926 = smov 12
  %v927 = vld [vmem:[%s925] ss:$16 sm:%s926]
  %vm928 = vcmask 1043458
  %v929 = vsel %vm928, %v927, %v924
  %s930 = scalar_lea.vmem %s0, 134
  %s931 = smov 48
  %v932 = vld [vmem:[%s930] ss:$16 sm:%s931]
  %vm933 = vcmask 1045508
  %v934 = vsel %vm933, %v932, %v929
  %s935 = scalar_lea.vmem %s0, 134
  %s936 = smov 192
  %v937 = vld [vmem:[%s935] ss:$16 sm:%s936]
  %vm938 = vcmask 1047558
  %v939 = vsel %vm938, %v937, %v934
  %940 = vrot.lane.b32.xlu0 %v939, 48
  %v941 = vpop.permute.xlu0 %940
  %vm942 = vcmask 458112
  %s943 = scalar_lea.vmem %s1, 8
  %944 = vst.msk [vmem:[%s943] sm:$0xff] %vm942, %v941
  %s945 = scalar_lea.vmem %s0, 262
  %s946 = smov 3
  %v947 = vld [vmem:[%s945] ss:$16 sm:%s946]
  %s948 = scalar_lea.vmem %s0, 262
  %s949 = smov 12
  %v950 = vld [vmem:[%s948] ss:$16 sm:%s949]
  %vm951 = vcmask 1043458
  %v952 = vsel %vm951, %v950, %v947
  %s953 = scalar_lea.vmem %s0, 262
  %s954 = smov 48
  %v955 = vld [vmem:[%s953] ss:$16 sm:%s954]
  %vm956 = vcmask 1045508
  %v957 = vsel %vm956, %v955, %v952
  %s958 = scalar_lea.vmem %s0, 262
  %s959 = smov 192
  %v960 = vld [vmem:[%s958] ss:$16 sm:%s959]
  %vm961 = vcmask 1047558
  %v962 = vsel %vm961, %v960, %v957
  %963 = vrot.lane.b32.xlu0 %v962, 48
  %v964 = vpop.permute.xlu0 %963
  %vm965 = vcmask 458112
  %s966 = scalar_lea.vmem %s1, 16
  %967 = vst.msk [vmem:[%s966] sm:$0xff] %vm965, %v964
  %s968 = scalar_lea.vmem %s0, 390
  %s969 = smov 3
  %v970 = vld [vmem:[%s968] ss:$16 sm:%s969]
  %s971 = scalar_lea.vmem %s0, 390
  %s972 = smov 12
  %v973 = vld [vmem:[%s971] ss:$16 sm:%s972]
  %vm974 = vcmask 1043458
  %v975 = vsel %vm974, %v973, %v970
  %s976 = scalar_lea.vmem %s0, 390
  %s977 = smov 48
  %v978 = vld [vmem:[%s976] ss:$16 sm:%s977]
  %vm979 = vcmask 1045508
  %v980 = vsel %vm979, %v978, %v975
  %s981 = scalar_lea.vmem %s0, 390
  %s982 = smov 192
  %v983 = vld [vmem:[%s981] ss:$16 sm:%s982]
  %vm984 = vcmask 1047558
  %v985 = vsel %vm984, %v983, %v980
  %986 = vrot.lane.b32.xlu0 %v985, 48
  %v987 = vpop.permute.xlu0 %986
  %vm988 = vcmask 458112
  %s989 = scalar_lea.vmem %s1, 24
  %990 = vst.msk [vmem:[%s989] sm:$0xff] %vm988, %v987
  %s991 = scalar_lea.vmem %s0, 5
  %s992 = smov 3
  %v993 = vld [vmem:[%s991] ss:$16 sm:%s992]
  %s994 = scalar_lea.vmem %s0, 5
  %s995 = smov 12
  %v996 = vld [vmem:[%s994] ss:$16 sm:%s995]
  %vm997 = vcmask 1043458
  %v998 = vsel %vm997, %v996, %v993
  %s999 = scalar_lea.vmem %s0, 5
  %s1000 = smov 48
  %v1001 = vld [vmem:[%s999] ss:$16 sm:%s1000]
  %vm1002 = vcmask 1045508
  %v1003 = vsel %vm1002, %v1001, %v998
  %s1004 = scalar_lea.vmem %s0, 5
  %s1005 = smov 192
  %v1006 = vld [vmem:[%s1004] ss:$16 sm:%s1005]
  %vm1007 = vcmask 1047558
  %v1008 = vsel %vm1007, %v1006, %v1003
  %1009 = vrot.lane.b32.xlu0 %v1008, 40
  %v1010 = vpop.permute.xlu0 %1009
  %vm1011 = vcmask 392512
  %1012 = vst.msk [vmem:[%s1] sm:$0xff] %vm1011, %v1010
  %s1013 = scalar_lea.vmem %s0, 133
  %s1014 = smov 3
  %v1015 = vld [vmem:[%s1013] ss:$16 sm:%s1014]
  %s1016 = scalar_lea.vmem %s0, 133
  %s1017 = smov 12
  %v1018 = vld [vmem:[%s1016] ss:$16 sm:%s1017]
  %vm1019 = vcmask 1043458
  %v1020 = vsel %vm1019, %v1018, %v1015
  %s1021 = scalar_lea.vmem %s0, 133
  %s1022 = smov 48
  %v1023 = vld [vmem:[%s1021] ss:$16 sm:%s1022]
  %vm1024 = vcmask 1045508
  %v1025 = vsel %vm1024, %v1023, %v1020
  %s1026 = scalar_lea.vmem %s0, 133
  %s1027 = smov 192
  %v1028 = vld [vmem:[%s1026] ss:$16 sm:%s1027]
  %vm1029 = vcmask 1047558
  %v1030 = vsel %vm1029, %v1028, %v1025
  %1031 = vrot.lane.b32.xlu0 %v1030, 40
  %v1032 = vpop.permute.xlu0 %1031
  %vm1033 = vcmask 392512
  %s1034 = scalar_lea.vmem %s1, 8
  %1035 = vst.msk [vmem:[%s1034] sm:$0xff] %vm1033, %v1032
  %s1036 = scalar_lea.vmem %s0, 261
  %s1037 = smov 3
  %v1038 = vld [vmem:[%s1036] ss:$16 sm:%s1037]
  %s1039 = scalar_lea.vmem %s0, 261
  %s1040 = smov 12
  %v1041 = vld [vmem:[%s1039] ss:$16 sm:%s1040]
  %vm1042 = vcmask 1043458
  %v1043 = vsel %vm1042, %v1041, %v1038
  %s1044 = scalar_lea.vmem %s0, 261
  %s1045 = smov 48
  %v1046 = vld [vmem:[%s1044] ss:$16 sm:%s1045]
  %vm1047 = vcmask 1045508
  %v1048 = vsel %vm1047, %v1046, %v1043
  %s1049 = scalar_lea.vmem %s0, 261
  %s1050 = smov 192
  %v1051 = vld [vmem:[%s1049] ss:$16 sm:%s1050]
  %vm1052 = vcmask 1047558
  %v1053 = vsel %vm1052, %v1051, %v1048
  %1054 = vrot.lane.b32.xlu0 %v1053, 40
  %v1055 = vpop.permute.xlu0 %1054
  %vm1056 = vcmask 392512
  %s1057 = scalar_lea.vmem %s1, 16
  %1058 = vst.msk [vmem:[%s1057] sm:$0xff] %vm1056, %v1055
  %s1059 = scalar_lea.vmem %s0, 389
  %s1060 = smov 3
  %v1061 = vld [vmem:[%s1059] ss:$16 sm:%s1060]
  %s1062 = scalar_lea.vmem %s0, 389
  %s1063 = smov 12
  %v1064 = vld [vmem:[%s1062] ss:$16 sm:%s1063]
  %vm1065 = vcmask 1043458
  %v1066 = vsel %vm1065, %v1064, %v1061
  %s1067 = scalar_lea.vmem %s0, 389
  %s1068 = smov 48
  %v1069 = vld [vmem:[%s1067] ss:$16 sm:%s1068]
  %vm1070 = vcmask 1045508
  %v1071 = vsel %vm1070, %v1069, %v1066
  %s1072 = scalar_lea.vmem %s0, 389
  %s1073 = smov 192
  %v1074 = vld [vmem:[%s1072] ss:$16 sm:%s1073]
  %vm1075 = vcmask 1047558
  %v1076 = vsel %vm1075, %v1074, %v1071
  %1077 = vrot.lane.b32.xlu0 %v1076, 40
  %v1078 = vpop.permute.xlu0 %1077
  %vm1079 = vcmask 392512
  %s1080 = scalar_lea.vmem %s1, 24
  %1081 = vst.msk [vmem:[%s1080] sm:$0xff] %vm1079, %v1078
  %s1082 = scalar_lea.vmem %s0, 4
  %s1083 = smov 3
  %v1084 = vld [vmem:[%s1082] ss:$16 sm:%s1083]
  %s1085 = scalar_lea.vmem %s0, 4
  %s1086 = smov 12
  %v1087 = vld [vmem:[%s1085] ss:$16 sm:%s1086]
  %vm1088 = vcmask 1043458
  %v1089 = vsel %vm1088, %v1087, %v1084
  %s1090 = scalar_lea.vmem %s0, 4
  %s1091 = smov 48
  %v1092 = vld [vmem:[%s1090] ss:$16 sm:%s1091]
  %vm1093 = vcmask 1045508
  %v1094 = vsel %vm1093, %v1092, %v1089
  %s1095 = scalar_lea.vmem %s0, 4
  %s1096 = smov 192
  %v1097 = vld [vmem:[%s1095] ss:$16 sm:%s1096]
  %vm1098 = vcmask 1047558
  %v1099 = vsel %vm1098, %v1097, %v1094
  %1100 = vrot.lane.b32.xlu0 %v1099, 32
  %v1101 = vpop.permute.xlu0 %1100
  %vm1102 = vcmask 326912
  %1103 = vst.msk [vmem:[%s1] sm:$0xff] %vm1102, %v1101
  %s1104 = scalar_lea.vmem %s0, 132
  %s1105 = smov 3
  %v1106 = vld [vmem:[%s1104] ss:$16 sm:%s1105]
  %s1107 = scalar_lea.vmem %s0, 132
  %s1108 = smov 12
  %v1109 = vld [vmem:[%s1107] ss:$16 sm:%s1108]
  %vm1110 = vcmask 1043458
  %v1111 = vsel %vm1110, %v1109, %v1106
  %s1112 = scalar_lea.vmem %s0, 132
  %s1113 = smov 48
  %v1114 = vld [vmem:[%s1112] ss:$16 sm:%s1113]
  %vm1115 = vcmask 1045508
  %v1116 = vsel %vm1115, %v1114, %v1111
  %s1117 = scalar_lea.vmem %s0, 132
  %s1118 = smov 192
  %v1119 = vld [vmem:[%s1117] ss:$16 sm:%s1118]
  %vm1120 = vcmask 1047558
  %v1121 = vsel %vm1120, %v1119, %v1116
  %1122 = vrot.lane.b32.xlu0 %v1121, 32
  %v1123 = vpop.permute.xlu0 %1122
  %vm1124 = vcmask 326912
  %s1125 = scalar_lea.vmem %s1, 8
  %1126 = vst.msk [vmem:[%s1125] sm:$0xff] %vm1124, %v1123
  %s1127 = scalar_lea.vmem %s0, 260
  %s1128 = smov 3
  %v1129 = vld [vmem:[%s1127] ss:$16 sm:%s1128]
  %s1130 = scalar_lea.vmem %s0, 260
  %s1131 = smov 12
  %v1132 = vld [vmem:[%s1130] ss:$16 sm:%s1131]
  %vm1133 = vcmask 1043458
  %v1134 = vsel %vm1133, %v1132, %v1129
  %s1135 = scalar_lea.vmem %s0, 260
  %s1136 = smov 48
  %v1137 = vld [vmem:[%s1135] ss:$16 sm:%s1136]
  %vm1138 = vcmask 1045508
  %v1139 = vsel %vm1138, %v1137, %v1134
  %s1140 = scalar_lea.vmem %s0, 260
  %s1141 = smov 192
  %v1142 = vld [vmem:[%s1140] ss:$16 sm:%s1141]
  %vm1143 = vcmask 1047558
  %v1144 = vsel %vm1143, %v1142, %v1139
  %1145 = vrot.lane.b32.xlu0 %v1144, 32
  %v1146 = vpop.permute.xlu0 %1145
  %vm1147 = vcmask 326912
  %s1148 = scalar_lea.vmem %s1, 16
  %1149 = vst.msk [vmem:[%s1148] sm:$0xff] %vm1147, %v1146
  %s1150 = scalar_lea.vmem %s0, 388
  %s1151 = smov 3
  %v1152 = vld [vmem:[%s1150] ss:$16 sm:%s1151]
  %s1153 = scalar_lea.vmem %s0, 388
  %s1154 = smov 12
  %v1155 = vld [vmem:[%s1153] ss:$16 sm:%s1154]
  %vm1156 = vcmask 1043458
  %v1157 = vsel %vm1156, %v1155, %v1152
  %s1158 = scalar_lea.vmem %s0, 388
  %s1159 = smov 48
  %v1160 = vld [vmem:[%s1158] ss:$16 sm:%s1159]
  %vm1161 = vcmask 1045508
  %v1162 = vsel %vm1161, %v1160, %v1157
  %s1163 = scalar_lea.vmem %s0, 388
  %s1164 = smov 192
  %v1165 = vld [vmem:[%s1163] ss:$16 sm:%s1164]
  %vm1166 = vcmask 1047558
  %v1167 = vsel %vm1166, %v1165, %v1162
  %1168 = vrot.lane.b32.xlu0 %v1167, 32
  %v1169 = vpop.permute.xlu0 %1168
  %vm1170 = vcmask 326912
  %s1171 = scalar_lea.vmem %s1, 24
  %1172 = vst.msk [vmem:[%s1171] sm:$0xff] %vm1170, %v1169
  %s1173 = scalar_lea.vmem %s0, 3
  %s1174 = smov 3
  %v1175 = vld [vmem:[%s1173] ss:$16 sm:%s1174]
  %s1176 = scalar_lea.vmem %s0, 3
  %s1177 = smov 12
  %v1178 = vld [vmem:[%s1176] ss:$16 sm:%s1177]
  %vm1179 = vcmask 1043458
  %v1180 = vsel %vm1179, %v1178, %v1175
  %s1181 = scalar_lea.vmem %s0, 3
  %s1182 = smov 48
  %v1183 = vld [vmem:[%s1181] ss:$16 sm:%s1182]
  %vm1184 = vcmask 1045508
  %v1185 = vsel %vm1184, %v1183, %v1180
  %s1186 = scalar_lea.vmem %s0, 3
  %s1187 = smov 192
  %v1188 = vld [vmem:[%s1186] ss:$16 sm:%s1187]
  %vm1189 = vcmask 1047558
  %v1190 = vsel %vm1189, %v1188, %v1185
  %1191 = vrot.lane.b32.xlu0 %v1190, 24
  %v1192 = vpop.permute.xlu0 %1191
  %vm1193 = vcmask 261312
  %1194 = vst.msk [vmem:[%s1] sm:$0xff] %vm1193, %v1192
  %s1195 = scalar_lea.vmem %s0, 131
  %s1196 = smov 3
  %v1197 = vld [vmem:[%s1195] ss:$16 sm:%s1196]
  %s1198 = scalar_lea.vmem %s0, 131
  %s1199 = smov 12
  %v1200 = vld [vmem:[%s1198] ss:$16 sm:%s1199]
  %vm1201 = vcmask 1043458
  %v1202 = vsel %vm1201, %v1200, %v1197
  %s1203 = scalar_lea.vmem %s0, 131
  %s1204 = smov 48
  %v1205 = vld [vmem:[%s1203] ss:$16 sm:%s1204]
  %vm1206 = vcmask 1045508
  %v1207 = vsel %vm1206, %v1205, %v1202
  %s1208 = scalar_lea.vmem %s0, 131
  %s1209 = smov 192
  %v1210 = vld [vmem:[%s1208] ss:$16 sm:%s1209]
  %vm1211 = vcmask 1047558
  %v1212 = vsel %vm1211, %v1210, %v1207
  %1213 = vrot.lane.b32.xlu0 %v1212, 24
  %v1214 = vpop.permute.xlu0 %1213
  %vm1215 = vcmask 261312
  %s1216 = scalar_lea.vmem %s1, 8
  %1217 = vst.msk [vmem:[%s1216] sm:$0xff] %vm1215, %v1214
  %s1218 = scalar_lea.vmem %s0, 259
  %s1219 = smov 3
  %v1220 = vld [vmem:[%s1218] ss:$16 sm:%s1219]
  %s1221 = scalar_lea.vmem %s0, 259
  %s1222 = smov 12
  %v1223 = vld [vmem:[%s1221] ss:$16 sm:%s1222]
  %vm1224 = vcmask 1043458
  %v1225 = vsel %vm1224, %v1223, %v1220
  %s1226 = scalar_lea.vmem %s0, 259
  %s1227 = smov 48
  %v1228 = vld [vmem:[%s1226] ss:$16 sm:%s1227]
  %vm1229 = vcmask 1045508
  %v1230 = vsel %vm1229, %v1228, %v1225
  %s1231 = scalar_lea.vmem %s0, 259
  %s1232 = smov 192
  %v1233 = vld [vmem:[%s1231] ss:$16 sm:%s1232]
  %vm1234 = vcmask 1047558
  %v1235 = vsel %vm1234, %v1233, %v1230
  %1236 = vrot.lane.b32.xlu0 %v1235, 24
  %v1237 = vpop.permute.xlu0 %1236
  %vm1238 = vcmask 261312
  %s1239 = scalar_lea.vmem %s1, 16
  %1240 = vst.msk [vmem:[%s1239] sm:$0xff] %vm1238, %v1237
  %s1241 = scalar_lea.vmem %s0, 387
  %s1242 = smov 3
  %v1243 = vld [vmem:[%s1241] ss:$16 sm:%s1242]
  %s1244 = scalar_lea.vmem %s0, 387
  %s1245 = smov 12
  %v1246 = vld [vmem:[%s1244] ss:$16 sm:%s1245]
  %vm1247 = vcmask 1043458
  %v1248 = vsel %vm1247, %v1246, %v1243
  %s1249 = scalar_lea.vmem %s0, 387
  %s1250 = smov 48
  %v1251 = vld [vmem:[%s1249] ss:$16 sm:%s1250]
  %vm1252 = vcmask 1045508
  %v1253 = vsel %vm1252, %v1251, %v1248
  %s1254 = scalar_lea.vmem %s0, 387
  %s1255 = smov 192
  %v1256 = vld [vmem:[%s1254] ss:$16 sm:%s1255]
  %vm1257 = vcmask 1047558
  %v1258 = vsel %vm1257, %v1256, %v1253
  %1259 = vrot.lane.b32.xlu0 %v1258, 24
  %v1260 = vpop.permute.xlu0 %1259
  %vm1261 = vcmask 261312
  %s1262 = scalar_lea.vmem %s1, 24
  %1263 = vst.msk [vmem:[%s1262] sm:$0xff] %vm1261, %v1260
  %s1264 = scalar_lea.vmem %s0, 2
  %s1265 = smov 3
  %v1266 = vld [vmem:[%s1264] ss:$16 sm:%s1265]
  %s1267 = scalar_lea.vmem %s0, 2
  %s1268 = smov 12
  %v1269 = vld [vmem:[%s1267] ss:$16 sm:%s1268]
  %vm1270 = vcmask 1043458
  %v1271 = vsel %vm1270, %v1269, %v1266
  %s1272 = scalar_lea.vmem %s0, 2
  %s1273 = smov 48
  %v1274 = vld [vmem:[%s1272] ss:$16 sm:%s1273]
  %vm1275 = vcmask 1045508
  %v1276 = vsel %vm1275, %v1274, %v1271
  %s1277 = scalar_lea.vmem %s0, 2
  %s1278 = smov 192
  %v1279 = vld [vmem:[%s1277] ss:$16 sm:%s1278]
  %vm1280 = vcmask 1047558
  %v1281 = vsel %vm1280, %v1279, %v1276
  %1282 = vrot.lane.b32.xlu0 %v1281, 16
  %v1283 = vpop.permute.xlu0 %1282
  %vm1284 = vcmask 195712
  %1285 = vst.msk [vmem:[%s1] sm:$0xff] %vm1284, %v1283
  %s1286 = scalar_lea.vmem %s0, 130
  %s1287 = smov 3
  %v1288 = vld [vmem:[%s1286] ss:$16 sm:%s1287]
  %s1289 = scalar_lea.vmem %s0, 130
  %s1290 = smov 12
  %v1291 = vld [vmem:[%s1289] ss:$16 sm:%s1290]
  %vm1292 = vcmask 1043458
  %v1293 = vsel %vm1292, %v1291, %v1288
  %s1294 = scalar_lea.vmem %s0, 130
  %s1295 = smov 48
  %v1296 = vld [vmem:[%s1294] ss:$16 sm:%s1295]
  %vm1297 = vcmask 1045508
  %v1298 = vsel %vm1297, %v1296, %v1293
  %s1299 = scalar_lea.vmem %s0, 130
  %s1300 = smov 192
  %v1301 = vld [vmem:[%s1299] ss:$16 sm:%s1300]
  %vm1302 = vcmask 1047558
  %v1303 = vsel %vm1302, %v1301, %v1298
  %1304 = vrot.lane.b32.xlu0 %v1303, 16
  %v1305 = vpop.permute.xlu0 %1304
  %vm1306 = vcmask 195712
  %s1307 = scalar_lea.vmem %s1, 8
  %1308 = vst.msk [vmem:[%s1307] sm:$0xff] %vm1306, %v1305
  %s1309 = scalar_lea.vmem %s0, 258
  %s1310 = smov 3
  %v1311 = vld [vmem:[%s1309] ss:$16 sm:%s1310]
  %s1312 = scalar_lea.vmem %s0, 258
  %s1313 = smov 12
  %v1314 = vld [vmem:[%s1312] ss:$16 sm:%s1313]
  %vm1315 = vcmask 1043458
  %v1316 = vsel %vm1315, %v1314, %v1311
  %s1317 = scalar_lea.vmem %s0, 258
  %s1318 = smov 48
  %v1319 = vld [vmem:[%s1317] ss:$16 sm:%s1318]
  %vm1320 = vcmask 1045508
  %v1321 = vsel %vm1320, %v1319, %v1316
  %s1322 = scalar_lea.vmem %s0, 258
  %s1323 = smov 192
  %v1324 = vld [vmem:[%s1322] ss:$16 sm:%s1323]
  %vm1325 = vcmask 1047558
  %v1326 = vsel %vm1325, %v1324, %v1321
  %1327 = vrot.lane.b32.xlu0 %v1326, 16
  %v1328 = vpop.permute.xlu0 %1327
  %vm1329 = vcmask 195712
  %s1330 = scalar_lea.vmem %s1, 16
  %1331 = vst.msk [vmem:[%s1330] sm:$0xff] %vm1329, %v1328
  %s1332 = scalar_lea.vmem %s0, 386
  %s1333 = smov 3
  %v1334 = vld [vmem:[%s1332] ss:$16 sm:%s1333]
  %s1335 = scalar_lea.vmem %s0, 386
  %s1336 = smov 12
  %v1337 = vld [vmem:[%s1335] ss:$16 sm:%s1336]
  %vm1338 = vcmask 1043458
  %v1339 = vsel %vm1338, %v1337, %v1334
  %s1340 = scalar_lea.vmem %s0, 386
  %s1341 = smov 48
  %v1342 = vld [vmem:[%s1340] ss:$16 sm:%s1341]
  %vm1343 = vcmask 1045508
  %v1344 = vsel %vm1343, %v1342, %v1339
  %s1345 = scalar_lea.vmem %s0, 386
  %s1346 = smov 192
  %v1347 = vld [vmem:[%s1345] ss:$16 sm:%s1346]
  %vm1348 = vcmask 1047558
  %v1349 = vsel %vm1348, %v1347, %v1344
  %1350 = vrot.lane.b32.xlu0 %v1349, 16
  %v1351 = vpop.permute.xlu0 %1350
  %vm1352 = vcmask 195712
  %s1353 = scalar_lea.vmem %s1, 24
  %1354 = vst.msk [vmem:[%s1353] sm:$0xff] %vm1352, %v1351
  %s1355 = scalar_lea.vmem %s0, 1
  %s1356 = smov 3
  %v1357 = vld [vmem:[%s1355] ss:$16 sm:%s1356]
  %s1358 = scalar_lea.vmem %s0, 1
  %s1359 = smov 12
  %v1360 = vld [vmem:[%s1358] ss:$16 sm:%s1359]
  %vm1361 = vcmask 1043458
  %v1362 = vsel %vm1361, %v1360, %v1357
  %s1363 = scalar_lea.vmem %s0, 1
  %s1364 = smov 48
  %v1365 = vld [vmem:[%s1363] ss:$16 sm:%s1364]
  %vm1366 = vcmask 1045508
  %v1367 = vsel %vm1366, %v1365, %v1362
  %s1368 = scalar_lea.vmem %s0, 1
  %s1369 = smov 192
  %v1370 = vld [vmem:[%s1368] ss:$16 sm:%s1369]
  %vm1371 = vcmask 1047558
  %v1372 = vsel %vm1371, %v1370, %v1367
  %1373 = vrot.lane.b32.xlu0 %v1372, 8
  %v1374 = vpop.permute.xlu0 %1373
  %vm1375 = vcmask 130112
  %1376 = vst.msk [vmem:[%s1] sm:$0xff] %vm1375, %v1374
  %s1377 = scalar_lea.vmem %s0, 129
  %s1378 = smov 3
  %v1379 = vld [vmem:[%s1377] ss:$16 sm:%s1378]
  %s1380 = scalar_lea.vmem %s0, 129
  %s1381 = smov 12
  %v1382 = vld [vmem:[%s1380] ss:$16 sm:%s1381]
  %vm1383 = vcmask 1043458
  %v1384 = vsel %vm1383, %v1382, %v1379
  %s1385 = scalar_lea.vmem %s0, 129
  %s1386 = smov 48
  %v1387 = vld [vmem:[%s1385] ss:$16 sm:%s1386]
  %vm1388 = vcmask 1045508
  %v1389 = vsel %vm1388, %v1387, %v1384
  %s1390 = scalar_lea.vmem %s0, 129
  %s1391 = smov 192
  %v1392 = vld [vmem:[%s1390] ss:$16 sm:%s1391]
  %vm1393 = vcmask 1047558
  %v1394 = vsel %vm1393, %v1392, %v1389
  %1395 = vrot.lane.b32.xlu0 %v1394, 8
  %v1396 = vpop.permute.xlu0 %1395
  %vm1397 = vcmask 130112
  %s1398 = scalar_lea.vmem %s1, 8
  %1399 = vst.msk [vmem:[%s1398] sm:$0xff] %vm1397, %v1396
  %s1400 = scalar_lea.vmem %s0, 257
  %s1401 = smov 3
  %v1402 = vld [vmem:[%s1400] ss:$16 sm:%s1401]
  %s1403 = scalar_lea.vmem %s0, 257
  %s1404 = smov 12
  %v1405 = vld [vmem:[%s1403] ss:$16 sm:%s1404]
  %vm1406 = vcmask 1043458
  %v1407 = vsel %vm1406, %v1405, %v1402
  %s1408 = scalar_lea.vmem %s0, 257
  %s1409 = smov 48
  %v1410 = vld [vmem:[%s1408] ss:$16 sm:%s1409]
  %vm1411 = vcmask 1045508
  %v1412 = vsel %vm1411, %v1410, %v1407
  %s1413 = scalar_lea.vmem %s0, 257
  %s1414 = smov 192
  %v1415 = vld [vmem:[%s1413] ss:$16 sm:%s1414]
  %vm1416 = vcmask 1047558
  %v1417 = vsel %vm1416, %v1415, %v1412
  %1418 = vrot.lane.b32.xlu0 %v1417, 8
  %v1419 = vpop.permute.xlu0 %1418
  %vm1420 = vcmask 130112
  %s1421 = scalar_lea.vmem %s1, 16
  %1422 = vst.msk [vmem:[%s1421] sm:$0xff] %vm1420, %v1419
  %s1423 = scalar_lea.vmem %s0, 385
  %s1424 = smov 3
  %v1425 = vld [vmem:[%s1423] ss:$16 sm:%s1424]
  %s1426 = scalar_lea.vmem %s0, 385
  %s1427 = smov 12
  %v1428 = vld [vmem:[%s1426] ss:$16 sm:%s1427]
  %vm1429 = vcmask 1043458
  %v1430 = vsel %vm1429, %v1428, %v1425
  %s1431 = scalar_lea.vmem %s0, 385
  %s1432 = smov 48
  %v1433 = vld [vmem:[%s1431] ss:$16 sm:%s1432]
  %vm1434 = vcmask 1045508
  %v1435 = vsel %vm1434, %v1433, %v1430
  %s1436 = scalar_lea.vmem %s0, 385
  %s1437 = smov 192
  %v1438 = vld [vmem:[%s1436] ss:$16 sm:%s1437]
  %vm1439 = vcmask 1047558
  %v1440 = vsel %vm1439, %v1438, %v1435
  %1441 = vrot.lane.b32.xlu0 %v1440, 8
  %v1442 = vpop.permute.xlu0 %1441
  %vm1443 = vcmask 130112
  %s1444 = scalar_lea.vmem %s1, 24
  %1445 = vst.msk [vmem:[%s1444] sm:$0xff] %vm1443, %v1442

// kernel: tile.56
$region0: #{tile.56}
  %s0 = inlined_call_operand.vmem [shape: f32[2,8,8], index: 0, kind: input, shape index: {}]
  %s1 = inlined_call_operand.vmem [shape: f32[128], index: 1, kind: output, shape index: {}]
  $region1: #{tile.56} parent=0
    #allocation0 [shape = 'u8[4096]{0}', space=vmem, size = 0x1000, scoped, tag = 'scoped mem for output reshape']
    %v2 = vld [vmem:[%s0] sm:$0x1]
    %vm3 = vcmask 64512
    %4 = vst.msk [vmem:[#allocation0] sm:$0x1] %vm3, %v2
    %s5 = scalar_lea.vmem %s0, 15
    %v6 = vld [vmem:[%s5] sm:$0x1]
    %7 = vrot.lane.b32.xlu0 %v6, 120
    %v8 = vpop.permute.xlu0 %7
    %vm9 = vcmask 1048512
    %10 = vst.msk [vmem:[#allocation0] sm:$0x1] %vm9, %v8
    %s11 = scalar_lea.vmem %s0, 14
    %v12 = vld [vmem:[%s11] sm:$0x1]
    %13 = vrot.lane.b32.xlu0 %v12, 112
    %v14 = vpop.permute.xlu0 %13
    %vm15 = vcmask 982912
    %16 = vst.msk [vmem:[#allocation0] sm:$0x1] %vm15, %v14
    %s17 = scalar_lea.vmem %s0, 13
    %v18 = vld [vmem:[%s17] sm:$0x1]
    %19 = vrot.lane.b32.xlu0 %v18, 104
    %v20 = vpop.permute.xlu0 %19
    %vm21 = vcmask 917312
    %22 = vst.msk [vmem:[#allocation0] sm:$0x1] %vm21, %v20
    %s23 = scalar_lea.vmem %s0, 12
    %v24 = vld [vmem:[%s23] sm:$0x1]
    %25 = vrot.lane.b32.xlu0 %v24, 96
    %v26 = vpop.permute.xlu0 %25
    %vm27 = vcmask 851712
    %28 = vst.msk [vmem:[#allocation0] sm:$0x1] %vm27, %v26
    %s29 = scalar_lea.vmem %s0, 11
    %v30 = vld [vmem:[%s29] sm:$0x1]
    %31 = vrot.lane.b32.xlu0 %v30, 88
    %v32 = vpop.permute.xlu0 %31
    %vm33 = vcmask 786112
    %34 = vst.msk [vmem:[#allocation0] sm:$0x1] %vm33, %v32
    %s35 = scalar_lea.vmem %s0, 10
    %v36 = vld [vmem:[%s35] sm:$0x1]
    %37 = vrot.lane.b32.xlu0 %v36, 80
    %v38 = vpop.permute.xlu0 %37
    %vm39 = vcmask 720512
    %40 = vst.msk [vmem:[#allocation0] sm:$0x1] %vm39, %v38
    %s41 = scalar_lea.vmem %s0, 9
    %v42 = vld [vmem:[%s41] sm:$0x1]
    %43 = vrot.lane.b32.xlu0 %v42, 72
    %v44 = vpop.permute.xlu0 %43
    %vm45 = vcmask 654912
    %46 = vst.msk [vmem:[#allocation0] sm:$0x1] %vm45, %v44
    %s47 = scalar_lea.vmem %s0, 8
    %v48 = vld [vmem:[%s47] sm:$0x1]
    %49 = vrot.lane.b32.xlu0 %v48, 64
    %v50 = vpop.permute.xlu0 %49
    %vm51 = vcmask 589312
    %52 = vst.msk [vmem:[#allocation0] sm:$0x1] %vm51, %v50
    %s53 = scalar_lea.vmem %s0, 7
    %v54 = vld [vmem:[%s53] sm:$0x1]
    %55 = vrot.lane.b32.xlu0 %v54, 56
    %v56 = vpop.permute.xlu0 %55
    %vm57 = vcmask 523712
    %58 = vst.msk [vmem:[#allocation0] sm:$0x1] %vm57, %v56
    %s59 = scalar_lea.vmem %s0, 6
    %v60 = vld [vmem:[%s59] sm:$0x1]
    %61 = vrot.lane.b32.xlu0 %v60, 48
    %v62 = vpop.permute.xlu0 %61
    %vm63 = vcmask 458112
    %64 = vst.msk [vmem:[#allocation0] sm:$0x1] %vm63, %v62
    %s65 = scalar_lea.vmem %s0, 5
    %v66 = vld [vmem:[%s65] sm:$0x1]
    %67 = vrot.lane.b32.xlu0 %v66, 40
    %v68 = vpop.permute.xlu0 %67
    %vm69 = vcmask 392512
    %70 = vst.msk [vmem:[#allocation0] sm:$0x1] %vm69, %v68
    %s71 = scalar_lea.vmem %s0, 4
    %v72 = vld [vmem:[%s71] sm:$0x1]
    %73 = vrot.lane.b32.xlu0 %v72, 32
    %v74 = vpop.permute.xlu0 %73
    %vm75 = vcmask 326912
    %76 = vst.msk [vmem:[#allocation0] sm:$0x1] %vm75, %v74
    %s77 = scalar_lea.vmem %s0, 3
    %v78 = vld [vmem:[%s77] sm:$0x1]
    %79 = vrot.lane.b32.xlu0 %v78, 24
    %v80 = vpop.permute.xlu0 %79
    %vm81 = vcmask 261312
    %82 = vst.msk [vmem:[#allocation0] sm:$0x1] %vm81, %v80
    %s83 = scalar_lea.vmem %s0, 2
    %v84 = vld [vmem:[%s83] sm:$0x1]
    %85 = vrot.lane.b32.xlu0 %v84, 16
    %v86 = vpop.permute.xlu0 %85
    %vm87 = vcmask 195712
    %88 = vst.msk [vmem:[#allocation0] sm:$0x1] %vm87, %v86
    %s89 = scalar_lea.vmem %s0, 1
    %v90 = vld [vmem:[%s89] sm:$0x1]
    %91 = vrot.lane.b32.xlu0 %v90, 8
    %v92 = vpop.permute.xlu0 %91
    %vm93 = vcmask 130112
    %94 = vst.msk [vmem:[#allocation0] sm:$0x1] %vm93, %v92
    %s96 = sshllo.u32 0, 1
    %v98 = vld [vmem:[#allocation0] sm:%s96]
    %s99 = sshllo.u32 0, 1
    %100 = vst [vmem:[%s1] sm:%s99] %v98

// kernel: tile.57
$region0: #{tile.57}
  #allocation0 [shape = 's32[1]{0}', space=sflag, size = 0x4, scoped, tag = 'scoped memory for tile.57']
  %s0 = inlined_call_operand.vmem [shape: f32[128], index: 0, kind: input, shape index: {}]
  %s1 = inlined_call_operand.vmem [shape: f32[4,128], index: 1, kind: output, shape index: {}]
  // Predicated region
  $region2: #{tile.57} parent=0 // pred_check
    _
  $region3: #{tile.57} parent=0 // pred_check_branch
    %3 = sbr.rel (0) target = $region5
  $region4: #{tile.57} parent=0 // pred_region
    _
  $region5: #{tile.57} parent=0 // pred_fallthru
    _
  %v4 = vld [vmem:[%s0] ss:$0 sm:$0xff]
  %5 = vst [vmem:[%s1] sm:$0xf] %v4

// kernel: hire_unit_forward.1
$region0: #{hire_unit_forward.1}
  #allocation0 [shape = 'u32[]', space=smem, size = 0x4, offset = 0x4, fixed_abs, tag = 'smem constant byte address 0x4 - core index']
  #allocation1 [shape = 'u32[144,128]{1,0:T(1,128)}', space=vmem, size = 0x12000, scoped, tag = 'internal scratch']
  %s0 = inlined_call_operand.vmem [shape: f32[16,512], index: 0, kind: input, shape index: {}]
  %s1 = inlined_call_operand.vmem [shape: f32[512,128], index: 1, kind: input, shape index: {}]
  %s2 = inlined_call_operand.vmem [shape: f32[1,128], index: 2, kind: input, shape index: {}]
  %s3 = inlined_call_operand.vmem [shape: f32[1,128], index: 3, kind: input, shape index: {}]
  %s4 = inlined_call_operand.vmem [shape: f32[1,128], index: 4, kind: input, shape index: {}]
  %s5 = inlined_call_operand.vmem [shape: f32[128,128], index: 5, kind: input, shape index: {}]
  %s6 = inlined_call_operand.vmem [shape: f32[128,512], index: 6, kind: input, shape index: {}]
  %s7 = inlined_call_operand.vmem [shape: f32[1,512], index: 7, kind: input, shape index: {}]
  %s8 = inlined_call_operand.vmem [shape: f32[16,512], index: 8, kind: output, shape index: {}]
  %s9 = sld [smem:[#allocation0]]
  $region65: #{hire_unit_forward.1} parent=0
    _
  %s11 = ssub.s32 1, %s9
  %s12 = scalar_select 0, %s11, %s9
  loop: start=0, step=1, limit=4
  $region2: #{hire_unit_forward.1} parent=0 // loop_pre_header
    _
  $region3: #{hire_unit_forward.1} parent=0 // loop_header
    %s14 = sphi 0, %s18
    %p15 = scmp.ge.s32.totalorder %s14, 4
    %s24 = sphi 0, %s26
    %s27 = sphi 0, %s24
    %s28 = sphi 0, %s27
    %s44 = sphi 0, %s28
    %s48 = sphi 0, %s48
    %s50 = sphi 0, %s48
    %s51 = sphi 0, %s50
    %s65 = sphi 0, %s51
    %s69 = sphi 0, %s69
    %s71 = sphi 0, %s69
    %s72 = sphi 0, %s71
    %s86 = sphi 0, %s72
    %s90 = sphi 0, %s90
    %s92 = sphi 0, %s90
    %s93 = sphi 0, %s92
    %s107 = sphi 0, %s93
    %s111 = sphi 0, %s111
    %s113 = sphi 0, %s111
    %s114 = sphi 0, %s113
    %s128 = sphi 0, %s114
    %s132 = sphi 0, %s132
    %s134 = sphi 0, %s132
    %s135 = sphi 0, %s134
    %s149 = sphi 0, %s135
    %s153 = sphi 0, %s153
    %s155 = sphi 0, %s153
    %s156 = sphi 0, %s155
    %s170 = sphi 0, %s156
    %s174 = sphi 0, %s174
    %s176 = sphi 0, %s174
    %s177 = sphi 0, %s176
    %s191 = sphi 0, %s177
    %s197 = sphi 0, %s199
    %s200 = sphi 0, %s197
    %s201 = sphi 0, %s200
    %s217 = sphi 0, %s201
  $region4: #{hire_unit_forward.1} parent=0 // loop_header_branch
    %17 = sbr.rel (%p15) target = $region8
  $region5: #{hire_unit_forward.1} parent=0 // loop_body
    %s19 = ssub.s32 %s14, 1
    %s20 = ssub.s32 %s14, 2
    %s21 = sadd.s32 %s14, 1
    %s22 = ssub.s32 %s14, %s21
    %p23 = scmp.eq.s32.totalorder %s22, 0
    %s25 = sadd.s32 %s24, 1
    %s26 = scalar_select %p23, %s24, %s25
    %p29 = pneg %p23
    %p30 = scmp.eq.s32.totalorder %s14, 1
    %p31 = por %p29, %p30
    %p32 = scmp.ne.s32.totalorder %s24, %s27
    %p33 = scmp.eq.s32.totalorder %s14, 0
    %p34 = por %p32, %p33
    %p35 = scmp.ne.s32.totalorder %s24, %s27
    %p36 = scmp.eq.s32.totalorder %s19, 1
    %p37 = por %p35, %p36
    %p38 = scmp.ne.s32.totalorder %s27, %s28
    %p39 = scmp.eq.s32.totalorder %s19, 0
    %p40 = por %p38, %p39
    %p41 = scmp.ne.s32.totalorder %s27, %s28
    %p42 = scmp.eq.s32.totalorder %s20, 1
    %p43 = por %p41, %p42
    %p45 = scmp.ne.s32.totalorder %s28, %s44
    %p46 = scmp.eq.s32.totalorder %s20, 0
    %p47 = por %p45, %p46
    %s49 = sadd.s32 %s48, 1
    %p52 = scmp.eq.s32.totalorder %s14, 1
    %p53 = scmp.ne.s32.totalorder %s48, %s50
    %p54 = scmp.eq.s32.totalorder %s14, 0
    %p55 = por %p53, %p54
    %p56 = scmp.ne.s32.totalorder %s48, %s50
    %p57 = scmp.eq.s32.totalorder %s19, 1
    %p58 = por %p56, %p57
    %p59 = scmp.ne.s32.totalorder %s50, %s51
    %p60 = scmp.eq.s32.totalorder %s19, 0
    %p61 = por %p59, %p60
    %p62 = scmp.ne.s32.totalorder %s50, %s51
    %p63 = scmp.eq.s32.totalorder %s20, 1
    %p64 = por %p62, %p63
    %p66 = scmp.ne.s32.totalorder %s51, %s65
    %p67 = scmp.eq.s32.totalorder %s20, 0
    %p68 = por %p66, %p67
    %s70 = sadd.s32 %s69, 1
    %p73 = scmp.eq.s32.totalorder %s14, 1
    %p74 = scmp.ne.s32.totalorder %s69, %s71
    %p75 = scmp.eq.s32.totalorder %s14, 0
    %p76 = por %p74, %p75
    %p77 = scmp.ne.s32.totalorder %s69, %s71
    %p78 = scmp.eq.s32.totalorder %s19, 1
    %p79 = por %p77, %p78
    %p80 = scmp.ne.s32.totalorder %s71, %s72
    %p81 = scmp.eq.s32.totalorder %s19, 0
    %p82 = por %p80, %p81
    %p83 = scmp.ne.s32.totalorder %s71, %s72
    %p84 = scmp.eq.s32.totalorder %s20, 1
    %p85 = por %p83, %p84
    %p87 = scmp.ne.s32.totalorder %s72, %s86
    %p88 = scmp.eq.s32.totalorder %s20, 0
    %p89 = por %p87, %p88
    %s91 = sadd.s32 %s90, 1
    %p94 = scmp.eq.s32.totalorder %s14, 1
    %p95 = scmp.ne.s32.totalorder %s90, %s92
    %p96 = scmp.eq.s32.totalorder %s14, 0
    %p97 = por %p95, %p96
    %p98 = scmp.ne.s32.totalorder %s90, %s92
    %p99 = scmp.eq.s32.totalorder %s19, 1
    %p100 = por %p98, %p99
    %p101 = scmp.ne.s32.totalorder %s92, %s93
    %p102 = scmp.eq.s32.totalorder %s19, 0
    %p103 = por %p101, %p102
    %p104 = scmp.ne.s32.totalorder %s92, %s93
    %p105 = scmp.eq.s32.totalorder %s20, 1
    %p106 = por %p104, %p105
    %p108 = scmp.ne.s32.totalorder %s93, %s107
    %p109 = scmp.eq.s32.totalorder %s20, 0
    %p110 = por %p108, %p109
    %s112 = sadd.s32 %s111, 1
    %p115 = scmp.eq.s32.totalorder %s14, 1
    %p116 = scmp.ne.s32.totalorder %s111, %s113
    %p117 = scmp.eq.s32.totalorder %s14, 0
    %p118 = por %p116, %p117
    %p119 = scmp.ne.s32.totalorder %s111, %s113
    %p120 = scmp.eq.s32.totalorder %s19, 1
    %p121 = por %p119, %p120
    %p122 = scmp.ne.s32.totalorder %s113, %s114
    %p123 = scmp.eq.s32.totalorder %s19, 0
    %p124 = por %p122, %p123
    %p125 = scmp.ne.s32.totalorder %s113, %s114
    %p126 = scmp.eq.s32.totalorder %s20, 1
    %p127 = por %p125, %p126
    %p129 = scmp.ne.s32.totalorder %s114, %s128
    %p130 = scmp.eq.s32.totalorder %s20, 0
    %p131 = por %p129, %p130
    %s133 = sadd.s32 %s132, 1
    %p136 = scmp.eq.s32.totalorder %s14, 1
    %p137 = scmp.ne.s32.totalorder %s132, %s134
    %p138 = scmp.eq.s32.totalorder %s14, 0
    %p139 = por %p137, %p138
    %p140 = scmp.ne.s32.totalorder %s132, %s134
    %p141 = scmp.eq.s32.totalorder %s19, 1
    %p142 = por %p140, %p141
    %p143 = scmp.ne.s32.totalorder %s134, %s135
    %p144 = scmp.eq.s32.totalorder %s19, 0
    %p145 = por %p143, %p144
    %p146 = scmp.ne.s32.totalorder %s134, %s135
    %p147 = scmp.eq.s32.totalorder %s20, 1
    %p148 = por %p146, %p147
    %p150 = scmp.ne.s32.totalorder %s135, %s149
    %p151 = scmp.eq.s32.totalorder %s20, 0
    %p152 = por %p150, %p151
    %s154 = sadd.s32 %s153, 1
    %p157 = scmp.eq.s32.totalorder %s14, 1
    %p158 = scmp.ne.s32.totalorder %s153, %s155
    %p159 = scmp.eq.s32.totalorder %s14, 0
    %p160 = por %p158, %p159
    %p161 = scmp.ne.s32.totalorder %s153, %s155
    %p162 = scmp.eq.s32.totalorder %s19, 1
    %p163 = por %p161, %p162
    %p164 = scmp.ne.s32.totalorder %s155, %s156
    %p165 = scmp.eq.s32.totalorder %s19, 0
    %p166 = por %p164, %p165
    %p167 = scmp.ne.s32.totalorder %s155, %s156
    %p168 = scmp.eq.s32.totalorder %s20, 1
    %p169 = por %p167, %p168
    %p171 = scmp.ne.s32.totalorder %s156, %s170
    %p172 = scmp.eq.s32.totalorder %s20, 0
    %p173 = por %p171, %p172
    %s175 = sadd.s32 %s174, 1
    %p178 = scmp.eq.s32.totalorder %s14, 1
    %p179 = scmp.ne.s32.totalorder %s174, %s176
    %p180 = scmp.eq.s32.totalorder %s14, 0
    %p181 = por %p179, %p180
    %p182 = scmp.ne.s32.totalorder %s174, %s176
    %p183 = scmp.eq.s32.totalorder %s19, 1
    %p184 = por %p182, %p183
    %p185 = scmp.ne.s32.totalorder %s176, %s177
    %p186 = scmp.eq.s32.totalorder %s19, 0
    %p187 = por %p185, %p186
    %p188 = scmp.ne.s32.totalorder %s176, %s177
    %p189 = scmp.eq.s32.totalorder %s20, 1
    %p190 = por %p188, %p189
    %p192 = scmp.ne.s32.totalorder %s177, %s191
    %p193 = scmp.eq.s32.totalorder %s20, 0
    %p194 = por %p192, %p193
    %s195 = ssub.s32 %s14, %s21
    %p196 = scmp.eq.s32.totalorder %s195, 0
    %s198 = sadd.s32 %s197, 1
    %s199 = scalar_select %p196, %s197, %s198
    %p202 = pneg %p196
    %p203 = scmp.eq.s32.totalorder %s14, 1
    %p204 = por %p202, %p203
    %p205 = scmp.ne.s32.totalorder %s197, %s200
    %p206 = scmp.eq.s32.totalorder %s14, 0
    %p207 = por %p205, %p206
    %p208 = scmp.ne.s32.totalorder %s197, %s200
    %p209 = scmp.eq.s32.totalorder %s19, 1
    %p210 = por %p208, %p209
    %p211 = scmp.ne.s32.totalorder %s200, %s201
    %p212 = scmp.eq.s32.totalorder %s19, 0
    %p213 = por %p211, %p212
    %p214 = scmp.ne.s32.totalorder %s200, %s201
    %p215 = scmp.eq.s32.totalorder %s20, 1
    %p216 = por %p214, %p215
    %p218 = scmp.ne.s32.totalorder %s201, %s217
    %p219 = scmp.eq.s32.totalorder %s20, 0
    %p220 = por %p218, %p219
    %p221 = scmp.le.s32.totalorder 1, %s14
    %p222 = scmp.lt.s32.totalorder %s14, 3
    %p223 = pnand %p221, %p222
    %p224 = pneg %p223
    // Predicated region
    $region9: #{hire_unit_forward.1} parent=5 // pred_check
      _
    $region10: #{hire_unit_forward.1} parent=5 // pred_check_branch
      %226 = sbr.rel (%p223) target = $region12
    $region11: #{hire_unit_forward.1} parent=5 // pred_region
      %s227 = ssub.s32 %s14, 1
      // Predicated region
      $region13: #{hire_unit_forward.1} parent=11 // pred_check
        %p228 = pneg %p61
      $region14: #{hire_unit_forward.1} parent=11 // pred_check_branch
        %230 = sbr.rel (%p228) target = $region16
      $region15: #{hire_unit_forward.1} parent=11 // pred_region
        _
      $region16: #{hire_unit_forward.1} parent=11 // pred_fallthru
        _
      // Predicated region
      $region17: #{hire_unit_forward.1} parent=11 // pred_check
        %p231 = pneg %p82
      $region18: #{hire_unit_forward.1} parent=11 // pred_check_branch
        %233 = sbr.rel (%p231) target = $region20
      $region19: #{hire_unit_forward.1} parent=11 // pred_region
        _
      $region20: #{hire_unit_forward.1} parent=11 // pred_fallthru
        _
      // Predicated region
      $region21: #{hire_unit_forward.1} parent=11 // pred_check
        %p234 = pneg %p103
      $region22: #{hire_unit_forward.1} parent=11 // pred_check_branch
        %236 = sbr.rel (%p234) target = $region24
      $region23: #{hire_unit_forward.1} parent=11 // pred_region
        _
      $region24: #{hire_unit_forward.1} parent=11 // pred_fallthru
        _
      // Predicated region
      $region25: #{hire_unit_forward.1} parent=11 // pred_check
        %p237 = pneg %p124
      $region26: #{hire_unit_forward.1} parent=11 // pred_check_branch
        %239 = sbr.rel (%p237) target = $region28
      $region27: #{hire_unit_forward.1} parent=11 // pred_region
        _
      $region28: #{hire_unit_forward.1} parent=11 // pred_fallthru
        _
      // Predicated region
      $region29: #{hire_unit_forward.1} parent=11 // pred_check
        %p240 = pneg %p145
      $region30: #{hire_unit_forward.1} parent=11 // pred_check_branch
        %242 = sbr.rel (%p240) target = $region32
      $region31: #{hire_unit_forward.1} parent=11 // pred_region
        _
      $region32: #{hire_unit_forward.1} parent=11 // pred_fallthru
        _
      // Predicated region
      $region33: #{hire_unit_forward.1} parent=11 // pred_check
        %p243 = pneg %p166
      $region34: #{hire_unit_forward.1} parent=11 // pred_check_branch
        %245 = sbr.rel (%p243) target = $region36
      $region35: #{hire_unit_forward.1} parent=11 // pred_region
        _
      $region36: #{hire_unit_forward.1} parent=11 // pred_fallthru
        _
      // Predicated region
      $region37: #{hire_unit_forward.1} parent=11 // pred_check
        %p246 = pneg %p187
      $region38: #{hire_unit_forward.1} parent=11 // pred_check_branch
        %248 = sbr.rel (%p246) target = $region40
      $region39: #{hire_unit_forward.1} parent=11 // pred_region
        _
      $region40: #{hire_unit_forward.1} parent=11 // pred_fallthru
        _
    $region12: #{hire_unit_forward.1} parent=5 // pred_fallthru
      _
    %p249 = scmp.lt.s32.totalorder %s14, 2
    // Predicated region
    $region41: #{hire_unit_forward.1} parent=5 // pred_check
      %p250 = pneg %p249
    $region42: #{hire_unit_forward.1} parent=5 // pred_check_branch
      %252 = sbr.rel (%p250) target = $region44
    $region43: #{hire_unit_forward.1} parent=5 // pred_region
      // Predicated region
      $region45: #{hire_unit_forward.1} parent=43 // pred_check
        %p253 = pneg %p34
      $region46: #{hire_unit_forward.1} parent=43 // pred_check_branch
        %255 = sbr.rel (%p253) target = $region48
      $region47: #{hire_unit_forward.1} parent=43 // pred_region
        %p256 = scmp.lt.s32.totalorder %s14, 1
        %s257 = scalar_select %p256, %s14, 1
        %s258 = smul.addr %s257, 4
        %s259 = smul.addr %s258, 8
        %s260 = scalar_lea.vmem %s0, %s259
      $region48: #{hire_unit_forward.1} parent=43 // pred_fallthru
        _
    $region44: #{hire_unit_forward.1} parent=5 // pred_fallthru
      _
    %p261 = scmp.le.s32.totalorder 1, %s14
    %p262 = scmp.lt.s32.totalorder %s14, 3
    %p263 = pnand %p261, %p262
    %p264 = pneg %p263
    // Predicated region
    $region49: #{hire_unit_forward.1} parent=5 // pred_check
      _
    $region50: #{hire_unit_forward.1} parent=5 // pred_check_branch
      %266 = sbr.rel (%p263) target = $region52
    $region51: #{hire_unit_forward.1} parent=5 // pred_region
      %s267 = ssub.s32 %s14, 1
      %p268 = scmp.lt.s32.totalorder %s19, 1
      %s269 = scalar_select %p268, %s19, 1
      %s270 = smul.addr %s269, 4
      %s271 = smul.addr %s270, 8
      %s272 = scalar_lea.vmem %s0, %s271
      %p273 = pneg %p40
      %p274 = pneg %p37
      %p275 = pneg %p61
      %p276 = pneg %p58
      %p277 = pneg %p82
      %p278 = pneg %p79
      %p279 = pneg %p103
      %p280 = pneg %p100
      %p281 = pneg %p124
      %p282 = pneg %p121
      %p283 = pneg %p145
      %p284 = pneg %p142
      %p285 = pneg %p166
      %p286 = pneg %p163
      %p287 = pneg %p187
      %p288 = pneg %p184
      %p289 = pneg %p213
      %p290 = pneg %p210
      %p291 = scmp.lt.s32.totalorder %s19, 1
      %s292 = scalar_select %p291, %s19, 1
      %s293 = smul.addr %s292, 4
      %s294 = smul.addr %s293, 8
      %s295 = scalar_lea.vmem %s8, %s294
      %p296 = scmp.lt.s32.totalorder %s19, 1
      %s297 = scalar_select %p296, %s19, 1
      %s298 = smul.addr %s297, 4
      %s299 = smul.addr %s298, 8
      %s300 = scalar_lea.vmem %s0, %s299
      %p301 = scmp.lt.s32.totalorder %s19, 1
      %s302 = scalar_select %p301, %s19, 1
      %s303 = smul.addr %s302, 4
      %s304 = smul.addr %s303, 8
      %s305 = scalar_lea.vmem %s8, %s304
      %v306 = vld [vmem:[%s300] sm:$0xff]
      %v307 = vld [vmem:[%s300 + $0x8] sm:$0xff]
      %v308 = vld [vmem:[%s300 + $0x10] sm:$0xff]
      %v309 = vld [vmem:[%s300 + $0x18] sm:$0xff]
      %v310 = vld [vmem:[%s1] sm:$0xff]
      %v311 = vld [vmem:[%s1 + $0x8] sm:$0xff]
      %v312 = vld [vmem:[%s1 + $0x10] sm:$0xff]
      %v313 = vld [vmem:[%s1 + $0x18] sm:$0xff]
      %v314 = vld [vmem:[%s1 + $0x20] sm:$0xff]
      %v315 = vld [vmem:[%s1 + $0x28] sm:$0xff]
      %v316 = vld [vmem:[%s1 + $0x30] sm:$0xff]
      %v317 = vld [vmem:[%s1 + $0x38] sm:$0xff]
      %v318 = vld [vmem:[%s1 + $0x40] sm:$0xff]
      %v319 = vld [vmem:[%s1 + $0x48] sm:$0xff]
      %v320 = vld [vmem:[%s1 + $0x50] sm:$0xff]
      %v321 = vld [vmem:[%s1 + $0x58] sm:$0xff]
      %v322 = vld [vmem:[%s1 + $0x60] sm:$0xff]
      %v323 = vld [vmem:[%s1 + $0x68] sm:$0xff]
      %v324 = vld [vmem:[%s1 + $0x70] sm:$0xff]
      %v325 = vld [vmem:[%s1 + $0x78] sm:$0xff]
      %v326 = vld [vmem:[%s1 + $0x80] sm:$0xff]
      %v327 = vld [vmem:[%s1 + $0x88] sm:$0xff]
      %v328 = vld [vmem:[%s1 + $0x90] sm:$0xff]
      %v329 = vld [vmem:[%s1 + $0x98] sm:$0xff]
      %v330 = vld [vmem:[%s1 + $0xa0] sm:$0xff]
      %v331 = vld [vmem:[%s1 + $0xa8] sm:$0xff]
      %v332 = vld [vmem:[%s1 + $0xb0] sm:$0xff]
      %v333 = vld [vmem:[%s1 + $0xb8] sm:$0xff]
      %v334 = vld [vmem:[%s1 + $0xc0] sm:$0xff]
      %v335 = vld [vmem:[%s1 + $0xc8] sm:$0xff]
      %v336 = vld [vmem:[%s1 + $0xd0] sm:$0xff]
      %v337 = vld [vmem:[%s1 + $0xd8] sm:$0xff]
      %v338 = vld [vmem:[%s1 + $0xe0] sm:$0xff]
      %v339 = vld [vmem:[%s1 + $0xe8] sm:$0xff]
      %v340 = vld [vmem:[%s1 + $0xf0] sm:$0xff]
      %v341 = vld [vmem:[%s1 + $0xf8] sm:$0xff]
      %v342 = vld [vmem:[%s1 + $0x100] sm:$0xff]
      %v343 = vld [vmem:[%s1 + $0x108] sm:$0xff]
      %v344 = vld [vmem:[%s1 + $0x110] sm:$0xff]
      %v345 = vld [vmem:[%s1 + $0x118] sm:$0xff]
      %v346 = vld [vmem:[%s1 + $0x120] sm:$0xff]
      %v347 = vld [vmem:[%s1 + $0x128] sm:$0xff]
      %v348 = vld [vmem:[%s1 + $0x130] sm:$0xff]
      %v349 = vld [vmem:[%s1 + $0x138] sm:$0xff]
      %v350 = vld [vmem:[%s1 + $0x140] sm:$0xff]
      %v351 = vld [vmem:[%s1 + $0x148] sm:$0xff]
      %v352 = vld [vmem:[%s1 + $0x150] sm:$0xff]
      %v353 = vld [vmem:[%s1 + $0x158] sm:$0xff]
      %v354 = vld [vmem:[%s1 + $0x160] sm:$0xff]
      %v355 = vld [vmem:[%s1 + $0x168] sm:$0xff]
      %v356 = vld [vmem:[%s1 + $0x170] sm:$0xff]
      %v357 = vld [vmem:[%s1 + $0x178] sm:$0xff]
      %v358 = vld [vmem:[%s1 + $0x180] sm:$0xff]
      %v359 = vld [vmem:[%s1 + $0x188] sm:$0xff]
      %v360 = vld [vmem:[%s1 + $0x190] sm:$0xff]
      %v361 = vld [vmem:[%s1 + $0x198] sm:$0xff]
      %v362 = vld [vmem:[%s1 + $0x1a0] sm:$0xff]
      %v363 = vld [vmem:[%s1 + $0x1a8] sm:$0xff]
      %v364 = vld [vmem:[%s1 + $0x1b0] sm:$0xff]
      %v365 = vld [vmem:[%s1 + $0x1b8] sm:$0xff]
      %v366 = vld [vmem:[%s1 + $0x1c0] sm:$0xff]
      %v367 = vld [vmem:[%s1 + $0x1c8] sm:$0xff]
      %v368 = vld [vmem:[%s1 + $0x1d0] sm:$0xff]
      %v369 = vld [vmem:[%s1 + $0x1d8] sm:$0xff]
      %v370 = vld [vmem:[%s1 + $0x1e0] sm:$0xff]
      %v371 = vld [vmem:[%s1 + $0x1e8] sm:$0xff]
      %v372 = vld [vmem:[%s1 + $0x1f0] sm:$0xff]
      %v373 = vld [vmem:[%s1 + $0x1f8] sm:$0xff]
      %v374 = vld [vmem:[%s2] sm:$0x1]
      %v376 = vlaneseq
      %v377 = vshrl.u32 %v376, 7
      %v378 = vsub.s32 0, %v377
      %v379 = vrot.slane %v374, %v378
      %381 = vmatprep.subr.mxu0 0.0
      %382 = vmatpush1.msra.mxu0 %v310
      %383 = vmatprep.subr.mxu0 0.0
      %384 = vmatpush1.msra.mxu0 %v311
      %385 = vmatprep.subr.mxu0 0.0
      %386 = vmatpush1.msra.mxu0 %v312
      %387 = vmatprep.subr.mxu0 0.0
      %388 = vmatpush1.msra.mxu0 %v313
      %389 = vmatprep.subr.mxu0 0.0
      %390 = vmatpush1.msra.mxu0 %v314
      %391 = vmatprep.subr.mxu0 0.0
      %392 = vmatpush1.msra.mxu0 %v315
      %393 = vmatprep.subr.mxu0 0.0
      %394 = vmatpush1.msra.mxu0 %v316
      %395 = vmatprep.subr.mxu0 0.0
      %396 = vmatpush1.msra.mxu0 %v317
      %397 = vmatprep.subr.mxu0 0.0
      %398 = vmatpush1.msra.mxu0 %v318
      %399 = vmatprep.subr.mxu0 0.0
      %400 = vmatpush1.msra.mxu0 %v319
      %401 = vmatprep.subr.mxu0 0.0
      %402 = vmatpush1.msra.mxu0 %v320
      %403 = vmatprep.subr.mxu0 0.0
      %404 = vmatpush1.msra.mxu0 %v321
      %405 = vmatprep.subr.mxu0 0.0
      %406 = vmatpush1.msra.mxu0 %v322
      %407 = vmatprep.subr.mxu0 0.0
      %408 = vmatpush1.msra.mxu0 %v323
      %409 = vmatprep.subr.mxu0 0.0
      %410 = vmatpush1.msra.mxu0 %v324
      %411 = vmatprep.subr.mxu0 0.0
      %412 = vmatpush1.msra.mxu0 %v325
      %413 = vmatprep.subr.mxu0 0.0
      %414 = vmatpush1.msra.mxu0 %v326
      %415 = vmatprep.subr.mxu0 0.0
      %416 = vmatpush1.msra.mxu0 %v327
      %417 = vmatprep.subr.mxu0 0.0
      %418 = vmatpush1.msra.mxu0 %v328
      %419 = vmatprep.subr.mxu0 0.0
      %420 = vmatpush1.msra.mxu0 %v329
      %421 = vmatprep.subr.mxu0 0.0
      %422 = vmatpush1.msra.mxu0 %v330
      %423 = vmatprep.subr.mxu0 0.0
      %424 = vmatpush1.msra.mxu0 %v331
      %425 = vmatprep.subr.mxu0 0.0
      %426 = vmatpush1.msra.mxu0 %v332
      %427 = vmatprep.subr.mxu0 0.0
      %428 = vmatpush1.msra.mxu0 %v333
      %429 = vmatprep.subr.mxu0 0.0
      %430 = vmatpush1.msra.mxu0 %v334
      %431 = vmatprep.subr.mxu0 0.0
      %432 = vmatpush1.msra.mxu0 %v335
      %433 = vmatprep.subr.mxu0 0.0
      %434 = vmatpush1.msra.mxu0 %v336
      %435 = vmatprep.subr.mxu0 0.0
      %436 = vmatpush1.msra.mxu0 %v337
      %437 = vmatprep.subr.mxu0 0.0
      %438 = vmatpush1.msra.mxu0 %v338
      %439 = vmatprep.subr.mxu0 0.0
      %440 = vmatpush1.msra.mxu0 %v339
      %441 = vmatprep.subr.mxu0 0.0
      %442 = vmatpush1.msra.mxu0 %v340
      %443 = vmatprep.subr.mxu0 0.0
      %444 = vmatpush1.msra.mxu0 %v341
      %445 = vmatprep.mubr.f32.mxu0 %v307
      %446 = vmatmul.mubr.f32.gmra.mrb[0].mxu0 %v306
      %v447 = vpop.f32.mrb[0].mxu0
      %v448 = vadd.f32 %v379, %v447
      %v449 = vpop.f32.mrb[0].mxu0
      %450 = vdwg.mxu0
      %451 = vmatprep.subr.mxu0 0.0
      %452 = vmatpush1.msra.mxu0 %v342
      %453 = vmatprep.subr.mxu0 0.0
      %454 = vmatpush1.msra.mxu0 %v343
      %455 = vmatprep.subr.mxu0 0.0
      %456 = vmatpush1.msra.mxu0 %v344
      %457 = vmatprep.subr.mxu0 0.0
      %458 = vmatpush1.msra.mxu0 %v345
      %459 = vmatprep.subr.mxu0 0.0
      %460 = vmatpush1.msra.mxu0 %v346
      %461 = vmatprep.subr.mxu0 0.0
      %462 = vmatpush1.msra.mxu0 %v347
      %463 = vmatprep.subr.mxu0 0.0
      %464 = vmatpush1.msra.mxu0 %v348
      %465 = vmatprep.subr.mxu0 0.0
      %466 = vmatpush1.msra.mxu0 %v349
      %467 = vmatprep.subr.mxu0 0.0
      %468 = vmatpush1.msra.mxu0 %v350
      %469 = vmatprep.subr.mxu0 0.0
      %470 = vmatpush1.msra.mxu0 %v351
      %471 = vmatprep.subr.mxu0 0.0
      %472 = vmatpush1.msra.mxu0 %v352
      %473 = vmatprep.subr.mxu0 0.0
      %474 = vmatpush1.msra.mxu0 %v353
      %475 = vmatprep.subr.mxu0 0.0
      %476 = vmatpush1.msra.mxu0 %v354
      %477 = vmatprep.subr.mxu0 0.0
      %478 = vmatpush1.msra.mxu0 %v355
      %479 = vmatprep.subr.mxu0 0.0
      %480 = vmatpush1.msra.mxu0 %v356
      %481 = vmatprep.subr.mxu0 0.0
      %482 = vmatpush1.msra.mxu0 %v357
      %483 = vmatprep.subr.mxu0 0.0
      %484 = vmatpush1.msra.mxu0 %v358
      %485 = vmatprep.subr.mxu0 0.0
      %486 = vmatpush1.msra.mxu0 %v359
      %487 = vmatprep.subr.mxu0 0.0
      %488 = vmatpush1.msra.mxu0 %v360
      %489 = vmatprep.subr.mxu0 0.0
      %490 = vmatpush1.msra.mxu0 %v361
      %491 = vmatprep.subr.mxu0 0.0
      %492 = vmatpush1.msra.mxu0 %v362
      %493 = vmatprep.subr.mxu0 0.0
      %494 = vmatpush1.msra.mxu0 %v363
      %495 = vmatprep.subr.mxu0 0.0
      %496 = vmatpush1.msra.mxu0 %v364
      %497 = vmatprep.subr.mxu0 0.0
      %498 = vmatpush1.msra.mxu0 %v365
      %499 = vmatprep.subr.mxu0 0.0
      %500 = vmatpush1.msra.mxu0 %v366
      %501 = vmatprep.subr.mxu0 0.0
      %502 = vmatpush1.msra.mxu0 %v367
      %503 = vmatprep.subr.mxu0 0.0
      %504 = vmatpush1.msra.mxu0 %v368
      %505 = vmatprep.subr.mxu0 0.0
      %506 = vmatpush1.msra.mxu0 %v369
      %507 = vmatprep.subr.mxu0 0.0
      %508 = vmatpush1.msra.mxu0 %v370
      %509 = vmatprep.subr.mxu0 0.0
      %510 = vmatpush1.msra.mxu0 %v371
      %511 = vmatprep.subr.mxu0 0.0
      %512 = vmatpush1.msra.mxu0 %v372
      %513 = vmatprep.subr.mxu0 0.0
      %514 = vmatpush1.msra.mxu0 %v373
      %515 = vmatprep.mubr.f32.mxu0 %v309
      %516 = vmatmul.mubr.f32.gmra.mrb[0].mxu0 %v308
      %v517 = vpop.f32.mrb[0].mxu0
      %v518 = vadd.f32 %v448, %v517
      %v519 = vpop.f32.mrb[0].mxu0
      %520 = vdwg.mxu0
      %v521 = vld [vmem:[%s5] sm:$0xff]
      %v522 = vld [vmem:[%s5 + $0x8] sm:$0xff]
      %v523 = vld [vmem:[%s5 + $0x10] sm:$0xff]
      %v524 = vld [vmem:[%s5 + $0x18] sm:$0xff]
      %v525 = vld [vmem:[%s5 + $0x20] sm:$0xff]
      %v526 = vld [vmem:[%s5 + $0x28] sm:$0xff]
      %v527 = vld [vmem:[%s5 + $0x30] sm:$0xff]
      %v528 = vld [vmem:[%s5 + $0x38] sm:$0xff]
      %v529 = vld [vmem:[%s5 + $0x40] sm:$0xff]
      %v530 = vld [vmem:[%s5 + $0x48] sm:$0xff]
      %v531 = vld [vmem:[%s5 + $0x50] sm:$0xff]
      %v532 = vld [vmem:[%s5 + $0x58] sm:$0xff]
      %v533 = vld [vmem:[%s5 + $0x60] sm:$0xff]
      %v534 = vld [vmem:[%s5 + $0x68] sm:$0xff]
      %v535 = vld [vmem:[%s5 + $0x70] sm:$0xff]
      %v536 = vld [vmem:[%s5 + $0x78] sm:$0xff]
      %537 = vmatprep.subr.mxu0 0.0
      %538 = vmatpush1.msra.mxu0 %v521
      %539 = vmatprep.subr.mxu0 0.0
      %540 = vmatpush1.msra.mxu0 %v522
      %541 = vmatprep.subr.mxu0 0.0
      %542 = vmatpush1.msra.mxu0 %v523
      %543 = vmatprep.subr.mxu0 0.0
      %544 = vmatpush1.msra.mxu0 %v524
      %545 = vmatprep.subr.mxu0 0.0
      %546 = vmatpush1.msra.mxu0 %v525
      %547 = vmatprep.subr.mxu0 0.0
      %548 = vmatpush1.msra.mxu0 %v526
      %549 = vmatprep.subr.mxu0 0.0
      %550 = vmatpush1.msra.mxu0 %v527
      %551 = vmatprep.subr.mxu0 0.0
      %552 = vmatpush1.msra.mxu0 %v528
      %553 = vmatprep.subr.mxu0 0.0
      %554 = vmatpush1.msra.mxu0 %v529
      %555 = vmatprep.subr.mxu0 0.0
      %556 = vmatpush1.msra.mxu0 %v530
      %557 = vmatprep.subr.mxu0 0.0
      %558 = vmatpush1.msra.mxu0 %v531
      %559 = vmatprep.subr.mxu0 0.0
      %560 = vmatpush1.msra.mxu0 %v532
      %561 = vmatprep.subr.mxu0 0.0
      %562 = vmatpush1.msra.mxu0 %v533
      %563 = vmatprep.subr.mxu0 0.0
      %564 = vmatpush1.msra.mxu0 %v534
      %565 = vmatprep.subr.mxu0 0.0
      %566 = vmatpush1.msra.mxu0 %v535
      %567 = vmatprep.subr.mxu0 0.0
      %568 = vmatpush1.msra.mxu0 %v536
      %569 = vmatprep.subr.mxu0 0.0
      %570 = vmatpush1.msra.mxu0 0.0
      %571 = vmatprep.subr.mxu0 0.0
      %572 = vmatpush1.msra.mxu0 0.0
      %573 = vmatprep.subr.mxu0 0.0
      %574 = vmatpush1.msra.mxu0 0.0
      %575 = vmatprep.subr.mxu0 0.0
      %576 = vmatpush1.msra.mxu0 0.0
      %577 = vmatprep.subr.mxu0 0.0
      %578 = vmatpush1.msra.mxu0 0.0
      %579 = vmatprep.subr.mxu0 0.0
      %580 = vmatpush1.msra.mxu0 0.0
      %581 = vmatprep.subr.mxu0 0.0
      %582 = vmatpush1.msra.mxu0 0.0
      %583 = vmatprep.subr.mxu0 0.0
      %584 = vmatpush1.msra.mxu0 0.0
      %585 = vmatprep.subr.mxu0 0.0
      %586 = vmatpush1.msra.mxu0 0.0
      %587 = vmatprep.subr.mxu0 0.0
      %588 = vmatpush1.msra.mxu0 0.0
      %589 = vmatprep.subr.mxu0 0.0
      %590 = vmatpush1.msra.mxu0 0.0
      %591 = vmatprep.subr.mxu0 0.0
      %592 = vmatpush1.msra.mxu0 0.0
      %593 = vmatprep.subr.mxu0 0.0
      %594 = vmatpush1.msra.mxu0 0.0
      %595 = vmatprep.subr.mxu0 0.0
      %596 = vmatpush1.msra.mxu0 0.0
      %597 = vmatprep.subr.mxu0 0.0
      %598 = vmatpush1.msra.mxu0 0.0
      %599 = vmatprep.subr.mxu0 0.0
      %600 = vmatpush1.msra.mxu0 0.0
      %601 = vmatprep.mubr.f32.mxu0 0.0
      %602 = vmatmul.mubr.f32.gmra.mrb[0].mxu0 %v518
      %v603 = vpop.f32.mrb[0].mxu0
      %v604 = vadd.f32 0.0, %v603
      %v605 = vpop.f32.mrb[0].mxu0
      %606 = vdwg.mxu0
      %v607 = vmul.f32 %v518, %v518
      %608 = vmatprep.subr.mxu0 0.0
      %609 = vmatpush1.msra.mxu0 %v521
      %610 = vmatprep.subr.mxu0 0.0
      %611 = vmatpush1.msra.mxu0 %v522
      %612 = vmatprep.subr.mxu0 0.0
      %613 = vmatpush1.msra.mxu0 %v523
      %614 = vmatprep.subr.mxu0 0.0
      %615 = vmatpush1.msra.mxu0 %v524
      %616 = vmatprep.subr.mxu0 0.0
      %617 = vmatpush1.msra.mxu0 %v525
      %618 = vmatprep.subr.mxu0 0.0
      %619 = vmatpush1.msra.mxu0 %v526
      %620 = vmatprep.subr.mxu0 0.0
      %621 = vmatpush1.msra.mxu0 %v527
      %622 = vmatprep.subr.mxu0 0.0
      %623 = vmatpush1.msra.mxu0 %v528
      %624 = vmatprep.subr.mxu0 0.0
      %625 = vmatpush1.msra.mxu0 %v529
      %626 = vmatprep.subr.mxu0 0.0
      %627 = vmatpush1.msra.mxu0 %v530
      %628 = vmatprep.subr.mxu0 0.0
      %629 = vmatpush1.msra.mxu0 %v531
      %630 = vmatprep.subr.mxu0 0.0
      %631 = vmatpush1.msra.mxu0 %v532
      %632 = vmatprep.subr.mxu0 0.0
      %633 = vmatpush1.msra.mxu0 %v533
      %634 = vmatprep.subr.mxu0 0.0
      %635 = vmatpush1.msra.mxu0 %v534
      %636 = vmatprep.subr.mxu0 0.0
      %637 = vmatpush1.msra.mxu0 %v535
      %638 = vmatprep.subr.mxu0 0.0
      %639 = vmatpush1.msra.mxu0 %v536
      %640 = vmatprep.subr.mxu0 0.0
      %641 = vmatpush1.msra.mxu0 0.0
      %642 = vmatprep.subr.mxu0 0.0
      %643 = vmatpush1.msra.mxu0 0.0
      %644 = vmatprep.subr.mxu0 0.0
      %645 = vmatpush1.msra.mxu0 0.0
      %646 = vmatprep.subr.mxu0 0.0
      %647 = vmatpush1.msra.mxu0 0.0
      %648 = vmatprep.subr.mxu0 0.0
      %649 = vmatpush1.msra.mxu0 0.0
      %650 = vmatprep.subr.mxu0 0.0
      %651 = vmatpush1.msra.mxu0 0.0
      %652 = vmatprep.subr.mxu0 0.0
      %653 = vmatpush1.msra.mxu0 0.0
      %654 = vmatprep.subr.mxu0 0.0
      %655 = vmatpush1.msra.mxu0 0.0
      %656 = vmatprep.subr.mxu0 0.0
      %657 = vmatpush1.msra.mxu0 0.0
      %658 = vmatprep.subr.mxu0 0.0
      %659 = vmatpush1.msra.mxu0 0.0
      %660 = vmatprep.subr.mxu0 0.0
      %661 = vmatpush1.msra.mxu0 0.0
      %662 = vmatprep.subr.mxu0 0.0
      %663 = vmatpush1.msra.mxu0 0.0
      %664 = vmatprep.subr.mxu0 0.0
      %665 = vmatpush1.msra.mxu0 0.0
      %666 = vmatprep.subr.mxu0 0.0
      %667 = vmatpush1.msra.mxu0 0.0
      %668 = vmatprep.subr.mxu0 0.0
      %669 = vmatpush1.msra.mxu0 0.0
      %670 = vmatprep.subr.mxu0 0.0
      %671 = vmatpush1.msra.mxu0 0.0
      %672 = vmatprep.mubr.f32.mxu0 0.0
      %673 = vmatmul.mubr.f32.gmra.mrb[0].mxu0 %v607
      %v674 = vpop.f32.mrb[0].mxu0
      %v675 = vadd.f32 0.0, %v674
      %v676 = vpop.f32.mrb[0].mxu0
      %677 = vdwg.mxu0
      %v678 = vmul.f32 %v604, %v604
      %v679 = vsub.f32 %v675, %v678
      %v680 = vmax.f32 %v679, 0.0
      %v681 = vsub.f32 %v518, %v604
      %v682 = vadd.f32 %v680, 1e-05
      %v683 = vrsqrt.pop %v682
      %v684 = vmul.f32 %v681, %v683
      %v685 = vld [vmem:[%s3] sm:$0x1]
      %v687 = vlaneseq
      %v688 = vshrl.u32 %v687, 7
      %v689 = vsub.s32 0, %v688
      %v690 = vrot.slane %v685, %v689
      %v692 = vmul.f32 %v684, %v690
      %v693 = vld [vmem:[%s4] sm:$0x1]
      %v695 = vlaneseq
      %v696 = vshrl.u32 %v695, 7
      %v697 = vsub.s32 0, %v696
      %v698 = vrot.slane %v693, %v697
      %v700 = vadd.f32 %v692, %v698
      %v701 = vmul.f32 %v700, 0.5
      %v702 = vmul.f32 %v700, 0.70710677
      %v703 = verf.f32.pop %v702
      %v704 = vadd.f32 %v703, 1.0
      %v705 = vmul.f32 %v701, %v704
      %v706 = vld [vmem:[%s6] sm:$0xff]
      %v707 = vld [vmem:[%s6 + $0x8] sm:$0xff]
      %v708 = vld [vmem:[%s6 + $0x10] sm:$0xff]
      %v709 = vld [vmem:[%s6 + $0x18] sm:$0xff]
      %v710 = vld [vmem:[%s6 + $0x20] sm:$0xff]
      %v711 = vld [vmem:[%s6 + $0x28] sm:$0xff]
      %v712 = vld [vmem:[%s6 + $0x30] sm:$0xff]
      %v713 = vld [vmem:[%s6 + $0x38] sm:$0xff]
      %v714 = vld [vmem:[%s6 + $0x40] sm:$0xff]
      %v715 = vld [vmem:[%s6 + $0x48] sm:$0xff]
      %v716 = vld [vmem:[%s6 + $0x50] sm:$0xff]
      %v717 = vld [vmem:[%s6 + $0x58] sm:$0xff]
      %v718 = vld [vmem:[%s6 + $0x60] sm:$0xff]
      %v719 = vld [vmem:[%s6 + $0x68] sm:$0xff]
      %v720 = vld [vmem:[%s6 + $0x70] sm:$0xff]
      %v721 = vld [vmem:[%s6 + $0x78] sm:$0xff]
      %v722 = vld [vmem:[%s6 + $0x80] sm:$0xff]
      %v723 = vld [vmem:[%s6 + $0x88] sm:$0xff]
      %v724 = vld [vmem:[%s6 + $0x90] sm:$0xff]
      %v725 = vld [vmem:[%s6 + $0x98] sm:$0xff]
      %v726 = vld [vmem:[%s6 + $0xa0] sm:$0xff]
      %v727 = vld [vmem:[%s6 + $0xa8] sm:$0xff]
      %v728 = vld [vmem:[%s6 + $0xb0] sm:$0xff]
      %v729 = vld [vmem:[%s6 + $0xb8] sm:$0xff]
      %v730 = vld [vmem:[%s6 + $0xc0] sm:$0xff]
      %v731 = vld [vmem:[%s6 + $0xc8] sm:$0xff]
      %v732 = vld [vmem:[%s6 + $0xd0] sm:$0xff]
      %v733 = vld [vmem:[%s6 + $0xd8] sm:$0xff]
      %v734 = vld [vmem:[%s6 + $0xe0] sm:$0xff]
      %v735 = vld [vmem:[%s6 + $0xe8] sm:$0xff]
      %v736 = vld [vmem:[%s6 + $0xf0] sm:$0xff]
      %v737 = vld [vmem:[%s6 + $0xf8] sm:$0xff]
      %v738 = vld [vmem:[%s6 + $0x100] sm:$0xff]
      %v739 = vld [vmem:[%s6 + $0x108] sm:$0xff]
      %v740 = vld [vmem:[%s6 + $0x110] sm:$0xff]
      %v741 = vld [vmem:[%s6 + $0x118] sm:$0xff]
      %v742 = vld [vmem:[%s6 + $0x120] sm:$0xff]
      %v743 = vld [vmem:[%s6 + $0x128] sm:$0xff]
      %v744 = vld [vmem:[%s6 + $0x130] sm:$0xff]
      %v745 = vld [vmem:[%s6 + $0x138] sm:$0xff]
      %v746 = vld [vmem:[%s6 + $0x140] sm:$0xff]
      %v747 = vld [vmem:[%s6 + $0x148] sm:$0xff]
      %v748 = vld [vmem:[%s6 + $0x150] sm:$0xff]
      %v749 = vld [vmem:[%s6 + $0x158] sm:$0xff]
      %v750 = vld [vmem:[%s6 + $0x160] sm:$0xff]
      %v751 = vld [vmem:[%s6 + $0x168] sm:$0xff]
      %v752 = vld [vmem:[%s6 + $0x170] sm:$0xff]
      %v753 = vld [vmem:[%s6 + $0x178] sm:$0xff]
      %v754 = vld [vmem:[%s6 + $0x180] sm:$0xff]
      %v755 = vld [vmem:[%s6 + $0x188] sm:$0xff]
      %v756 = vld [vmem:[%s6 + $0x190] sm:$0xff]
      %v757 = vld [vmem:[%s6 + $0x198] sm:$0xff]
      %v758 = vld [vmem:[%s6 + $0x1a0] sm:$0xff]
      %v759 = vld [vmem:[%s6 + $0x1a8] sm:$0xff]
      %v760 = vld [vmem:[%s6 + $0x1b0] sm:$0xff]
      %v761 = vld [vmem:[%s6 + $0x1b8] sm:$0xff]
      %v762 = vld [vmem:[%s6 + $0x1c0] sm:$0xff]
      %v763 = vld [vmem:[%s6 + $0x1c8] sm:$0xff]
      %v764 = vld [vmem:[%s6 + $0x1d0] sm:$0xff]
      %v765 = vld [vmem:[%s6 + $0x1d8] sm:$0xff]
      %v766 = vld [vmem:[%s6 + $0x1e0] sm:$0xff]
      %v767 = vld [vmem:[%s6 + $0x1e8] sm:$0xff]
      %v768 = vld [vmem:[%s6 + $0x1f0] sm:$0xff]
      %v769 = vld [vmem:[%s6 + $0x1f8] sm:$0xff]
      %v770 = vld [vmem:[%s7] sm:$0xf]
      %v772 = vlaneseq
      %v773 = vshrl.u32 %v772, 7
      %v774 = vsub.s32 0, %v773
      %v775 = vrot.slane %v770, %v774
      %v776 = vlaneseq
      %v777 = vshrl.u32 %v776, 7
      %v778 = vsub.s32 1, %v777
      %v779 = vrot.slane %v770, %v778
      %v780 = vlaneseq
      %v781 = vshrl.u32 %v780, 7
      %v782 = vsub.s32 2, %v781
      %v783 = vrot.slane %v770, %v782
      %v784 = vlaneseq
      %v785 = vshrl.u32 %v784, 7
      %v786 = vsub.s32 3, %v785
      %v787 = vrot.slane %v770, %v786
      %792 = vmatprep.subr.mxu0 %v707
      %793 = vmatpush1.msra.mxu0 %v706
      %794 = vmatprep.subr.mxu0 %v711
      %795 = vmatpush1.msra.mxu0 %v710
      %796 = vmatprep.subr.mxu0 %v715
      %797 = vmatpush1.msra.mxu0 %v714
      %798 = vmatprep.subr.mxu0 %v719
      %799 = vmatpush1.msra.mxu0 %v718
      %800 = vmatprep.subr.mxu0 %v723
      %801 = vmatpush1.msra.mxu0 %v722
      %802 = vmatprep.subr.mxu0 %v727
      %803 = vmatpush1.msra.mxu0 %v726
      %804 = vmatprep.subr.mxu0 %v731
      %805 = vmatpush1.msra.mxu0 %v730
      %806 = vmatprep.subr.mxu0 %v735
      %807 = vmatpush1.msra.mxu0 %v734
      %808 = vmatprep.subr.mxu0 %v739
      %809 = vmatpush1.msra.mxu0 %v738
      %810 = vmatprep.subr.mxu0 %v743
      %811 = vmatpush1.msra.mxu0 %v742
      %812 = vmatprep.subr.mxu0 %v747
      %813 = vmatpush1.msra.mxu0 %v746
      %814 = vmatprep.subr.mxu0 %v751
      %815 = vmatpush1.msra.mxu0 %v750
      %816 = vmatprep.subr.mxu0 %v755
      %817 = vmatpush1.msra.mxu0 %v754
      %818 = vmatprep.subr.mxu0 %v759
      %819 = vmatpush1.msra.mxu0 %v758
      %820 = vmatprep.subr.mxu0 %v763
      %821 = vmatpush1.msra.mxu0 %v762
      %822 = vmatprep.subr.mxu0 %v767
      %823 = vmatpush1.msra.mxu0 %v766
      %824 = vmatprep.subr.mxu0 0.0
      %825 = vmatpush1.msra.mxu0 0.0
      %826 = vmatprep.subr.mxu0 0.0
      %827 = vmatpush1.msra.mxu0 0.0
      %828 = vmatprep.subr.mxu0 0.0
      %829 = vmatpush1.msra.mxu0 0.0
      %830 = vmatprep.subr.mxu0 0.0
      %831 = vmatpush1.msra.mxu0 0.0
      %832 = vmatprep.subr.mxu0 0.0
      %833 = vmatpush1.msra.mxu0 0.0
      %834 = vmatprep.subr.mxu0 0.0
      %835 = vmatpush1.msra.mxu0 0.0
      %836 = vmatprep.subr.mxu0 0.0
      %837 = vmatpush1.msra.mxu0 0.0
      %838 = vmatprep.subr.mxu0 0.0
      %839 = vmatpush1.msra.mxu0 0.0
      %840 = vmatprep.subr.mxu0 0.0
      %841 = vmatpush1.msra.mxu0 0.0
      %842 = vmatprep.subr.mxu0 0.0
      %843 = vmatpush1.msra.mxu0 0.0
      %844 = vmatprep.subr.mxu0 0.0
      %845 = vmatpush1.msra.mxu0 0.0
      %846 = vmatprep.subr.mxu0 0.0
      %847 = vmatpush1.msra.mxu0 0.0
      %848 = vmatprep.subr.mxu0 0.0
      %849 = vmatpush1.msra.mxu0 0.0
      %850 = vmatprep.subr.mxu0 0.0
      %851 = vmatpush1.msra.mxu0 0.0
      %852 = vmatprep.subr.mxu0 0.0
      %853 = vmatpush1.msra.mxu0 0.0
      %854 = vmatprep.subr.mxu0 0.0
      %855 = vmatpush1.msra.mxu0 0.0
      %856 = vmatprep.mubr.f32.mxu0 0.0
      %857 = vmatmul.mubr.f32.gmra.mrb[0].mxu0 %v705
      %v858 = vpop.f32.mrb[0].mxu0
      %v859 = vadd.f32 %v775, %v858
      %v860 = vpop.f32.mrb[0].mxu0
      %v861 = vadd.f32 %v779, %v860
      %862 = vdwg.mxu0
      %863 = vmatprep.subr.mxu0 %v709
      %864 = vmatpush1.msra.mxu0 %v708
      %865 = vmatprep.subr.mxu0 %v713
      %866 = vmatpush1.msra.mxu0 %v712
      %867 = vmatprep.subr.mxu0 %v717
      %868 = vmatpush1.msra.mxu0 %v716
      %869 = vmatprep.subr.mxu0 %v721
      %870 = vmatpush1.msra.mxu0 %v720
      %871 = vmatprep.subr.mxu0 %v725
      %872 = vmatpush1.msra.mxu0 %v724
      %873 = vmatprep.subr.mxu0 %v729
      %874 = vmatpush1.msra.mxu0 %v728
      %875 = vmatprep.subr.mxu0 %v733
      %876 = vmatpush1.msra.mxu0 %v732
      %877 = vmatprep.subr.mxu0 %v737
      %878 = vmatpush1.msra.mxu0 %v736
      %879 = vmatprep.subr.mxu0 %v741
      %880 = vmatpush1.msra.mxu0 %v740
      %881 = vmatprep.subr.mxu0 %v745
      %882 = vmatpush1.msra.mxu0 %v744
      %883 = vmatprep.subr.mxu0 %v749
      %884 = vmatpush1.msra.mxu0 %v748
      %885 = vmatprep.subr.mxu0 %v753
      %886 = vmatpush1.msra.mxu0 %v752
      %887 = vmatprep.subr.mxu0 %v757
      %888 = vmatpush1.msra.mxu0 %v756
      %889 = vmatprep.subr.mxu0 %v761
      %890 = vmatpush1.msra.mxu0 %v760
      %891 = vmatprep.subr.mxu0 %v765
      %892 = vmatpush1.msra.mxu0 %v764
      %893 = vmatprep.subr.mxu0 %v769
      %894 = vmatpush1.msra.mxu0 %v768
      %895 = vmatprep.subr.mxu0 0.0
      %896 = vmatpush1.msra.mxu0 0.0
      %897 = vmatprep.subr.mxu0 0.0
      %898 = vmatpush1.msra.mxu0 0.0
      %899 = vmatprep.subr.mxu0 0.0
      %900 = vmatpush1.msra.mxu0 0.0
      %901 = vmatprep.subr.mxu0 0.0
      %902 = vmatpush1.msra.mxu0 0.0
      %903 = vmatprep.subr.mxu0 0.0
      %904 = vmatpush1.msra.mxu0 0.0
      %905 = vmatprep.subr.mxu0 0.0
      %906 = vmatpush1.msra.mxu0 0.0
      %907 = vmatprep.subr.mxu0 0.0
      %908 = vmatpush1.msra.mxu0 0.0
      %909 = vmatprep.subr.mxu0 0.0
      %910 = vmatpush1.msra.mxu0 0.0
      %911 = vmatprep.subr.mxu0 0.0
      %912 = vmatpush1.msra.mxu0 0.0
      %913 = vmatprep.subr.mxu0 0.0
      %914 = vmatpush1.msra.mxu0 0.0
      %915 = vmatprep.subr.mxu0 0.0
      %916 = vmatpush1.msra.mxu0 0.0
      %917 = vmatprep.subr.mxu0 0.0
      %918 = vmatpush1.msra.mxu0 0.0
      %919 = vmatprep.subr.mxu0 0.0
      %920 = vmatpush1.msra.mxu0 0.0
      %921 = vmatprep.subr.mxu0 0.0
      %922 = vmatpush1.msra.mxu0 0.0
      %923 = vmatprep.subr.mxu0 0.0
      %924 = vmatpush1.msra.mxu0 0.0
      %925 = vmatprep.subr.mxu0 0.0
      %926 = vmatpush1.msra.mxu0 0.0
      %927 = vmatprep.mubr.f32.mxu0 0.0
      %928 = vmatmul.mubr.f32.gmra.mrb[0].mxu0 %v705
      %v929 = vpop.f32.mrb[0].mxu0
      %v930 = vadd.f32 %v783, %v929
      %v931 = vpop.f32.mrb[0].mxu0
      %v932 = vadd.f32 %v787, %v931
      %933 = vdwg.mxu0
      %934 = vst [vmem:[%s305] sm:$0xff] %v859
      %935 = vst [vmem:[%s305 + $0x8] sm:$0xff] %v861
      %936 = vst [vmem:[%s305 + $0x10] sm:$0xff] %v930
      %937 = vst [vmem:[%s305 + $0x18] sm:$0xff] %v932
      %p938 = scmp.lt.s32.totalorder %s19, 1
      %s939 = scalar_select %p938, %s19, 1
      %s940 = smul.addr %s939, 4
      %s941 = smul.addr %s940, 8
      %s942 = scalar_lea.vmem %s8, %s941
      // Predicated region
      $region53: #{hire_unit_forward.1} parent=51 // pred_check
        %p943 = pneg %p210
      $region54: #{hire_unit_forward.1} parent=51 // pred_check_branch
        %945 = sbr.rel (%p943) target = $region56
      $region55: #{hire_unit_forward.1} parent=51 // pred_region
        _
      $region56: #{hire_unit_forward.1} parent=51 // pred_fallthru
        _
    $region52: #{hire_unit_forward.1} parent=5 // pred_fallthru
      _
    %p946 = scmp.le.s32.totalorder 2, %s14
    // Predicated region
    $region57: #{hire_unit_forward.1} parent=5 // pred_check
      %p947 = pneg %p946
    $region58: #{hire_unit_forward.1} parent=5 // pred_check_branch
      %949 = sbr.rel (%p947) target = $region60
    $region59: #{hire_unit_forward.1} parent=5 // pred_region
      %s950 = ssub.s32 %s14, 2
      // Predicated region
      $region61: #{hire_unit_forward.1} parent=59 // pred_check
        %p951 = pneg %p216
      $region62: #{hire_unit_forward.1} parent=59 // pred_check_branch
        %953 = sbr.rel (%p951) target = $region64
      $region63: #{hire_unit_forward.1} parent=59 // pred_region
        %p954 = scmp.lt.s32.totalorder %s20, 1
        %s955 = scalar_select %p954, %s20, 1
        %s956 = smul.addr %s955, 4
        %s957 = smul.addr %s956, 8
        %s958 = scalar_lea.vmem %s8, %s957
      $region64: #{hire_unit_forward.1} parent=59 // pred_fallthru
        _
    $region60: #{hire_unit_forward.1} parent=5 // pred_fallthru
      _
  $region6: #{hire_unit_forward.1} parent=0 // loop_footer
    %s18 = sadd.s32 1, %s14
  $region7: #{hire_unit_forward.1} parent=0 // loop_footer_branch
    %13 = sbr.rel target = $region3
  $region8: #{hire_unit_forward.1} parent=0 // loop_exit
    _

</llo_original>
